<compile_context>
chip_gen: v5e
topology: v5e:2x2
jax: 0.10.0
libtpu: 0.0.40
codegen_flags: <defaults>
</compile_context>

<pallas_src>
from functools import partial

import numpy as np
import jax
import jax.numpy as jnp
from jax.experimental import pallas as pl
from jax.experimental.pallas import tpu as pltpu


# ---------------------------------------------------------------------------
# upsample(+pad, +flatten) selection matrix:  (H0*W0, (H+3)*(W+2)) 0/1 matrix.
# Row r in [1, H], col c in [1, W] of the padded upsampled image take the value of
# original pixel ((r-1)//2, (c-1)//2); everything else is zero.  Two extra zero rows
# at the bottom guard the static tap-slice overrun of the flattened image.
# ---------------------------------------------------------------------------
def _build_upsample_matrix(H0, W0, dtype=jnp.bfloat16):
    H, W = 2 * H0, 2 * W0
    Wp = W + 2
    Lx = (H + 3) * Wp
    m = np.zeros((H0 * W0, Lx), np.float32)
    l = np.arange(Lx)
    r, c = l // Wp, l % Wp
    valid = (r >= 1) & (r <= H) & (c >= 1) & (c <= W)
    src = (np.maximum(r - 1, 0) // 2) * W0 + (np.maximum(c - 1, 0) // 2)
    m[src[valid], l[valid]] = 1.0
    return jnp.asarray(m, dtype=dtype)


# ---------------------------------------------------------------------------
# pass 1: upsample+pad (MXU) -> im2col (lane slices) -> conv (MXU) ->
#         write y_wide + per-sample partial BN stats
# ---------------------------------------------------------------------------
def _upconv_y_stats_kernel(Wp, W, x_ref, up_ref, w_ref, b_ref, y_ref, stats_ref):
    # x_ref : (1, Cin, H0*W0)   bf16   original image, channel-major, flattened
    # up_ref: (H0*W0, Lx)       bf16   upsample/pad/flatten selection matrix
    # w_ref : (1, Cout, 9*Cin)  bf16   per-sample aggregated kernel (dy,dx,ci)-major
    # b_ref : (1, Cout, 1)      f32    per-sample aggregated bias
    # y_ref : (1, Cout, Lo)     f32    wide conv output (rows carry 2 junk columns)
    # stats : (1, Cout, 2)      f32    per-sample partial [sum, sum_sq] over valid pos
    Lo = y_ref.shape[2]

    # upsample + zero-pad + row-flatten in a single MXU matmul; exact (0/1 matrix).
    xpf = jax.lax.dot_general(
        x_ref[0], up_ref[...], (((1,), (0,)), ((), ())),
        preferred_element_type=jnp.float32).astype(jnp.bfloat16)       # (Cin, Lx)

    # im2col: tap (dy,dx) is a contiguous lane slice at static offset dy*Wp+dx,
    # concatenated along the (cheap) sublane axis -> (9*Cin, Lo), lane-dense.
    taps = [xpf[:, dy * Wp + dx: dy * Wp + dx + Lo]
            for dy in range(3) for dx in range(3)]
    patches = jnp.concatenate(taps, axis=0)

    acc = jax.lax.dot_general(
        w_ref[0], patches, (((1,), (0,)), ((), ())),
        preferred_element_type=jnp.float32)                            # (Cout, Lo)
    acc = acc + b_ref[0]                                               # lane broadcast
    y_ref[0] = acc

    # BN partial stats over the valid output columns only (col index mod Wp < W).
    # NOTE: E[y^2]-mean^2 in f32 is adequate at these magnitudes; a shifted/Welford
    # reduction would be needed for very large activations.
    col = jax.lax.broadcasted_iota(jnp.int32, (1, Lo), 1) % Wp
    maskf = (col < W).astype(jnp.float32)                              # (1, Lo)
    masked = acc * maskf
    s1 = jnp.sum(masked, axis=1, keepdims=True)                        # (Cout, 1)
    s2 = jnp.sum(masked * acc, axis=1, keepdims=True)                  # (Cout, 1)
    stats_ref[0] = jnp.concatenate([s1, s2], axis=1)


# ---------------------------------------------------------------------------
# pass 2: elementwise BN + ReLU on y_wide, compact to NCHW and store.
# Output kept f32 to match the PyTorch module; could be bf16 if downstream allows.
# ---------------------------------------------------------------------------
def _bn_relu_store_kernel(Wp, W, y_ref, scale_ref, shift_ref, o_ref):
    # y_ref : (1, Cout, Lo) f32 ; scale/shift: (Cout, 1) f32 ; o_ref: (1, Cout, H, W)
    Cout = y_ref.shape[1]
    H = o_ref.shape[2]
    y = jnp.maximum(y_ref[0] * scale_ref[...] + shift_ref[...], 0.0)   # (Cout, Lo)
    o_ref[0] = y.reshape(Cout, H, Wp)[:, :, :W].astype(o_ref.dtype)    # drop junk cols


# ---------------------------------------------------------------------------
# wrapper
# ---------------------------------------------------------------------------
def _vmem_limit_bytes(block_shapes_dtypes, extra_bytes=0):
    """Padded block sum (x2 buffers) + temporaries, capped by the chip's VMEM."""
    def padded(shape, dtype):
        it = jnp.dtype(dtype).itemsize
        sub = 32 // it                               # 8 (f32) / 16 (bf16) sublane tile
        major = int(np.prod(shape[:-2])) if len(shape) > 2 else 1
        s, l = shape[-2], shape[-1]
        return major * pl.cdiv(s, sub) * sub * pl.cdiv(l, 128) * 128 * it

    need = 2 * sum(padded(s, d) for s, d in block_shapes_dtypes) + int(extra_bytes)
    try:
        cap = pltpu.get_tpu_info().vmem_capacity_bytes
    except Exception:
        cap = 64 * 1024 * 1024
    return int(min(max(int(1.5 * need), 16 * 1024 * 1024), int(0.7 * cap)))


def up_conv_dcoa_forward(x_nchw, p):
    """Forward of up_conv_dcoa. x: (B, Cin, H0, W0) NCHW -> (B, Cout, 2H0, 2W0) NCHW."""
    B, Cin, H0, W0 = x_nchw.shape
    Cout = p["experts"].shape[1]
    H, W = 2 * H0, 2 * W0
    Wp = W + 2                      # padded row width of the upsampled image
    Lo = H * Wp                     # wide (lane-dense) output length per sample
    Lx = (H + 3) * Wp               # flattened padded image length (+2 guard rows)

    x = x_nchw.astype(jnp.float32)

    # --- attention2d (tiny glue). Mean over the nearest-upsampled tensor equals the
    #     mean over x, so pool x directly. ---
    pooled = jnp.mean(x, axis=(2, 3))                                  # (B, Cin)
    hid = jnp.maximum(pooled @ p["fc1_w"].T, 0.0)
    logits = hid @ p["fc2_w"].T + p["fc2_b"]
    att = jax.nn.softmax(logits / p["temperature"], axis=-1)           # (B, K)

    # --- per-sample expert-kernel aggregation, flattened (dy,dx,ci)-major ---
    w_agg = jnp.einsum('bk,koiyx->boyxi', att, p["experts"])           # (B,Cout,3,3,Cin)
    w_flat = w_agg.reshape(B, Cout, 9 * Cin).astype(jnp.bfloat16)
    b_col = (att @ p["expert_bias"]).reshape(B, Cout, 1).astype(jnp.float32)

    # --- kernel inputs: original image (bf16, channel-major, flat) + selection mat ---
    x_flat = x.reshape(B, Cin, H0 * W0).astype(jnp.bfloat16)
    up_mat = _build_upsample_matrix(H0, W0)                            # (H0*W0, Lx) bf16

    x_spec = pl.BlockSpec((1, Cin, H0 * W0), lambda b: (b, 0, 0))
    up_spec = pl.BlockSpec((H0 * W0, Lx), lambda b: (0, 0))            # resident block
    w_spec = pl.BlockSpec((1, Cout, 9 * Cin), lambda b: (b, 0, 0))
    b_spec = pl.BlockSpec((1, Cout, 1), lambda b: (b, 0, 0))

    vlim1 = _vmem_limit_bytes(
        [((1, Cin, H0 * W0), jnp.bfloat16),
         ((H0 * W0, Lx), jnp.bfloat16),
         ((1, Cout, 9 * Cin), jnp.bfloat16),
         ((1, Cout, 1), jnp.float32),
         ((1, Cout, Lo), jnp.float32),
         ((1, Cout, 2), jnp.float32)],
        extra_bytes=Cin * Lx * 6 + 2 * 9 * Cin * Lo * 2 + Cout * Lo * 4)
    cparams1 = pltpu.CompilerParams(dimension_semantics=("parallel",),
                                    vmem_limit_bytes=vlim1)

    # --- pass 1: conv once -> y_wide (lane-dense) + per-sample partial BN stats ---
    y_wide, stats = pl.pallas_call(
        partial(_upconv_y_stats_kernel, Wp, W),
        out_shape=(jax.ShapeDtypeStruct((B, Cout, Lo), jnp.float32),
                   jax.ShapeDtypeStruct((B, Cout, 2), jnp.float32)),
        grid=(B,),
        in_specs=[x_spec, up_spec, w_spec, b_spec],
        out_specs=(pl.BlockSpec((1, Cout, Lo), lambda b: (b, 0, 0)),
                   pl.BlockSpec((1, Cout, 2), lambda b: (b, 0, 0))),
        compiler_params=cparams1,
    )(x_flat, up_mat, w_flat, b_col)

    # --- fold stats into BN scale/shift (training-mode batch statistics) ---
    n = float(B * H * W)
    s = jnp.sum(stats, axis=0)                                         # (Cout, 2)
    mean = s[:, 0] / n
    var = jnp.maximum(s[:, 1] / n - mean * mean, 0.0)                  # biased var (PyTorch BN)
    inv = 1.0 / jnp.sqrt(var + p["eps"])
    scale = (p["gamma"] * inv).astype(jnp.float32).reshape(Cout, 1)
    shift = (p["beta"] - mean * p["gamma"] * inv).astype(jnp.float32).reshape(Cout, 1)

    vlim2 = _vmem_limit_bytes(
        [((1, Cout, Lo), jnp.float32), ((Cout, 1), jnp.float32),
         ((Cout, 1), jnp.float32), ((1, Cout, H, W), jnp.float32)],
        extra_bytes=2 * Cout * Lo * 4)
    cparams2 = pltpu.CompilerParams(dimension_semantics=("parallel",),
                                    vmem_limit_bytes=vlim2)

    # --- pass 2: elementwise BN + ReLU, compact NCHW store (no conv recompute) ---
    out = pl.pallas_call(
        partial(_bn_relu_store_kernel, Wp, W),
        out_shape=jax.ShapeDtypeStruct((B, Cout, H, W), jnp.float32),
        grid=(B,),
        in_specs=[pl.BlockSpec((1, Cout, Lo), lambda b: (b, 0, 0)),
                  pl.BlockSpec((Cout, 1), lambda b: (0, 0)),
                  pl.BlockSpec((Cout, 1), lambda b: (0, 0))],
        out_specs=pl.BlockSpec((1, Cout, H, W), lambda b: (b, 0, 0, 0)),
        compiler_params=cparams2,
    )(y_wide, scale, shift)

    return out                                                          # NCHW f32


# ---------------------------------------------------------------------------
# independent pure-JAX reference (conv operands cast to bf16 to mirror the kernel's
# MXU precision; accumulation and BN in f32)
# ---------------------------------------------------------------------------
def _reference(x_nchw, p):
    x = jnp.transpose(x_nchw, (0, 2, 3, 1)).astype(jnp.float32)
    x_up = jnp.repeat(jnp.repeat(x, 2, axis=1), 2, axis=2)
    B, H, W, Cin = x_up.shape
    Cout = p["experts"].shape[1]

    pooled = jnp.mean(x_up, axis=(1, 2))                        # pool after upsample
    hid = jnp.maximum(pooled @ p["fc1_w"].T, 0.0)
    logits = hid @ p["fc2_w"].T + p["fc2_b"]
    att = jax.nn.softmax(logits / p["temperature"], axis=-1)

    w_agg = jnp.einsum('bk,kocyx->bocyx', att, p["experts"]).astype(jnp.bfloat16)
    b_agg = att @ p["expert_bias"]

    xp = jnp.pad(x_up, ((0, 0), (1, 1), (1, 1), (0, 0))).astype(jnp.bfloat16)
    y = jnp.zeros((B, H, W, Cout), jnp.float32)
    for dy in range(3):
        for dx in range(3):
            y = y + jnp.einsum('bhwi,boi->bhwo',
                               xp[:, dy:dy + H, dx:dx + W, :],
                               w_agg[:, :, :, dy, dx],
                               preferred_element_type=jnp.float32)
    y = y + b_agg[:, None, None, :]
    mean = jnp.mean(y, axis=(0, 1, 2))
    var = jnp.mean((y - mean) ** 2, axis=(0, 1, 2))
    yn = (y - mean) / jnp.sqrt(var + p["eps"]) * p["gamma"] + p["beta"]
    return jnp.transpose(jnp.maximum(yn, 0.0), (0, 3, 1, 2))


if __name__ == "__main__":
    B, ch_in, ch_out, H0, W0 = 2, 4, 8, 16, 16
    K = 4                                       # Dynamic_conv2d default K
    hidden = int(ch_in * 0.25) + 1              # attention2d hidden planes (ratio=0.25)

    key = jax.random.PRNGKey(0)
    ks = jax.random.split(key, 6)
    params = dict(
        experts=0.1 * jax.random.normal(ks[0], (K, ch_out, ch_in, 3, 3), jnp.float32),
        expert_bias=0.1 * jax.random.normal(ks[1], (K, ch_out), jnp.float32),
        fc1_w=0.5 * jax.random.normal(ks[2], (hidden, ch_in), jnp.float32),
        fc2_w=0.5 * jax.random.normal(ks[3], (K, hidden), jnp.float32),
        fc2_b=0.1 * jax.random.normal(ks[4], (K,), jnp.float32),
        gamma=jnp.ones((ch_out,), jnp.float32),  # BatchNorm2d default affine init
        beta=jnp.zeros((ch_out,), jnp.float32),
        temperature=34.0,                        # Dynamic_conv2d default
        eps=1e-5,
    )
    x = jax.random.normal(ks[5], (B, ch_in, H0, W0), jnp.float32)

    out = jax.block_until_ready(jax.jit(up_conv_dcoa_forward)(x, params))
    ref = _reference(x, params)
    np.testing.assert_allclose(np.asarray(out), np.asarray(ref), rtol=2e-3, atol=2e-3)
    print("KERNEL_OK")
</pallas_src>

<mosaic_0001>
module attributes {stable_mosaic.version = 11 : i64} {
  func.func @_bn_relu_store_kernel(%arg0: i32, %arg1: memref<1x8x1088xf32, #tpu.memory_space<vmem>>, %arg2: memref<8x1xf32, #tpu.memory_space<vmem>>, %arg3: memref<8x1xf32, #tpu.memory_space<vmem>>, %arg4: memref<1x8x32x32xf32, #tpu.memory_space<vmem>>) attributes {dimension_semantics = [#tpu.dimension_semantics<parallel>], iteration_bounds = array<i64: 2>, scalar_prefetch = 0 : i64, scratch_operands = 0 : i64, tpu.core_type = #tpu.core_type<tc>, window_params = [{transform_indices = @transform_0, window_bounds = array<i64: 1, 8, 1088>}, {pipeline_mode = #tpu.pipeline_mode<synchronous>, transform_indices = @transform_1, window_bounds = array<i64: 8, 1>}, {pipeline_mode = #tpu.pipeline_mode<synchronous>, transform_indices = @transform_2, window_bounds = array<i64: 8, 1>}, {transform_indices = @transform_3, window_bounds = array<i64: 1, 8, 32, 32>}]} {
    %c0 = arith.constant 0 : index
    %c0_0 = arith.constant 0 : index
    %c0_1 = arith.constant 0 : index
    %0 = vector.load %arg1[%c0, %c0_0, %c0_1] : memref<1x8x1088xf32, #tpu.memory_space<vmem>>, vector<1x8x1088xf32>
    %1 = vector.shape_cast %0 : vector<1x8x1088xf32> to vector<8x1088xf32>
    %c0_2 = arith.constant 0 : index
    %c0_3 = arith.constant 0 : index
    %2 = vector.load %arg2[%c0_2, %c0_3] : memref<8x1xf32, #tpu.memory_space<vmem>>, vector<8x1xf32>
    %3 = vector.broadcast %2 : vector<8x1xf32> to vector<8x1088xf32>
    %4 = arith.mulf %1, %3 : vector<8x1088xf32>
    %c0_4 = arith.constant 0 : index
    %c0_5 = arith.constant 0 : index
    %5 = vector.load %arg3[%c0_4, %c0_5] : memref<8x1xf32, #tpu.memory_space<vmem>>, vector<8x1xf32>
    %6 = vector.broadcast %5 : vector<8x1xf32> to vector<8x1088xf32>
    %7 = arith.addf %4, %6 : vector<8x1088xf32>
    %cst = arith.constant 0.000000e+00 : f32
    %8 = vector.broadcast %cst : f32 to vector<8x1088xf32>
    %9 = arith.maximumf %7, %8 : vector<8x1088xf32>
    %10 = vector.shape_cast %9 : vector<8x1088xf32> to vector<8x32x34xf32>
    %11 = vector.extract_strided_slice %10 {offsets = [0, 0, 0], sizes = [8, 32, 32], strides = [1, 1, 1]} : vector<8x32x34xf32> to vector<8x32x32xf32>
    %c0_6 = arith.constant 0 : index
    %c0_7 = arith.constant 0 : index
    %c0_8 = arith.constant 0 : index
    %c0_9 = arith.constant 0 : index
    %12 = vector.load %arg4[%c0_6, %c0_7, %c0_8, %c0_9] : memref<1x8x32x32xf32, #tpu.memory_space<vmem>>, vector<1x8x32x32xf32>
    %13 = vector.shape_cast %12 : vector<1x8x32x32xf32> to vector<8x32x32xf32>
    %14 = vector.shape_cast %11 : vector<8x32x32xf32> to vector<1x8x32x32xf32>
    tpu.vector_store %arg4[%c0_6, %c0_7, %c0_8, %c0_9], %14 {strides = array<i32>} : memref<1x8x32x32xf32, #tpu.memory_space<vmem>>, vector<1x8x32x32xf32>,
    return
  }
  func.func @transform_0(%arg0: i32) -> (i32, i32, i32) {
    %c0_i32 = arith.constant 0 : i32
    %c0_i32_0 = arith.constant 0 : i32
    %c0_i32_1 = arith.constant 0 : i32
    return %arg0, %c0_i32, %c0_i32_0 : i32, i32, i32
  }
  func.func @transform_1(%arg0: i32) -> (i32, i32) {
    %c0_i32 = arith.constant 0 : i32
    %c0_i32_0 = arith.constant 0 : i32
    %c0_i32_1 = arith.constant 0 : i32
    return %c0_i32, %c0_i32_0 : i32, i32
  }
  func.func @transform_2(%arg0: i32) -> (i32, i32) {
    %c0_i32 = arith.constant 0 : i32
    %c0_i32_0 = arith.constant 0 : i32
    %c0_i32_1 = arith.constant 0 : i32
    return %c0_i32, %c0_i32_0 : i32, i32
  }
  func.func @transform_3(%arg0: i32) -> (i32, i32, i32, i32) {
    %c0_i32 = arith.constant 0 : i32
    %c0_i32_0 = arith.constant 0 : i32
    %c0_i32_1 = arith.constant 0 : i32
    %c0_i32_2 = arith.constant 0 : i32
    return %arg0, %c0_i32, %c0_i32_0, %c0_i32_1 : i32, i32, i32, i32
  }
}

module attributes {stable_mosaic.version = 11 : i64} {
  func.func @_upconv_y_stats_kernel(%arg0: i32, %arg1: memref<1x4x256xbf16, #tpu.memory_space<vmem>>, %arg2: memref<256x1190xbf16, #tpu.memory_space<vmem>>, %arg3: memref<1x8x36xbf16, #tpu.memory_space<vmem>>, %arg4: memref<1x8x1xf32, #tpu.memory_space<vmem>>, %arg5: memref<1x8x1088xf32, #tpu.memory_space<vmem>>, %arg6: memref<1x8x2xf32, #tpu.memory_space<vmem>>) attributes {dimension_semantics = [#tpu.dimension_semantics<parallel>], iteration_bounds = array<i64: 2>, scalar_prefetch = 0 : i64, scratch_operands = 0 : i64, tpu.core_type = #tpu.core_type<tc>, window_params = [{transform_indices = @transform_0, window_bounds = array<i64: 1, 4, 256>}, {pipeline_mode = #tpu.pipeline_mode<synchronous>, transform_indices = @transform_1, window_bounds = array<i64: 256, 1190>}, {transform_indices = @transform_2, window_bounds = array<i64: 1, 8, 36>}, {transform_indices = @transform_3, window_bounds = array<i64: 1, 8, 1>}, {transform_indices = @transform_4, window_bounds = array<i64: 1, 8, 1088>}, {transform_indices = @transform_5, window_bounds = array<i64: 1, 8, 2>}]} {
    %c0 = arith.constant 0 : index
    %c0_0 = arith.constant 0 : index
    %c0_1 = arith.constant 0 : index
    %0 = vector.load %arg1[%c0, %c0_0, %c0_1] : memref<1x4x256xbf16, #tpu.memory_space<vmem>>, vector<1x4x256xbf16>
    %1 = vector.shape_cast %0 : vector<1x4x256xbf16> to vector<4x256xbf16>
    %c0_2 = arith.constant 0 : index
    %c0_3 = arith.constant 0 : index
    %2 = vector.load %arg2[%c0_2, %c0_3] : memref<256x1190xbf16, #tpu.memory_space<vmem>>, vector<256x1190xbf16>
    %cst = arith.constant dense<0.000000e+00> : vector<4x1190xf32>
    %3 = tpu.matmul %1, %2, %cst {dimension_numbers = #tpu.dot_dimension_numbers<[1], [0], [0], [1], [0, 0, 1, 1], [], []>} : vector<4x256xbf16>, vector<256x1190xbf16>, vector<4x1190xf32> -> vector<4x1190xf32>
    %4 = arith.truncf %3 : vector<4x1190xf32> to vector<4x1190xbf16>
    %5 = vector.extract_strided_slice %4 {offsets = [0, 0], sizes = [4, 1088], strides = [1, 1]} : vector<4x1190xbf16> to vector<4x1088xbf16>
    %6 = vector.extract_strided_slice %4 {offsets = [0, 1], sizes = [4, 1088], strides = [1, 1]} : vector<4x1190xbf16> to vector<4x1088xbf16>
    %7 = vector.extract_strided_slice %4 {offsets = [0, 2], sizes = [4, 1088], strides = [1, 1]} : vector<4x1190xbf16> to vector<4x1088xbf16>
    %8 = vector.extract_strided_slice %4 {offsets = [0, 34], sizes = [4, 1088], strides = [1, 1]} : vector<4x1190xbf16> to vector<4x1088xbf16>
    %9 = vector.extract_strided_slice %4 {offsets = [0, 35], sizes = [4, 1088], strides = [1, 1]} : vector<4x1190xbf16> to vector<4x1088xbf16>
    %10 = vector.extract_strided_slice %4 {offsets = [0, 36], sizes = [4, 1088], strides = [1, 1]} : vector<4x1190xbf16> to vector<4x1088xbf16>
    %11 = vector.extract_strided_slice %4 {offsets = [0, 68], sizes = [4, 1088], strides = [1, 1]} : vector<4x1190xbf16> to vector<4x1088xbf16>
    %12 = vector.extract_strided_slice %4 {offsets = [0, 69], sizes = [4, 1088], strides = [1, 1]} : vector<4x1190xbf16> to vector<4x1088xbf16>
    %13 = vector.extract_strided_slice %4 {offsets = [0, 70], sizes = [4, 1088], strides = [1, 1]} : vector<4x1190xbf16> to vector<4x1088xbf16>
    %14 = tpu.concatenate %5, %6, %7, %8, %9, %10, %11, %12, %13 in 0 : vector<4x1088xbf16>, vector<4x1088xbf16>, vector<4x1088xbf16>, vector<4x1088xbf16>, vector<4x1088xbf16>, vector<4x1088xbf16>, vector<4x1088xbf16>, vector<4x1088xbf16>, vector<4x1088xbf16> -> vector<36x1088xbf16>
    %c0_4 = arith.constant 0 : index
    %c0_5 = arith.constant 0 : index
    %c0_6 = arith.constant 0 : index
    %15 = vector.load %arg3[%c0_4, %c0_5, %c0_6] : memref<1x8x36xbf16, #tpu.memory_space<vmem>>, vector<1x8x36xbf16>
    %16 = vector.shape_cast %15 : vector<1x8x36xbf16> to vector<8x36xbf16>
    %cst_7 = arith.constant dense<0.000000e+00> : vector<8x1088xf32>
    %17 = tpu.matmul %16, %14, %cst_7 {dimension_numbers = #tpu.dot_dimension_numbers<[1], [0], [0], [1], [0, 0, 1, 1], [], []>} : vector<8x36xbf16>, vector<36x1088xbf16>, vector<8x1088xf32> -> vector<8x1088xf32>
    %c0_8 = arith.constant 0 : index
    %c0_9 = arith.constant 0 : index
    %c0_10 = arith.constant 0 : index
    %18 = vector.load %arg4[%c0_8, %c0_9, %c0_10] : memref<1x8x1xf32, #tpu.memory_space<vmem>>, vector<1x8x1xf32>
    %19 = vector.shape_cast %18 : vector<1x8x1xf32> to vector<8x1xf32>
    %20 = vector.broadcast %19 : vector<8x1xf32> to vector<8x1088xf32>
    %21 = arith.addf %17, %20 : vector<8x1088xf32>
    %c0_11 = arith.constant 0 : index
    %c0_12 = arith.constant 0 : index
    %c0_13 = arith.constant 0 : index
    %22 = vector.load %arg5[%c0_11, %c0_12, %c0_13] : memref<1x8x1088xf32, #tpu.memory_space<vmem>>, vector<1x8x1088xf32>
    %23 = vector.shape_cast %22 : vector<1x8x1088xf32> to vector<8x1088xf32>
    %24 = vector.shape_cast %21 : vector<8x1088xf32> to vector<1x8x1088xf32>
    tpu.vector_store %arg5[%c0_11, %c0_12, %c0_13], %24 {strides = array<i32>} : memref<1x8x1088xf32, #tpu.memory_space<vmem>>, vector<1x8x1088xf32>,
    %25 = tpu.iota {dimensions = array<i32: 1>} : vector<1x1088xi32>
    %c34_i32 = arith.constant 34 : i32
    %c0_i32 = arith.constant 0 : i32
    %26 = arith.cmpi eq, %c34_i32, %c0_i32 : i32
    %c1_i32 = arith.constant 1 : i32
    %27 = arith.select %26, %c1_i32, %c34_i32 : i32
    %28 = vector.broadcast %27 : i32 to vector<1x1088xi32>
    %29 = arith.remsi %25, %28 : vector<1x1088xi32>
    %c0_i32_14 = arith.constant 0 : i32
    %30 = vector.broadcast %c0_i32_14 : i32 to vector<1x1088xi32>
    %31 = arith.cmpi ne, %29, %30 : vector<1x1088xi32>
    %c0_i32_15 = arith.constant 0 : i32
    %32 = vector.broadcast %c0_i32_15 : i32 to vector<1x1088xi32>
    %33 = arith.cmpi slt, %29, %32 : vector<1x1088xi32>
    %c0_i32_16 = arith.constant 0 : i32
    %34 = arith.cmpi slt, %27, %c0_i32_16 : i32
    %35 = vector.broadcast %34 : i1 to vector<1x1088xi1>
    %36 = vector.broadcast %35 : vector<1x1088xi1> to vector<1x1088xi1>
    %37 = arith.xori %33, %36 : vector<1x1088xi1>
    %38 = arith.andi %37, %31 : vector<1x1088xi1>
    %39 = vector.broadcast %27 : i32 to vector<1x1088xi32>
    %40 = arith.addi %29, %39 : vector<1x1088xi32>
    %41 = arith.select %38, %40, %29 : vector<1x1088xi1>, vector<1x1088xi32>
    %c32_i32 = arith.constant 32 : i32
    %42 = vector.broadcast %c32_i32 : i32 to vector<1x1088xi32>
    %43 = arith.cmpi slt, %41, %42 : vector<1x1088xi32>
    %44 = arith.extui %43 : vector<1x1088xi1> to vector<1x1088xi32>
    %45 = arith.sitofp %44 : vector<1x1088xi32> to vector<1x1088xf32>
    %46 = vector.broadcast %45 : vector<1x1088xf32> to vector<8x1088xf32>
    %47 = arith.mulf %21, %46 : vector<8x1088xf32>
    %cst_17 = arith.constant dense<0.000000e+00> : vector<8xf32>
    %48 = vector.multi_reduction <add>, %47, %cst_17 [1] : vector<8x1088xf32> to vector<8xf32>
    %49 = vector.shape_cast %48 : vector<8xf32> to vector<8x1xf32>
    %50 = arith.mulf %47, %21 : vector<8x1088xf32>
    %cst_18 = arith.constant dense<0.000000e+00> : vector<8xf32>
    %51 = vector.multi_reduction <add>, %50, %cst_18 [1] : vector<8x1088xf32> to vector<8xf32>
    %52 = vector.shape_cast %51 : vector<8xf32> to vector<8x1xf32>
    %53 = tpu.concatenate %49, %52 in 1 : vector<8x1xf32>, vector<8x1xf32> -> vector<8x2xf32>
    %c0_19 = arith.constant 0 : index
    %c0_20 = arith.constant 0 : index
    %c0_21 = arith.constant 0 : index
    %54 = vector.load %arg6[%c0_19, %c0_20, %c0_21] : memref<1x8x2xf32, #tpu.memory_space<vmem>>, vector<1x8x2xf32>
    %55 = vector.shape_cast %54 : vector<1x8x2xf32> to vector<8x2xf32>
    %56 = vector.shape_cast %53 : vector<8x2xf32> to vector<1x8x2xf32>
    tpu.vector_store %arg6[%c0_19, %c0_20, %c0_21], %56 {strides = array<i32>} : memref<1x8x2xf32, #tpu.memory_space<vmem>>, vector<1x8x2xf32>,
    return
  }
  func.func @transform_0(%arg0: i32) -> (i32, i32, i32) {
    %c0_i32 = arith.constant 0 : i32
    %c0_i32_0 = arith.constant 0 : i32
    %c0_i32_1 = arith.constant 0 : i32
    return %arg0, %c0_i32, %c0_i32_0 : i32, i32, i32
  }
  func.func @transform_1(%arg0: i32) -> (i32, i32) {
    %c0_i32 = arith.constant 0 : i32
    %c0_i32_0 = arith.constant 0 : i32
    %c0_i32_1 = arith.constant 0 : i32
    return %c0_i32, %c0_i32_0 : i32, i32
  }
  func.func @transform_2(%arg0: i32) -> (i32, i32, i32) {
    %c0_i32 = arith.constant 0 : i32
    %c0_i32_0 = arith.constant 0 : i32
    %c0_i32_1 = arith.constant 0 : i32
    return %arg0, %c0_i32, %c0_i32_0 : i32, i32, i32
  }
  func.func @transform_3(%arg0: i32) -> (i32, i32, i32) {
    %c0_i32 = arith.constant 0 : i32
    %c0_i32_0 = arith.constant 0 : i32
    %c0_i32_1 = arith.constant 0 : i32
    return %arg0, %c0_i32, %c0_i32_0 : i32, i32, i32
  }
  func.func @transform_4(%arg0: i32) -> (i32, i32, i32) {
    %c0_i32 = arith.constant 0 : i32
    %c0_i32_0 = arith.constant 0 : i32
    %c0_i32_1 = arith.constant 0 : i32
    return %arg0, %c0_i32, %c0_i32_0 : i32, i32, i32
  }
  func.func @transform_5(%arg0: i32) -> (i32, i32, i32) {
    %c0_i32 = arith.constant 0 : i32
    %c0_i32_0 = arith.constant 0 : i32
    %c0_i32_1 = arith.constant 0 : i32
    return %arg0, %c0_i32, %c0_i32_0 : i32, i32, i32
  }
}

</mosaic_0001>

<llo_original>
// kernel: up_conv_dcoa_forward.3
$region0: #{up_conv_dcoa_forward.3}
  #allocation0 [shape = 'u32[]', space=smem, size = 0x4, offset = 0x4, fixed_abs, tag = 'smem constant byte address 0x4 - core index']
  #allocation1 [shape = 'u32[72,128]{1,0:T(1,128)}', space=vmem, size = 0x9000, scoped, tag = 'internal scratch']
  %s0 = inlined_call_operand.vmem [shape: f32[2,8,1088], index: 0, kind: input, shape index: {}]
  %s1 = inlined_call_operand.vmem [shape: f32[8,1], index: 1, kind: input, shape index: {}]
  %s2 = inlined_call_operand.vmem [shape: f32[8,1], index: 2, kind: input, shape index: {}]
  %s3 = inlined_call_operand.hbm [shape: f32[2,8,32,32], index: 3, kind: output, shape index: {}]
  %s4 = sld [smem:[#allocation0]]
  $region45: #{up_conv_dcoa_forward.3} parent=0
    _
  %s6 = ssub.s32 1, %s4
  %s7 = scalar_select 0, %s6, %s4
  $region1: #{up_conv_dcoa_forward.3} parent=0
    #allocation2 [shape = 'u8[262144]{0}', space=vmem, size = 0x40000, scoped, tag = 'output window, operand 0']
    #allocation3 [shape = 's32[2]{0}', space=sflag, size = 0x8, scoped, tag = 'scoped memory for up_conv_dcoa_forward.3']
    %8 = vsyncpa [#allocation3], 0
    %s9 = scalar_lea.sflag [#allocation3], 1
    %10 = vsyncpa %s9, 0
    loop: start=0, step=1, limit=4
    $region2: #{up_conv_dcoa_forward.3} parent=1 // loop_pre_header
      _
    $region3: #{up_conv_dcoa_forward.3} parent=1 // loop_header
      %s12 = sphi 0, %s16
      %p13 = scmp.ge.s32.totalorder %s12, 4
      %s22 = sphi 0, %s24
      %s25 = sphi 0, %s22
      %s26 = sphi 0, %s25
      %s42 = sphi 0, %s26
      %s46 = sphi 0, %s46
      %s48 = sphi 0, %s46
      %s49 = sphi 0, %s48
      %s63 = sphi 0, %s49
      %s67 = sphi 0, %s67
      %s69 = sphi 0, %s67
      %s70 = sphi 0, %s69
      %s84 = sphi 0, %s70
      %s90 = sphi 0, %s92
      %s93 = sphi 0, %s90
      %s94 = sphi 0, %s93
      %s110 = sphi 0, %s94
    $region4: #{up_conv_dcoa_forward.3} parent=1 // loop_header_branch
      %15 = sbr.rel (%p13) target = $region8
    $region5: #{up_conv_dcoa_forward.3} parent=1 // loop_body
      %s17 = ssub.s32 %s12, 1
      %s18 = ssub.s32 %s12, 2
      %s19 = sadd.s32 %s12, 1
      %s20 = ssub.s32 %s12, %s19
      %p21 = scmp.eq.s32.totalorder %s20, 0
      %s23 = sadd.s32 %s22, 1
      %s24 = scalar_select %p21, %s22, %s23
      %p27 = pneg %p21
      %p28 = scmp.eq.s32.totalorder %s12, 1
      %p29 = por %p27, %p28
      %p30 = scmp.ne.s32.totalorder %s22, %s25
      %p31 = scmp.eq.s32.totalorder %s12, 0
      %p32 = por %p30, %p31
      %p33 = scmp.ne.s32.totalorder %s22, %s25
      %p34 = scmp.eq.s32.totalorder %s17, 1
      %p35 = por %p33, %p34
      %p36 = scmp.ne.s32.totalorder %s25, %s26
      %p37 = scmp.eq.s32.totalorder %s17, 0
      %p38 = por %p36, %p37
      %p39 = scmp.ne.s32.totalorder %s25, %s26
      %p40 = scmp.eq.s32.totalorder %s18, 1
      %p41 = por %p39, %p40
      %p43 = scmp.ne.s32.totalorder %s26, %s42
      %p44 = scmp.eq.s32.totalorder %s18, 0
      %p45 = por %p43, %p44
      %s47 = sadd.s32 %s46, 1
      %p50 = scmp.eq.s32.totalorder %s12, 1
      %p51 = scmp.ne.s32.totalorder %s46, %s48
      %p52 = scmp.eq.s32.totalorder %s12, 0
      %p53 = por %p51, %p52
      %p54 = scmp.ne.s32.totalorder %s46, %s48
      %p55 = scmp.eq.s32.totalorder %s17, 1
      %p56 = por %p54, %p55
      %p57 = scmp.ne.s32.totalorder %s48, %s49
      %p58 = scmp.eq.s32.totalorder %s17, 0
      %p59 = por %p57, %p58
      %p60 = scmp.ne.s32.totalorder %s48, %s49
      %p61 = scmp.eq.s32.totalorder %s18, 1
      %p62 = por %p60, %p61
      %p64 = scmp.ne.s32.totalorder %s49, %s63
      %p65 = scmp.eq.s32.totalorder %s18, 0
      %p66 = por %p64, %p65
      %s68 = sadd.s32 %s67, 1
      %p71 = scmp.eq.s32.totalorder %s12, 1
      %p72 = scmp.ne.s32.totalorder %s67, %s69
      %p73 = scmp.eq.s32.totalorder %s12, 0
      %p74 = por %p72, %p73
      %p75 = scmp.ne.s32.totalorder %s67, %s69
      %p76 = scmp.eq.s32.totalorder %s17, 1
      %p77 = por %p75, %p76
      %p78 = scmp.ne.s32.totalorder %s69, %s70
      %p79 = scmp.eq.s32.totalorder %s17, 0
      %p80 = por %p78, %p79
      %p81 = scmp.ne.s32.totalorder %s69, %s70
      %p82 = scmp.eq.s32.totalorder %s18, 1
      %p83 = por %p81, %p82
      %p85 = scmp.ne.s32.totalorder %s70, %s84
      %p86 = scmp.eq.s32.totalorder %s18, 0
      %p87 = por %p85, %p86
      %s88 = ssub.s32 %s12, %s19
      %p89 = scmp.eq.s32.totalorder %s88, 0
      %s91 = sadd.s32 %s90, 1
      %s92 = scalar_select %p89, %s90, %s91
      %p95 = pneg %p89
      %p96 = scmp.eq.s32.totalorder %s12, 1
      %p97 = por %p95, %p96
      %p98 = scmp.ne.s32.totalorder %s90, %s93
      %p99 = scmp.eq.s32.totalorder %s12, 0
      %p100 = por %p98, %p99
      %p101 = scmp.ne.s32.totalorder %s90, %s93
      %p102 = scmp.eq.s32.totalorder %s17, 1
      %p103 = por %p101, %p102
      %p104 = scmp.ne.s32.totalorder %s93, %s94
      %p105 = scmp.eq.s32.totalorder %s17, 0
      %p106 = por %p104, %p105
      %p107 = scmp.ne.s32.totalorder %s93, %s94
      %p108 = scmp.eq.s32.totalorder %s18, 1
      %p109 = por %p107, %p108
      %p111 = scmp.ne.s32.totalorder %s94, %s110
      %p112 = scmp.eq.s32.totalorder %s18, 0
      %p113 = por %p111, %p112
      %p114 = scmp.le.s32.totalorder 1, %s12
      %p115 = scmp.lt.s32.totalorder %s12, 3
      %p116 = pnand %p114, %p115
      %p117 = pneg %p116
      // Predicated region
      $region9: #{up_conv_dcoa_forward.3} parent=5 // pred_check
        _
      $region10: #{up_conv_dcoa_forward.3} parent=5 // pred_check_branch
        %119 = sbr.rel (%p116) target = $region12
      $region11: #{up_conv_dcoa_forward.3} parent=5 // pred_region
        %s120 = ssub.s32 %s12, 1
        // Predicated region
        $region13: #{up_conv_dcoa_forward.3} parent=11 // pred_check
          %p121 = pneg %p59
        $region14: #{up_conv_dcoa_forward.3} parent=11 // pred_check_branch
          %123 = sbr.rel (%p121) target = $region16
        $region15: #{up_conv_dcoa_forward.3} parent=11 // pred_region
          _
        $region16: #{up_conv_dcoa_forward.3} parent=11 // pred_fallthru
          _
        // Predicated region
        $region17: #{up_conv_dcoa_forward.3} parent=11 // pred_check
          %p124 = pneg %p80
        $region18: #{up_conv_dcoa_forward.3} parent=11 // pred_check_branch
          %126 = sbr.rel (%p124) target = $region20
        $region19: #{up_conv_dcoa_forward.3} parent=11 // pred_region
          _
        $region20: #{up_conv_dcoa_forward.3} parent=11 // pred_fallthru
          _
      $region12: #{up_conv_dcoa_forward.3} parent=5 // pred_fallthru
        _
      %p127 = scmp.lt.s32.totalorder %s12, 2
      // Predicated region
      $region21: #{up_conv_dcoa_forward.3} parent=5 // pred_check
        %p128 = pneg %p127
      $region22: #{up_conv_dcoa_forward.3} parent=5 // pred_check_branch
        %130 = sbr.rel (%p128) target = $region24
      $region23: #{up_conv_dcoa_forward.3} parent=5 // pred_region
        // Predicated region
        $region25: #{up_conv_dcoa_forward.3} parent=23 // pred_check
          %p131 = pneg %p32
        $region26: #{up_conv_dcoa_forward.3} parent=23 // pred_check_branch
          %133 = sbr.rel (%p131) target = $region28
        $region27: #{up_conv_dcoa_forward.3} parent=23 // pred_region
          %p134 = scmp.lt.s32.totalorder %s12, 1
          %s135 = scalar_select %p134, %s12, 1
          %s136 = smul.addr %s135, 9
          %s137 = smul.addr %s136, 8
          %s138 = scalar_lea.vmem %s0, %s137
        $region28: #{up_conv_dcoa_forward.3} parent=23 // pred_fallthru
          _
      $region24: #{up_conv_dcoa_forward.3} parent=5 // pred_fallthru
        _
      %p139 = scmp.le.s32.totalorder 1, %s12
      %p140 = scmp.lt.s32.totalorder %s12, 3
      %p141 = pnand %p139, %p140
      %p142 = pneg %p141
      // Predicated region
      $region29: #{up_conv_dcoa_forward.3} parent=5 // pred_check
        _
      $region30: #{up_conv_dcoa_forward.3} parent=5 // pred_check_branch
        %144 = sbr.rel (%p141) target = $region32
      $region31: #{up_conv_dcoa_forward.3} parent=5 // pred_region
        %s145 = ssub.s32 %s12, 1
        %p146 = scmp.lt.s32.totalorder %s17, 1
        %s147 = scalar_select %p146, %s17, 1
        %s148 = smul.addr %s147, 9
        %s149 = smul.addr %s148, 8
        %s150 = scalar_lea.vmem %s0, %s149
        %p151 = pneg %p38
        %p152 = pneg %p35
        %p153 = pneg %p59
        %p154 = pneg %p56
        %p155 = pneg %p80
        %p156 = pneg %p77
        %p157 = pneg %p106
        %p158 = pneg %p103
        %s159 = sand.u32 %s93, 1
        %s160 = scalar_lea.sflag [#allocation3], %s159
        %s161 = sand.u32 %s93, 1
        %s162 = smul.addr %s161, 256
        %s163 = scalar_lea.vmem [#allocation2], %s162
        %p164 = scmp.lt.s32.totalorder %s17, 1
        %s165 = scalar_select %p164, %s17, 1
        %s166 = smul.addr %s165, 9
        %s167 = smul.addr %s166, 8
        %s168 = scalar_lea.vmem %s0, %s167
        %v169 = vld [vmem:[%s168] sm:$0xff]
        %v170 = vld [vmem:[%s168 + $0x8] sm:$0xff]
        %v171 = vld [vmem:[%s168 + $0x10] sm:$0xff]
        %v172 = vld [vmem:[%s168 + $0x18] sm:$0xff]
        %v173 = vld [vmem:[%s168 + $0x20] sm:$0xff]
        %v174 = vld [vmem:[%s168 + $0x28] sm:$0xff]
        %v175 = vld [vmem:[%s168 + $0x30] sm:$0xff]
        %v176 = vld [vmem:[%s168 + $0x38] sm:$0xff]
        %v177 = vld [vmem:[%s168 + $0x40] sm:$0xff]
        %v178 = vld [vmem:[%s1] sm:$0xff]
        %180 = vset.pattern.permute.xlu0 0
        %181 = vperm.xlu0 %180, %v178
        %v182 = vpop.permute.xlu0 %181
        %v184 = vmul.f32 %v169, %v182
        %v185 = vmul.f32 %v170, %v182
        %v186 = vmul.f32 %v171, %v182
        %v187 = vmul.f32 %v172, %v182
        %v188 = vmul.f32 %v173, %v182
        %v189 = vmul.f32 %v174, %v182
        %v190 = vmul.f32 %v175, %v182
        %v191 = vmul.f32 %v176, %v182
        %v192 = vmul.f32 %v177, %v182
        %v193 = vld [vmem:[%s2] sm:$0xff]
        %195 = vset.pattern.permute.xlu0 0
        %196 = vperm.xlu0 %195, %v193
        %v197 = vpop.permute.xlu0 %196
        %v199 = vadd.f32 %v184, %v197
        %v200 = vadd.f32 %v185, %v197
        %v201 = vadd.f32 %v186, %v197
        %v202 = vadd.f32 %v187, %v197
        %v203 = vadd.f32 %v188, %v197
        %v204 = vadd.f32 %v189, %v197
        %v205 = vadd.f32 %v190, %v197
        %v206 = vadd.f32 %v191, %v197
        %v207 = vadd.f32 %v192, %v197
        %v208 = vmax.f32 %v199, 0.0
        %v209 = vmax.f32 %v200, 0.0
        %v210 = vmax.f32 %v201, 0.0
        %v211 = vmax.f32 %v202, 0.0
        %v212 = vmax.f32 %v203, 0.0
        %v213 = vmax.f32 %v204, 0.0
        %v214 = vmax.f32 %v205, 0.0
        %v215 = vmax.f32 %v206, 0.0
        %v216 = vmax.f32 %v207, 0.0
        %218 = vrot.lane.b32.xlu0 %v208, 94
        %v219 = vpop.permute.xlu0 %218
        %221 = vrot.lane.b32.xlu0 %v208, 60
        %v222 = vpop.permute.xlu0 %221
        %225 = vrot.lane.b32.xlu0 %v208, 26
        %v226 = vpop.permute.xlu0 %225
        %227 = vrot.lane.b32.xlu0 %v209, 26
        %v228 = vpop.permute.xlu0 %227
        %vm229 = vcmask 211968
        %v230 = vsel %vm229, %v226, %v228
        %232 = vrot.lane.b32.xlu0 %v209, 120
        %v233 = vpop.permute.xlu0 %232
        %235 = vrot.lane.b32.xlu0 %v209, 86
        %v236 = vpop.permute.xlu0 %235
        %238 = vrot.lane.b32.xlu0 %v209, 52
        %v239 = vpop.permute.xlu0 %238
        %242 = vrot.lane.b32.xlu0 %v209, 18
        %v243 = vpop.permute.xlu0 %242
        %244 = vrot.lane.b32.xlu0 %v210, 18
        %v245 = vpop.permute.xlu0 %244
        %vm246 = vcmask 146432
        %v247 = vsel %vm246, %v243, %v245
        %249 = vrot.lane.b32.xlu0 %v210, 112
        %v250 = vpop.permute.xlu0 %249
        %252 = vrot.lane.b32.xlu0 %v210, 78
        %v253 = vpop.permute.xlu0 %252
        %255 = vrot.lane.b32.xlu0 %v210, 44
        %v256 = vpop.permute.xlu0 %255
        %259 = vrot.lane.b32.xlu0 %v210, 10
        %v260 = vpop.permute.xlu0 %259
        %261 = vrot.lane.b32.xlu0 %v211, 10
        %v262 = vpop.permute.xlu0 %261
        %vm263 = vcmask 80896
        %v264 = vsel %vm263, %v260, %v262
        %266 = vrot.lane.b32.xlu0 %v211, 104
        %v267 = vpop.permute.xlu0 %266
        %269 = vrot.lane.b32.xlu0 %v211, 70
        %v270 = vpop.permute.xlu0 %269
        %272 = vrot.lane.b32.xlu0 %v211, 36
        %v273 = vpop.permute.xlu0 %272
        %276 = vrot.lane.b32.xlu0 %v211, 2
        %v277 = vpop.permute.xlu0 %276
        %278 = vrot.lane.b32.xlu0 %v212, 2
        %v279 = vpop.permute.xlu0 %278
        %vm280 = vcmask 15360
        %v281 = vsel %vm280, %v277, %v279
        %283 = vrot.lane.b32.xlu0 %v212, 96
        %v284 = vpop.permute.xlu0 %283
        %286 = vrot.lane.b32.xlu0 %v212, 62
        %v287 = vpop.permute.xlu0 %286
        %290 = vrot.lane.b32.xlu0 %v212, 28
        %v291 = vpop.permute.xlu0 %290
        %292 = vrot.lane.b32.xlu0 %v213, 28
        %v293 = vpop.permute.xlu0 %292
        %vm294 = vcmask 228352
        %v295 = vsel %vm294, %v291, %v293
        %297 = vrot.lane.b32.xlu0 %v213, 122
        %v298 = vpop.permute.xlu0 %297
        %300 = vrot.lane.b32.xlu0 %v213, 88
        %v301 = vpop.permute.xlu0 %300
        %303 = vrot.lane.b32.xlu0 %v213, 54
        %v304 = vpop.permute.xlu0 %303
        %307 = vrot.lane.b32.xlu0 %v213, 20
        %v308 = vpop.permute.xlu0 %307
        %309 = vrot.lane.b32.xlu0 %v214, 20
        %v310 = vpop.permute.xlu0 %309
        %vm311 = vcmask 162816
        %v312 = vsel %vm311, %v308, %v310
        %314 = vrot.lane.b32.xlu0 %v214, 114
        %v315 = vpop.permute.xlu0 %314
        %317 = vrot.lane.b32.xlu0 %v214, 80
        %v318 = vpop.permute.xlu0 %317
        %320 = vrot.lane.b32.xlu0 %v214, 46
        %v321 = vpop.permute.xlu0 %320
        %324 = vrot.lane.b32.xlu0 %v214, 12
        %v325 = vpop.permute.xlu0 %324
        %326 = vrot.lane.b32.xlu0 %v215, 12
        %v327 = vpop.permute.xlu0 %326
        %vm328 = vcmask 97280
        %v329 = vsel %vm328, %v325, %v327
        %331 = vrot.lane.b32.xlu0 %v215, 106
        %v332 = vpop.permute.xlu0 %331
        %334 = vrot.lane.b32.xlu0 %v215, 72
        %v335 = vpop.permute.xlu0 %334
        %337 = vrot.lane.b32.xlu0 %v215, 38
        %v338 = vpop.permute.xlu0 %337
        %341 = vrot.lane.b32.xlu0 %v215, 4
        %v342 = vpop.permute.xlu0 %341
        %343 = vrot.lane.b32.xlu0 %v216, 4
        %v344 = vpop.permute.xlu0 %343
        %vm345 = vcmask 31744
        %v346 = vsel %vm345, %v342, %v344
        %348 = vrot.lane.b32.xlu0 %v216, 98
        %v349 = vpop.permute.xlu0 %348
        %v351 = vrot.slane %v222, 4
        %vm352 = vcmask 1047556
        %v353 = vsel %vm352, %v351, %v208
        %v354 = vrot.slane %v208, 4
        %v355 = vsel %vm352, %v222, %v354
        %v357 = vunpack.c.l.s4 1983009808
        %v358 = vunpack.c.0.s8 %v357
        %v359 = vperm.slane %v353, %v358
        %v361 = vunpack.c.l.s4 1983009808
        %v362 = vunpack.c.0.s8 %v361
        %v363 = vperm.slane %v355, %v362
        %v364 = vrot.slane %v230, 4
        %v365 = vsel %vm352, %v364, %v219
        %v366 = vrot.slane %v219, 4
        %v367 = vsel %vm352, %v230, %v366
        %v369 = vunpack.c.l.s4 1983009808
        %v370 = vunpack.c.0.s8 %v369
        %v371 = vperm.slane %v365, %v370
        %v373 = vunpack.c.l.s4 1983009808
        %v374 = vunpack.c.0.s8 %v373
        %v375 = vperm.slane %v367, %v374
        %v376 = vrot.slane %v239, 4
        %v377 = vsel %vm352, %v376, %v233
        %v378 = vrot.slane %v233, 4
        %v379 = vsel %vm352, %v239, %v378
        %v381 = vunpack.c.l.s4 1983009808
        %v382 = vunpack.c.0.s8 %v381
        %v383 = vperm.slane %v377, %v382
        %v385 = vunpack.c.l.s4 1983009808
        %v386 = vunpack.c.0.s8 %v385
        %v387 = vperm.slane %v379, %v386
        %v388 = vrot.slane %v247, 4
        %v389 = vsel %vm352, %v388, %v236
        %v390 = vrot.slane %v236, 4
        %v391 = vsel %vm352, %v247, %v390
        %v393 = vunpack.c.l.s4 1983009808
        %v394 = vunpack.c.0.s8 %v393
        %v395 = vperm.slane %v389, %v394
        %v397 = vunpack.c.l.s4 1983009808
        %v398 = vunpack.c.0.s8 %v397
        %v399 = vperm.slane %v391, %v398
        %v400 = vrot.slane %v371, 4
        %v401 = vsel %vm352, %v400, %v359
        %v402 = vrot.slane %v359, 4
        %v403 = vsel %vm352, %v371, %v402
        %v405 = vunpack.c.l.s4 1934713408
        %v406 = vunpack.c.0.s8 %v405
        %v407 = vperm.slane %v401, %v406
        %v409 = vunpack.c.l.s4 1934713408
        %v410 = vunpack.c.0.s8 %v409
        %v411 = vperm.slane %v403, %v410
        %v412 = vrot.slane %v375, 4
        %v413 = vsel %vm352, %v412, %v363
        %v414 = vrot.slane %v363, 4
        %v415 = vsel %vm352, %v375, %v414
        %v417 = vunpack.c.l.s4 1934713408
        %v418 = vunpack.c.0.s8 %v417
        %v419 = vperm.slane %v413, %v418
        %v421 = vunpack.c.l.s4 1934713408
        %v422 = vunpack.c.0.s8 %v421
        %v423 = vperm.slane %v415, %v422
        %v424 = vrot.slane %v395, 4
        %v425 = vsel %vm352, %v424, %v383
        %v426 = vrot.slane %v383, 4
        %v427 = vsel %vm352, %v395, %v426
        %v429 = vunpack.c.l.s4 1934713408
        %v430 = vunpack.c.0.s8 %v429
        %v431 = vperm.slane %v425, %v430
        %v433 = vunpack.c.l.s4 1934713408
        %v434 = vunpack.c.0.s8 %v433
        %v435 = vperm.slane %v427, %v434
        %v436 = vrot.slane %v399, 4
        %v437 = vsel %vm352, %v436, %v387
        %v438 = vrot.slane %v387, 4
        %v439 = vsel %vm352, %v399, %v438
        %v441 = vunpack.c.l.s4 1934713408
        %v442 = vunpack.c.0.s8 %v441
        %v443 = vperm.slane %v437, %v442
        %v445 = vunpack.c.l.s4 1934713408
        %v446 = vunpack.c.0.s8 %v445
        %v447 = vperm.slane %v439, %v446
        %v448 = vrot.slane %v431, 4
        %v449 = vsel %vm352, %v448, %v407
        %v450 = vrot.slane %v407, 4
        %v451 = vsel %vm352, %v431, %v450
        %v452 = vrot.slane %v435, 4
        %v453 = vsel %vm352, %v452, %v411
        %v454 = vrot.slane %v411, 4
        %v455 = vsel %vm352, %v435, %v454
        %v456 = vrot.slane %v443, 4
        %v457 = vsel %vm352, %v456, %v419
        %v458 = vrot.slane %v419, 4
        %v459 = vsel %vm352, %v443, %v458
        %v460 = vrot.slane %v447, 4
        %v461 = vsel %vm352, %v460, %v423
        %v462 = vrot.slane %v423, 4
        %v463 = vsel %vm352, %v447, %v462
        %v464 = vrot.slane %v256, 4
        %v465 = vsel %vm352, %v464, %v250
        %v466 = vrot.slane %v250, 4
        %v467 = vsel %vm352, %v256, %v466
        %v469 = vunpack.c.l.s4 1983009808
        %v470 = vunpack.c.0.s8 %v469
        %v471 = vperm.slane %v465, %v470
        %v473 = vunpack.c.l.s4 1983009808
        %v474 = vunpack.c.0.s8 %v473
        %v475 = vperm.slane %v467, %v474
        %v476 = vrot.slane %v264, 4
        %v477 = vsel %vm352, %v476, %v253
        %v478 = vrot.slane %v253, 4
        %v479 = vsel %vm352, %v264, %v478
        %v481 = vunpack.c.l.s4 1983009808
        %v482 = vunpack.c.0.s8 %v481
        %v483 = vperm.slane %v477, %v482
        %v485 = vunpack.c.l.s4 1983009808
        %v486 = vunpack.c.0.s8 %v485
        %v487 = vperm.slane %v479, %v486
        %v488 = vrot.slane %v273, 4
        %v489 = vsel %vm352, %v488, %v267
        %v490 = vrot.slane %v267, 4
        %v491 = vsel %vm352, %v273, %v490
        %v493 = vunpack.c.l.s4 1983009808
        %v494 = vunpack.c.0.s8 %v493
        %v495 = vperm.slane %v489, %v494
        %v497 = vunpack.c.l.s4 1983009808
        %v498 = vunpack.c.0.s8 %v497
        %v499 = vperm.slane %v491, %v498
        %v500 = vrot.slane %v281, 4
        %v501 = vsel %vm352, %v500, %v270
        %v502 = vrot.slane %v270, 4
        %v503 = vsel %vm352, %v281, %v502
        %v505 = vunpack.c.l.s4 1983009808
        %v506 = vunpack.c.0.s8 %v505
        %v507 = vperm.slane %v501, %v506
        %v509 = vunpack.c.l.s4 1983009808
        %v510 = vunpack.c.0.s8 %v509
        %v511 = vperm.slane %v503, %v510
        %v512 = vrot.slane %v483, 4
        %v513 = vsel %vm352, %v512, %v471
        %v514 = vrot.slane %v471, 4
        %v515 = vsel %vm352, %v483, %v514
        %v517 = vunpack.c.l.s4 1934713408
        %v518 = vunpack.c.0.s8 %v517
        %v519 = vperm.slane %v513, %v518
        %v521 = vunpack.c.l.s4 1934713408
        %v522 = vunpack.c.0.s8 %v521
        %v523 = vperm.slane %v515, %v522
        %v524 = vrot.slane %v487, 4
        %v525 = vsel %vm352, %v524, %v475
        %v526 = vrot.slane %v475, 4
        %v527 = vsel %vm352, %v487, %v526
        %v529 = vunpack.c.l.s4 1934713408
        %v530 = vunpack.c.0.s8 %v529
        %v531 = vperm.slane %v525, %v530
        %v533 = vunpack.c.l.s4 1934713408
        %v534 = vunpack.c.0.s8 %v533
        %v535 = vperm.slane %v527, %v534
        %v536 = vrot.slane %v507, 4
        %v537 = vsel %vm352, %v536, %v495
        %v538 = vrot.slane %v495, 4
        %v539 = vsel %vm352, %v507, %v538
        %v541 = vunpack.c.l.s4 1934713408
        %v542 = vunpack.c.0.s8 %v541
        %v543 = vperm.slane %v537, %v542
        %v545 = vunpack.c.l.s4 1934713408
        %v546 = vunpack.c.0.s8 %v545
        %v547 = vperm.slane %v539, %v546
        %v548 = vrot.slane %v511, 4
        %v549 = vsel %vm352, %v548, %v499
        %v550 = vrot.slane %v499, 4
        %v551 = vsel %vm352, %v511, %v550
        %v553 = vunpack.c.l.s4 1934713408
        %v554 = vunpack.c.0.s8 %v553
        %v555 = vperm.slane %v549, %v554
        %v557 = vunpack.c.l.s4 1934713408
        %v558 = vunpack.c.0.s8 %v557
        %v559 = vperm.slane %v551, %v558
        %v560 = vrot.slane %v543, 4
        %v561 = vsel %vm352, %v560, %v519
        %v562 = vrot.slane %v519, 4
        %v563 = vsel %vm352, %v543, %v562
        %v564 = vrot.slane %v547, 4
        %v565 = vsel %vm352, %v564, %v523
        %v566 = vrot.slane %v523, 4
        %v567 = vsel %vm352, %v547, %v566
        %v568 = vrot.slane %v555, 4
        %v569 = vsel %vm352, %v568, %v531
        %v570 = vrot.slane %v531, 4
        %v571 = vsel %vm352, %v555, %v570
        %v572 = vrot.slane %v559, 4
        %v573 = vsel %vm352, %v572, %v535
        %v574 = vrot.slane %v535, 4
        %v575 = vsel %vm352, %v559, %v574
        %v576 = vrot.slane %v295, 4
        %v577 = vsel %vm352, %v576, %v284
        %v578 = vrot.slane %v284, 4
        %v579 = vsel %vm352, %v295, %v578
        %v581 = vunpack.c.l.s4 1983009808
        %v582 = vunpack.c.0.s8 %v581
        %v583 = vperm.slane %v577, %v582
        %v585 = vunpack.c.l.s4 1983009808
        %v586 = vunpack.c.0.s8 %v585
        %v587 = vperm.slane %v579, %v586
        %v588 = vrot.slane %v298, 4
        %v589 = vsel %vm352, %v588, %v287
        %v590 = vrot.slane %v287, 4
        %v591 = vsel %vm352, %v298, %v590
        %v593 = vunpack.c.l.s4 1983009808
        %v594 = vunpack.c.0.s8 %v593
        %v595 = vperm.slane %v589, %v594
        %v597 = vunpack.c.l.s4 1983009808
        %v598 = vunpack.c.0.s8 %v597
        %v599 = vperm.slane %v591, %v598
        %v600 = vrot.slane %v312, 4
        %v601 = vsel %vm352, %v600, %v301
        %v602 = vrot.slane %v301, 4
        %v603 = vsel %vm352, %v312, %v602
        %v605 = vunpack.c.l.s4 1983009808
        %v606 = vunpack.c.0.s8 %v605
        %v607 = vperm.slane %v601, %v606
        %v609 = vunpack.c.l.s4 1983009808
        %v610 = vunpack.c.0.s8 %v609
        %v611 = vperm.slane %v603, %v610
        %v612 = vrot.slane %v315, 4
        %v613 = vsel %vm352, %v612, %v304
        %v614 = vrot.slane %v304, 4
        %v615 = vsel %vm352, %v315, %v614
        %v617 = vunpack.c.l.s4 1983009808
        %v618 = vunpack.c.0.s8 %v617
        %v619 = vperm.slane %v613, %v618
        %v621 = vunpack.c.l.s4 1983009808
        %v622 = vunpack.c.0.s8 %v621
        %v623 = vperm.slane %v615, %v622
        %v624 = vrot.slane %v595, 4
        %v625 = vsel %vm352, %v624, %v583
        %v626 = vrot.slane %v583, 4
        %v627 = vsel %vm352, %v595, %v626
        %v629 = vunpack.c.l.s4 1934713408
        %v630 = vunpack.c.0.s8 %v629
        %v631 = vperm.slane %v625, %v630
        %v633 = vunpack.c.l.s4 1934713408
        %v634 = vunpack.c.0.s8 %v633
        %v635 = vperm.slane %v627, %v634
        %v636 = vrot.slane %v599, 4
        %v637 = vsel %vm352, %v636, %v587
        %v638 = vrot.slane %v587, 4
        %v639 = vsel %vm352, %v599, %v638
        %v641 = vunpack.c.l.s4 1934713408
        %v642 = vunpack.c.0.s8 %v641
        %v643 = vperm.slane %v637, %v642
        %v645 = vunpack.c.l.s4 1934713408
        %v646 = vunpack.c.0.s8 %v645
        %v647 = vperm.slane %v639, %v646
        %v648 = vrot.slane %v619, 4
        %v649 = vsel %vm352, %v648, %v607
        %v650 = vrot.slane %v607, 4
        %v651 = vsel %vm352, %v619, %v650
        %v653 = vunpack.c.l.s4 1934713408
        %v654 = vunpack.c.0.s8 %v653
        %v655 = vperm.slane %v649, %v654
        %v657 = vunpack.c.l.s4 1934713408
        %v658 = vunpack.c.0.s8 %v657
        %v659 = vperm.slane %v651, %v658
        %v660 = vrot.slane %v623, 4
        %v661 = vsel %vm352, %v660, %v611
        %v662 = vrot.slane %v611, 4
        %v663 = vsel %vm352, %v623, %v662
        %v665 = vunpack.c.l.s4 1934713408
        %v666 = vunpack.c.0.s8 %v665
        %v667 = vperm.slane %v661, %v666
        %v669 = vunpack.c.l.s4 1934713408
        %v670 = vunpack.c.0.s8 %v669
        %v671 = vperm.slane %v663, %v670
        %v672 = vrot.slane %v655, 4
        %v673 = vsel %vm352, %v672, %v631
        %v674 = vrot.slane %v631, 4
        %v675 = vsel %vm352, %v655, %v674
        %v676 = vrot.slane %v659, 4
        %v677 = vsel %vm352, %v676, %v635
        %v678 = vrot.slane %v635, 4
        %v679 = vsel %vm352, %v659, %v678
        %v680 = vrot.slane %v667, 4
        %v681 = vsel %vm352, %v680, %v643
        %v682 = vrot.slane %v643, 4
        %v683 = vsel %vm352, %v667, %v682
        %v684 = vrot.slane %v671, 4
        %v685 = vsel %vm352, %v684, %v647
        %v686 = vrot.slane %v647, 4
        %v687 = vsel %vm352, %v671, %v686
        %v688 = vrot.slane %v329, 4
        %v689 = vsel %vm352, %v688, %v318
        %v690 = vrot.slane %v318, 4
        %v691 = vsel %vm352, %v329, %v690
        %v693 = vunpack.c.l.s4 1983009808
        %v694 = vunpack.c.0.s8 %v693
        %v695 = vperm.slane %v689, %v694
        %v697 = vunpack.c.l.s4 1983009808
        %v698 = vunpack.c.0.s8 %v697
        %v699 = vperm.slane %v691, %v698
        %v700 = vrot.slane %v332, 4
        %v701 = vsel %vm352, %v700, %v321
        %v702 = vrot.slane %v321, 4
        %v703 = vsel %vm352, %v332, %v702
        %v705 = vunpack.c.l.s4 1983009808
        %v706 = vunpack.c.0.s8 %v705
        %v707 = vperm.slane %v701, %v706
        %v709 = vunpack.c.l.s4 1983009808
        %v710 = vunpack.c.0.s8 %v709
        %v711 = vperm.slane %v703, %v710
        %v712 = vrot.slane %v346, 4
        %v713 = vsel %vm352, %v712, %v335
        %v714 = vrot.slane %v335, 4
        %v715 = vsel %vm352, %v346, %v714
        %v717 = vunpack.c.l.s4 1983009808
        %v718 = vunpack.c.0.s8 %v717
        %v719 = vperm.slane %v713, %v718
        %v721 = vunpack.c.l.s4 1983009808
        %v722 = vunpack.c.0.s8 %v721
        %v723 = vperm.slane %v715, %v722
        %v724 = vrot.slane %v349, 4
        %v725 = vsel %vm352, %v724, %v338
        %v726 = vrot.slane %v338, 4
        %v727 = vsel %vm352, %v349, %v726
        %v729 = vunpack.c.l.s4 1983009808
        %v730 = vunpack.c.0.s8 %v729
        %v731 = vperm.slane %v725, %v730
        %v733 = vunpack.c.l.s4 1983009808
        %v734 = vunpack.c.0.s8 %v733
        %v735 = vperm.slane %v727, %v734
        %v736 = vrot.slane %v707, 4
        %v737 = vsel %vm352, %v736, %v695
        %v738 = vrot.slane %v695, 4
        %v739 = vsel %vm352, %v707, %v738
        %v741 = vunpack.c.l.s4 1934713408
        %v742 = vunpack.c.0.s8 %v741
        %v743 = vperm.slane %v737, %v742
        %v745 = vunpack.c.l.s4 1934713408
        %v746 = vunpack.c.0.s8 %v745
        %v747 = vperm.slane %v739, %v746
        %v748 = vrot.slane %v711, 4
        %v749 = vsel %vm352, %v748, %v699
        %v750 = vrot.slane %v699, 4
        %v751 = vsel %vm352, %v711, %v750
        %v753 = vunpack.c.l.s4 1934713408
        %v754 = vunpack.c.0.s8 %v753
        %v755 = vperm.slane %v749, %v754
        %v757 = vunpack.c.l.s4 1934713408
        %v758 = vunpack.c.0.s8 %v757
        %v759 = vperm.slane %v751, %v758
        %v760 = vrot.slane %v731, 4
        %v761 = vsel %vm352, %v760, %v719
        %v762 = vrot.slane %v719, 4
        %v763 = vsel %vm352, %v731, %v762
        %v765 = vunpack.c.l.s4 1934713408
        %v766 = vunpack.c.0.s8 %v765
        %v767 = vperm.slane %v761, %v766
        %v769 = vunpack.c.l.s4 1934713408
        %v770 = vunpack.c.0.s8 %v769
        %v771 = vperm.slane %v763, %v770
        %v772 = vrot.slane %v735, 4
        %v773 = vsel %vm352, %v772, %v723
        %v774 = vrot.slane %v723, 4
        %v775 = vsel %vm352, %v735, %v774
        %v777 = vunpack.c.l.s4 1934713408
        %v778 = vunpack.c.0.s8 %v777
        %v779 = vperm.slane %v773, %v778
        %v781 = vunpack.c.l.s4 1934713408
        %v782 = vunpack.c.0.s8 %v781
        %v783 = vperm.slane %v775, %v782
        %v784 = vrot.slane %v767, 4
        %v785 = vsel %vm352, %v784, %v743
        %v786 = vrot.slane %v743, 4
        %v787 = vsel %vm352, %v767, %v786
        %v788 = vrot.slane %v771, 4
        %v789 = vsel %vm352, %v788, %v747
        %v790 = vrot.slane %v747, 4
        %v791 = vsel %vm352, %v771, %v790
        %v792 = vrot.slane %v779, 4
        %v793 = vsel %vm352, %v792, %v755
        %v794 = vrot.slane %v755, 4
        %v795 = vsel %vm352, %v779, %v794
        %v796 = vrot.slane %v783, 4
        %v797 = vsel %vm352, %v796, %v759
        %v798 = vrot.slane %v759, 4
        %v799 = vsel %vm352, %v783, %v798
        %vm800 = vcmask 261120
        %801 = vst.msk [vmem:[%s163] sm:$0xff] %vm800, %v449
        %802 = vst.msk [vmem:[%s163 + $0x8] sm:$0xff] %vm800, %v561
        %803 = vst.msk [vmem:[%s163 + $0x10] sm:$0xff] %vm800, %v673
        %804 = vst.msk [vmem:[%s163 + $0x18] sm:$0xff] %vm800, %v785
        %805 = vst.msk [vmem:[%s163 + $0x20] sm:$0xff] %vm800, %v451
        %806 = vst.msk [vmem:[%s163 + $0x28] sm:$0xff] %vm800, %v563
        %807 = vst.msk [vmem:[%s163 + $0x30] sm:$0xff] %vm800, %v675
        %808 = vst.msk [vmem:[%s163 + $0x38] sm:$0xff] %vm800, %v787
        %809 = vst.msk [vmem:[%s163 + $0x40] sm:$0xff] %vm800, %v453
        %810 = vst.msk [vmem:[%s163 + $0x48] sm:$0xff] %vm800, %v565
        %811 = vst.msk [vmem:[%s163 + $0x50] sm:$0xff] %vm800, %v677
        %812 = vst.msk [vmem:[%s163 + $0x58] sm:$0xff] %vm800, %v789
        %813 = vst.msk [vmem:[%s163 + $0x60] sm:$0xff] %vm800, %v455
        %814 = vst.msk [vmem:[%s163 + $0x68] sm:$0xff] %vm800, %v567
        %815 = vst.msk [vmem:[%s163 + $0x70] sm:$0xff] %vm800, %v679
        %816 = vst.msk [vmem:[%s163 + $0x78] sm:$0xff] %vm800, %v791
        %817 = vst.msk [vmem:[%s163 + $0x80] sm:$0xff] %vm800, %v457
        %818 = vst.msk [vmem:[%s163 + $0x88] sm:$0xff] %vm800, %v569
        %819 = vst.msk [vmem:[%s163 + $0x90] sm:$0xff] %vm800, %v681
        %820 = vst.msk [vmem:[%s163 + $0x98] sm:$0xff] %vm800, %v793
        %821 = vst.msk [vmem:[%s163 + $0xa0] sm:$0xff] %vm800, %v459
        %822 = vst.msk [vmem:[%s163 + $0xa8] sm:$0xff] %vm800, %v571
        %823 = vst.msk [vmem:[%s163 + $0xb0] sm:$0xff] %vm800, %v683
        %824 = vst.msk [vmem:[%s163 + $0xb8] sm:$0xff] %vm800, %v795
        %825 = vst.msk [vmem:[%s163 + $0xc0] sm:$0xff] %vm800, %v461
        %826 = vst.msk [vmem:[%s163 + $0xc8] sm:$0xff] %vm800, %v573
        %827 = vst.msk [vmem:[%s163 + $0xd0] sm:$0xff] %vm800, %v685
        %828 = vst.msk [vmem:[%s163 + $0xd8] sm:$0xff] %vm800, %v797
        %829 = vst.msk [vmem:[%s163 + $0xe0] sm:$0xff] %vm800, %v463
        %830 = vst.msk [vmem:[%s163 + $0xe8] sm:$0xff] %vm800, %v575
        %831 = vst.msk [vmem:[%s163 + $0xf0] sm:$0xff] %vm800, %v687
        %832 = vst.msk [vmem:[%s163 + $0xf8] sm:$0xff] %vm800, %v799
        %s833 = sand.u32 %s93, 1
        %s834 = scalar_lea.sflag [#allocation3], %s833
        %s835 = sand.u32 %s93, 1
        %s836 = smul.addr %s835, 256
        %s837 = scalar_lea.vmem [#allocation2], %s836
        // Predicated region
        $region33: #{up_conv_dcoa_forward.3} parent=31 // pred_check
          %p838 = pneg %p103
        $region34: #{up_conv_dcoa_forward.3} parent=31 // pred_check_branch
          %840 = sbr.rel (%p838) target = $region36
        $region35: #{up_conv_dcoa_forward.3} parent=31 // pred_region
          %842 = vsyncadd %s834, 0
          %s843 = smul.addr %s17, 32
          %s844 = smul.addr %s843, 8
          %s845 = scalar_lea.hbm %s3, %s844
          %s846 = sshll.u32 %s837, 4
          %s847 = int_to_ptr.vmem [resolvable:$true] %s846
          %s848 = sshll.u32 %s845, 4
          %s849 = int_to_ptr.hbm [resolvable:$true] %s848
          %854 = dma.vmem_to_hbm [thread:$0]  %s847, 4096, %s849, %s834, 128, 128, 8
        $region36: #{up_conv_dcoa_forward.3} parent=31 // pred_fallthru
          _
      $region32: #{up_conv_dcoa_forward.3} parent=5 // pred_fallthru
        _
      %p855 = scmp.le.s32.totalorder 2, %s12
      // Predicated region
      $region37: #{up_conv_dcoa_forward.3} parent=5 // pred_check
        %p856 = pneg %p855
      $region38: #{up_conv_dcoa_forward.3} parent=5 // pred_check_branch
        %858 = sbr.rel (%p856) target = $region40
      $region39: #{up_conv_dcoa_forward.3} parent=5 // pred_region
        %s859 = ssub.s32 %s12, 2
        // Predicated region
        $region41: #{up_conv_dcoa_forward.3} parent=39 // pred_check
          %p860 = pneg %p109
        $region42: #{up_conv_dcoa_forward.3} parent=39 // pred_check_branch
          %862 = sbr.rel (%p860) target = $region44
        $region43: #{up_conv_dcoa_forward.3} parent=39 // pred_region
          %s863 = sand.u32 %s94, 1
          %s864 = scalar_lea.sflag [#allocation3], %s863
          %s865 = sand.u32 %s94, 1
          %s866 = smul.addr %s865, 256
          %s867 = scalar_lea.vmem [#allocation2], %s866
          %869 = dma.done %s864, 4096
        $region44: #{up_conv_dcoa_forward.3} parent=39 // pred_fallthru
          _
      $region40: #{up_conv_dcoa_forward.3} parent=5 // pred_fallthru
        _
    $region6: #{up_conv_dcoa_forward.3} parent=1 // loop_footer
      %s16 = sadd.s32 1, %s12
    $region7: #{up_conv_dcoa_forward.3} parent=1 // loop_footer_branch
      %11 = sbr.rel target = $region3
    $region8: #{up_conv_dcoa_forward.3} parent=1 // loop_exit
      _
    %870 = vsyncpa [#allocation3], 1
    %s871 = scalar_lea.sflag [#allocation3], 1
    %872 = vsyncpa %s871, 1

// kernel: up_conv_dcoa_forward.2
$region0: #{up_conv_dcoa_forward.2}
  #allocation0 [shape = 'u32[]', space=smem, size = 0x4, offset = 0x4, fixed_abs, tag = 'smem constant byte address 0x4 - core index']
  #allocation1 [shape = 'u32[72,128]{1,0:T(1,128)}', space=vmem, size = 0x9000, scoped, tag = 'internal scratch']
  %s0 = inlined_call_operand.vmem [shape: bf16[2,4,256], index: 0, kind: input, shape index: {}]
  %s1 = inlined_call_operand.hbm [shape: bf16[256,1190], index: 1, kind: input, shape index: {}]
  %s2 = inlined_call_operand.vmem [shape: bf16[2,8,36], index: 2, kind: input, shape index: {}]
  %s3 = inlined_call_operand.vmem [shape: f32[2,8,1], index: 3, kind: input, shape index: {}]
  %s4 = inlined_call_operand.vmem [shape: f32[2,8,1088], index: 4, kind: output, shape index: {0}]
  %s5 = inlined_call_operand.vmem [shape: f32[2,8,2], index: 5, kind: output, shape index: {1}]
  %6 = xla_tuple %s4, %s5
  %s7 = sld [smem:[#allocation0]]
  $region61: #{up_conv_dcoa_forward.2} parent=0
    _
  %s9 = ssub.s32 1, %s7
  %s10 = scalar_select 0, %s9, %s7
  $region1: #{up_conv_dcoa_forward.2} parent=0
    #allocation2 [shape = 'u8[655360]{0}', space=vmem, size = 0xa0000, scoped, tag = 'input window, operand 1, single buffered']
    #allocation3 [shape = 's32[2]{0}', space=sflag, size = 0x8, scoped, tag = 'scoped memory for up_conv_dcoa_forward.2']
    %11 = vsyncpa [#allocation3], 0
    loop: start=0, step=1, limit=4
    $region2: #{up_conv_dcoa_forward.2} parent=1 // loop_pre_header
      _
    $region3: #{up_conv_dcoa_forward.2} parent=1 // loop_header
      %s13 = sphi 0, %s17
      %p14 = scmp.ge.s32.totalorder %s13, 4
      %s23 = sphi 0, %s25
      %s26 = sphi 0, %s23
      %s27 = sphi 0, %s26
      %s43 = sphi 0, %s27
      %s47 = sphi 0, %s47
      %s49 = sphi 0, %s47
      %s50 = sphi 0, %s49
      %s64 = sphi 0, %s50
      %s70 = sphi 0, %s72
      %s73 = sphi 0, %s70
      %s74 = sphi 0, %s73
      %s90 = sphi 0, %s74
      %s96 = sphi 0, %s98
      %s99 = sphi 0, %s96
      %s100 = sphi 0, %s99
      %s116 = sphi 0, %s100
      %s122 = sphi 0, %s124
      %s125 = sphi 0, %s122
      %s126 = sphi 0, %s125
      %s142 = sphi 0, %s126
      %s148 = sphi 0, %s150
      %s151 = sphi 0, %s148
      %s152 = sphi 0, %s151
      %s168 = sphi 0, %s152
    $region4: #{up_conv_dcoa_forward.2} parent=1 // loop_header_branch
      %16 = sbr.rel (%p14) target = $region8
    $region5: #{up_conv_dcoa_forward.2} parent=1 // loop_body
      %s18 = ssub.s32 %s13, 1
      %s19 = ssub.s32 %s13, 2
      %s20 = sadd.s32 %s13, 1
      %s21 = ssub.s32 %s13, %s20
      %p22 = scmp.eq.s32.totalorder %s21, 0
      %s24 = sadd.s32 %s23, 1
      %s25 = scalar_select %p22, %s23, %s24
      %p28 = pneg %p22
      %p29 = scmp.eq.s32.totalorder %s13, 1
      %p30 = por %p28, %p29
      %p31 = scmp.ne.s32.totalorder %s23, %s26
      %p32 = scmp.eq.s32.totalorder %s13, 0
      %p33 = por %p31, %p32
      %p34 = scmp.ne.s32.totalorder %s23, %s26
      %p35 = scmp.eq.s32.totalorder %s18, 1
      %p36 = por %p34, %p35
      %p37 = scmp.ne.s32.totalorder %s26, %s27
      %p38 = scmp.eq.s32.totalorder %s18, 0
      %p39 = por %p37, %p38
      %p40 = scmp.ne.s32.totalorder %s26, %s27
      %p41 = scmp.eq.s32.totalorder %s19, 1
      %p42 = por %p40, %p41
      %p44 = scmp.ne.s32.totalorder %s27, %s43
      %p45 = scmp.eq.s32.totalorder %s19, 0
      %p46 = por %p44, %p45
      %s48 = sadd.s32 %s47, 1
      %p51 = scmp.eq.s32.totalorder %s13, 1
      %p52 = scmp.ne.s32.totalorder %s47, %s49
      %p53 = scmp.eq.s32.totalorder %s13, 0
      %p54 = por %p52, %p53
      %p55 = scmp.ne.s32.totalorder %s47, %s49
      %p56 = scmp.eq.s32.totalorder %s18, 1
      %p57 = por %p55, %p56
      %p58 = scmp.ne.s32.totalorder %s49, %s50
      %p59 = scmp.eq.s32.totalorder %s18, 0
      %p60 = por %p58, %p59
      %p61 = scmp.ne.s32.totalorder %s49, %s50
      %p62 = scmp.eq.s32.totalorder %s19, 1
      %p63 = por %p61, %p62
      %p65 = scmp.ne.s32.totalorder %s50, %s64
      %p66 = scmp.eq.s32.totalorder %s19, 0
      %p67 = por %p65, %p66
      %s68 = ssub.s32 %s13, %s20
      %p69 = scmp.eq.s32.totalorder %s68, 0
      %s71 = sadd.s32 %s70, 1
      %s72 = scalar_select %p69, %s70, %s71
      %p75 = pneg %p69
      %p76 = scmp.eq.s32.totalorder %s13, 1
      %p77 = por %p75, %p76
      %p78 = scmp.ne.s32.totalorder %s70, %s73
      %p79 = scmp.eq.s32.totalorder %s13, 0
      %p80 = por %p78, %p79
      %p81 = scmp.ne.s32.totalorder %s70, %s73
      %p82 = scmp.eq.s32.totalorder %s18, 1
      %p83 = por %p81, %p82
      %p84 = scmp.ne.s32.totalorder %s73, %s74
      %p85 = scmp.eq.s32.totalorder %s18, 0
      %p86 = por %p84, %p85
      %p87 = scmp.ne.s32.totalorder %s73, %s74
      %p88 = scmp.eq.s32.totalorder %s19, 1
      %p89 = por %p87, %p88
      %p91 = scmp.ne.s32.totalorder %s74, %s90
      %p92 = scmp.eq.s32.totalorder %s19, 0
      %p93 = por %p91, %p92
      %s94 = ssub.s32 %s13, %s20
      %p95 = scmp.eq.s32.totalorder %s94, 0
      %s97 = sadd.s32 %s96, 1
      %s98 = scalar_select %p95, %s96, %s97
      %p101 = pneg %p95
      %p102 = scmp.eq.s32.totalorder %s13, 1
      %p103 = por %p101, %p102
      %p104 = scmp.ne.s32.totalorder %s96, %s99
      %p105 = scmp.eq.s32.totalorder %s13, 0
      %p106 = por %p104, %p105
      %p107 = scmp.ne.s32.totalorder %s96, %s99
      %p108 = scmp.eq.s32.totalorder %s18, 1
      %p109 = por %p107, %p108
      %p110 = scmp.ne.s32.totalorder %s99, %s100
      %p111 = scmp.eq.s32.totalorder %s18, 0
      %p112 = por %p110, %p111
      %p113 = scmp.ne.s32.totalorder %s99, %s100
      %p114 = scmp.eq.s32.totalorder %s19, 1
      %p115 = por %p113, %p114
      %p117 = scmp.ne.s32.totalorder %s100, %s116
      %p118 = scmp.eq.s32.totalorder %s19, 0
      %p119 = por %p117, %p118
      %s120 = ssub.s32 %s13, %s20
      %p121 = scmp.eq.s32.totalorder %s120, 0
      %s123 = sadd.s32 %s122, 1
      %s124 = scalar_select %p121, %s122, %s123
      %p127 = pneg %p121
      %p128 = scmp.eq.s32.totalorder %s13, 1
      %p129 = por %p127, %p128
      %p130 = scmp.ne.s32.totalorder %s122, %s125
      %p131 = scmp.eq.s32.totalorder %s13, 0
      %p132 = por %p130, %p131
      %p133 = scmp.ne.s32.totalorder %s122, %s125
      %p134 = scmp.eq.s32.totalorder %s18, 1
      %p135 = por %p133, %p134
      %p136 = scmp.ne.s32.totalorder %s125, %s126
      %p137 = scmp.eq.s32.totalorder %s18, 0
      %p138 = por %p136, %p137
      %p139 = scmp.ne.s32.totalorder %s125, %s126
      %p140 = scmp.eq.s32.totalorder %s19, 1
      %p141 = por %p139, %p140
      %p143 = scmp.ne.s32.totalorder %s126, %s142
      %p144 = scmp.eq.s32.totalorder %s19, 0
      %p145 = por %p143, %p144
      %s146 = ssub.s32 %s13, %s20
      %p147 = scmp.eq.s32.totalorder %s146, 0
      %s149 = sadd.s32 %s148, 1
      %s150 = scalar_select %p147, %s148, %s149
      %p153 = pneg %p147
      %p154 = scmp.eq.s32.totalorder %s13, 1
      %p155 = por %p153, %p154
      %p156 = scmp.ne.s32.totalorder %s148, %s151
      %p157 = scmp.eq.s32.totalorder %s13, 0
      %p158 = por %p156, %p157
      %p159 = scmp.ne.s32.totalorder %s148, %s151
      %p160 = scmp.eq.s32.totalorder %s18, 1
      %p161 = por %p159, %p160
      %p162 = scmp.ne.s32.totalorder %s151, %s152
      %p163 = scmp.eq.s32.totalorder %s18, 0
      %p164 = por %p162, %p163
      %p165 = scmp.ne.s32.totalorder %s151, %s152
      %p166 = scmp.eq.s32.totalorder %s19, 1
      %p167 = por %p165, %p166
      %p169 = scmp.ne.s32.totalorder %s152, %s168
      %p170 = scmp.eq.s32.totalorder %s19, 0
      %p171 = por %p169, %p170
      %p172 = scmp.le.s32.totalorder 1, %s13
      %p173 = scmp.lt.s32.totalorder %s13, 3
      %p174 = pnand %p172, %p173
      %p175 = pneg %p174
      // Predicated region
      $region9: #{up_conv_dcoa_forward.2} parent=5 // pred_check
        _
      $region10: #{up_conv_dcoa_forward.2} parent=5 // pred_check_branch
        %177 = sbr.rel (%p174) target = $region12
      $region11: #{up_conv_dcoa_forward.2} parent=5 // pred_region
        %s178 = ssub.s32 %s13, 1
        // Predicated region
        $region13: #{up_conv_dcoa_forward.2} parent=11 // pred_check
          %p179 = pneg %p60
        $region14: #{up_conv_dcoa_forward.2} parent=11 // pred_check_branch
          %181 = sbr.rel (%p179) target = $region16
        $region15: #{up_conv_dcoa_forward.2} parent=11 // pred_region
          %183 = vsyncadd [#allocation3], 0
          %s184 = sshll.u32 %s1, 4
          %s185 = int_to_ptr.hbm [resolvable:$true] %s184
          %s186 = sshll.u32 [#allocation2], 4
          %s187 = int_to_ptr.vmem [resolvable:$true] %s186
          %192 = dma.hbm_to_vmem [thread:$0]  %s185, 20480, %s187, [#allocation3], 640, 640, 40
        $region16: #{up_conv_dcoa_forward.2} parent=11 // pred_fallthru
          _
      $region12: #{up_conv_dcoa_forward.2} parent=5 // pred_fallthru
        _
      %p193 = scmp.lt.s32.totalorder %s13, 2
      // Predicated region
      $region17: #{up_conv_dcoa_forward.2} parent=5 // pred_check
        %p194 = pneg %p193
      $region18: #{up_conv_dcoa_forward.2} parent=5 // pred_check_branch
        %196 = sbr.rel (%p194) target = $region20
      $region19: #{up_conv_dcoa_forward.2} parent=5 // pred_region
        // Predicated region
        $region21: #{up_conv_dcoa_forward.2} parent=19 // pred_check
          %p197 = pneg %p33
        $region22: #{up_conv_dcoa_forward.2} parent=19 // pred_check_branch
          %199 = sbr.rel (%p197) target = $region24
        $region23: #{up_conv_dcoa_forward.2} parent=19 // pred_region
          %p200 = scmp.lt.s32.totalorder %s13, 1
          %s201 = scalar_select %p200, %s13, 1
          %s202 = smul.addr %s201, 2
          %s203 = smul.addr %s202, 2
          %s204 = scalar_lea.vmem %s0, %s203
        $region24: #{up_conv_dcoa_forward.2} parent=19 // pred_fallthru
          _
        // Predicated region
        $region25: #{up_conv_dcoa_forward.2} parent=19 // pred_check
          %p205 = pneg %p80
        $region26: #{up_conv_dcoa_forward.2} parent=19 // pred_check_branch
          %207 = sbr.rel (%p205) target = $region28
        $region27: #{up_conv_dcoa_forward.2} parent=19 // pred_region
          %p208 = scmp.lt.s32.totalorder %s13, 1
          %s209 = scalar_select %p208, %s13, 1
          %s210 = smul.addr %s209, 4
          %s211 = scalar_lea.vmem %s2, %s210
        $region28: #{up_conv_dcoa_forward.2} parent=19 // pred_fallthru
          _
        // Predicated region
        $region29: #{up_conv_dcoa_forward.2} parent=19 // pred_check
          %p212 = pneg %p106
        $region30: #{up_conv_dcoa_forward.2} parent=19 // pred_check_branch
          %214 = sbr.rel (%p212) target = $region32
        $region31: #{up_conv_dcoa_forward.2} parent=19 // pred_region
          %p215 = scmp.lt.s32.totalorder %s13, 1
          %s216 = scalar_select %p215, %s13, 1
          %s217 = smul.addr %s216, 8
          %s218 = scalar_lea.vmem %s3, %s217
        $region32: #{up_conv_dcoa_forward.2} parent=19 // pred_fallthru
          _
      $region20: #{up_conv_dcoa_forward.2} parent=5 // pred_fallthru
        _
      %p219 = scmp.le.s32.totalorder 1, %s13
      %p220 = scmp.lt.s32.totalorder %s13, 3
      %p221 = pnand %p219, %p220
      %p222 = pneg %p221
      // Predicated region
      $region33: #{up_conv_dcoa_forward.2} parent=5 // pred_check
        _
      $region34: #{up_conv_dcoa_forward.2} parent=5 // pred_check_branch
        %224 = sbr.rel (%p221) target = $region36
      $region35: #{up_conv_dcoa_forward.2} parent=5 // pred_region
        %s225 = ssub.s32 %s13, 1
        // Predicated region
        $region37: #{up_conv_dcoa_forward.2} parent=35 // pred_check
          %p226 = pneg %p60
        $region38: #{up_conv_dcoa_forward.2} parent=35 // pred_check_branch
          %228 = sbr.rel (%p226) target = $region40
        $region39: #{up_conv_dcoa_forward.2} parent=35 // pred_region
          %230 = dma.done [#allocation3], 20480
        $region40: #{up_conv_dcoa_forward.2} parent=35 // pred_fallthru
          _
        %p231 = scmp.lt.s32.totalorder %s18, 1
        %s232 = scalar_select %p231, %s18, 1
        %s233 = smul.addr %s232, 2
        %s234 = smul.addr %s233, 2
        %s235 = scalar_lea.vmem %s0, %s234
        %p236 = pneg %p39
        %p237 = pneg %p36
        %p238 = pneg %p60
        %p239 = pneg %p57
        %p240 = scmp.lt.s32.totalorder %s18, 1
        %s241 = scalar_select %p240, %s18, 1
        %s242 = smul.addr %s241, 4
        %s243 = scalar_lea.vmem %s2, %s242
        %p244 = pneg %p86
        %p245 = pneg %p83
        %p246 = scmp.lt.s32.totalorder %s18, 1
        %s247 = scalar_select %p246, %s18, 1
        %s248 = smul.addr %s247, 8
        %s249 = scalar_lea.vmem %s3, %s248
        %p250 = pneg %p112
        %p251 = pneg %p109
        %p252 = pneg %p138
        %p253 = pneg %p135
        %p254 = scmp.lt.s32.totalorder %s18, 1
        %s255 = scalar_select %p254, %s18, 1
        %s256 = smul.addr %s255, 9
        %s257 = smul.addr %s256, 8
        %s258 = scalar_lea.vmem %s4, %s257
        %p259 = pneg %p164
        %p260 = pneg %p161
        %p261 = scmp.lt.s32.totalorder %s18, 1
        %s262 = scalar_select %p261, %s18, 1
        %s263 = smul.addr %s262, 8
        %s264 = scalar_lea.vmem %s5, %s263
        %p265 = scmp.lt.s32.totalorder %s18, 1
        %s266 = scalar_select %p265, %s18, 1
        %s267 = smul.addr %s266, 2
        %s268 = smul.addr %s267, 2
        %s269 = scalar_lea.vmem %s0, %s268
        %p270 = scmp.lt.s32.totalorder %s18, 1
        %s271 = scalar_select %p270, %s18, 1
        %s272 = smul.addr %s271, 4
        %s273 = scalar_lea.vmem %s2, %s272
        %p274 = scmp.lt.s32.totalorder %s18, 1
        %s275 = scalar_select %p274, %s18, 1
        %s276 = smul.addr %s275, 8
        %s277 = scalar_lea.vmem %s3, %s276
        %p278 = scmp.lt.s32.totalorder %s18, 1
        %s279 = scalar_select %p278, %s18, 1
        %s280 = smul.addr %s279, 9
        %s281 = smul.addr %s280, 8
        %s282 = scalar_lea.vmem %s4, %s281
        %p283 = scmp.lt.s32.totalorder %s18, 1
        %s284 = scalar_select %p283, %s18, 1
        %s285 = smul.addr %s284, 8
        %s286 = scalar_lea.vmem %s5, %s285
        %v288 = vld [vmem:[%s269] sm:$0xf]
        %v289 = vld [vmem:[#allocation2] sm:$0xff]
        %v290 = vld [vmem:[#allocation2 + $0x8] sm:$0xff]
        %v291 = vld [vmem:[#allocation2 + $0x10] sm:$0xff]
        %v292 = vld [vmem:[#allocation2 + $0x18] sm:$0xff]
        %v293 = vld [vmem:[#allocation2 + $0x20] sm:$0xff]
        %v294 = vld [vmem:[#allocation2 + $0x28] sm:$0xff]
        %v295 = vld [vmem:[#allocation2 + $0x30] sm:$0xff]
        %v296 = vld [vmem:[#allocation2 + $0x38] sm:$0xff]
        %v297 = vld [vmem:[#allocation2 + $0x40] sm:$0xff]
        %v298 = vld [vmem:[#allocation2 + $0x48] sm:$0xff]
        %v299 = vld [vmem:[#allocation2 + $0x50] sm:$0xff]
        %v300 = vld [vmem:[#allocation2 + $0x58] sm:$0xff]
        %v301 = vld [vmem:[#allocation2 + $0x60] sm:$0xff]
        %v302 = vld [vmem:[#allocation2 + $0x68] sm:$0xff]
        %v303 = vld [vmem:[#allocation2 + $0x70] sm:$0xff]
        %v304 = vld [vmem:[#allocation2 + $0x78] sm:$0xff]
        %v305 = vld [vmem:[#allocation2 + $0x80] sm:$0xff]
        %v306 = vld [vmem:[#allocation2 + $0x88] sm:$0xff]
        %v307 = vld [vmem:[#allocation2 + $0x90] sm:$0xff]
        %v308 = vld [vmem:[#allocation2 + $0x98] sm:$0xff]
        %v309 = vld [vmem:[#allocation2 + $0xa0] sm:$0xff]
        %v310 = vld [vmem:[#allocation2 + $0xa8] sm:$0xff]
        %v311 = vld [vmem:[#allocation2 + $0xb0] sm:$0xff]
        %v312 = vld [vmem:[#allocation2 + $0xb8] sm:$0xff]
        %v313 = vld [vmem:[#allocation2 + $0xc0] sm:$0xff]
        %v314 = vld [vmem:[#allocation2 + $0xc8] sm:$0xff]
        %v315 = vld [vmem:[#allocation2 + $0xd0] sm:$0xff]
        %v316 = vld [vmem:[#allocation2 + $0xd8] sm:$0xff]
        %v317 = vld [vmem:[#allocation2 + $0xe0] sm:$0xff]
        %v318 = vld [vmem:[#allocation2 + $0xe8] sm:$0xff]
        %v319 = vld [vmem:[#allocation2 + $0xf0] sm:$0xff]
        %v320 = vld [vmem:[#allocation2 + $0xf8] sm:$0xff]
        %v321 = vld [vmem:[#allocation2 + $0x100] sm:$0xff]
        %v322 = vld [vmem:[#allocation2 + $0x108] sm:$0xff]
        %v323 = vld [vmem:[#allocation2 + $0x110] sm:$0xff]
        %v324 = vld [vmem:[#allocation2 + $0x118] sm:$0xff]
        %v325 = vld [vmem:[#allocation2 + $0x120] sm:$0xff]
        %v326 = vld [vmem:[#allocation2 + $0x128] sm:$0xff]
        %v327 = vld [vmem:[#allocation2 + $0x130] sm:$0xff]
        %v328 = vld [vmem:[#allocation2 + $0x138] sm:$0xff]
        %v329 = vld [vmem:[#allocation2 + $0x140] sm:$0xff]
        %v330 = vld [vmem:[#allocation2 + $0x148] sm:$0xff]
        %v331 = vld [vmem:[#allocation2 + $0x150] sm:$0xff]
        %v332 = vld [vmem:[#allocation2 + $0x158] sm:$0xff]
        %v333 = vld [vmem:[#allocation2 + $0x160] sm:$0xff]
        %v334 = vld [vmem:[#allocation2 + $0x168] sm:$0xff]
        %v335 = vld [vmem:[#allocation2 + $0x170] sm:$0xff]
        %v336 = vld [vmem:[#allocation2 + $0x178] sm:$0xff]
        %v337 = vld [vmem:[#allocation2 + $0x180] sm:$0xff]
        %v338 = vld [vmem:[#allocation2 + $0x188] sm:$0xff]
        %v339 = vld [vmem:[#allocation2 + $0x190] sm:$0xff]
        %v340 = vld [vmem:[#allocation2 + $0x198] sm:$0xff]
        %v341 = vld [vmem:[#allocation2 + $0x1a0] sm:$0xff]
        %v342 = vld [vmem:[#allocation2 + $0x1a8] sm:$0xff]
        %v343 = vld [vmem:[#allocation2 + $0x1b0] sm:$0xff]
        %v344 = vld [vmem:[#allocation2 + $0x1b8] sm:$0xff]
        %v345 = vld [vmem:[#allocation2 + $0x1c0] sm:$0xff]
        %v346 = vld [vmem:[#allocation2 + $0x1c8] sm:$0xff]
        %v347 = vld [vmem:[#allocation2 + $0x1d0] sm:$0xff]
        %v348 = vld [vmem:[#allocation2 + $0x1d8] sm:$0xff]
        %v349 = vld [vmem:[#allocation2 + $0x1e0] sm:$0xff]
        %v350 = vld [vmem:[#allocation2 + $0x1e8] sm:$0xff]
        %v351 = vld [vmem:[#allocation2 + $0x1f0] sm:$0xff]
        %v352 = vld [vmem:[#allocation2 + $0x1f8] sm:$0xff]
        %v353 = vld [vmem:[#allocation2 + $0x200] sm:$0xff]
        %v354 = vld [vmem:[#allocation2 + $0x208] sm:$0xff]
        %v355 = vld [vmem:[#allocation2 + $0x210] sm:$0xff]
        %v356 = vld [vmem:[#allocation2 + $0x218] sm:$0xff]
        %v357 = vld [vmem:[#allocation2 + $0x220] sm:$0xff]
        %v358 = vld [vmem:[#allocation2 + $0x228] sm:$0xff]
        %v359 = vld [vmem:[#allocation2 + $0x230] sm:$0xff]
        %v360 = vld [vmem:[#allocation2 + $0x238] sm:$0xff]
        %v361 = vld [vmem:[#allocation2 + $0x240] sm:$0xff]
        %v362 = vld [vmem:[#allocation2 + $0x248] sm:$0xff]
        %v363 = vld [vmem:[#allocation2 + $0x250] sm:$0xff]
        %v364 = vld [vmem:[#allocation2 + $0x258] sm:$0xff]
        %v365 = vld [vmem:[#allocation2 + $0x260] sm:$0xff]
        %v366 = vld [vmem:[#allocation2 + $0x268] sm:$0xff]
        %v367 = vld [vmem:[#allocation2 + $0x270] sm:$0xff]
        %v368 = vld [vmem:[#allocation2 + $0x278] sm:$0xff]
        %v369 = vld [vmem:[#allocation2 + $0x280] sm:$0xff]
        %v370 = vld [vmem:[#allocation2 + $0x288] sm:$0xff]
        %v371 = vld [vmem:[#allocation2 + $0x290] sm:$0xff]
        %v372 = vld [vmem:[#allocation2 + $0x298] sm:$0xff]
        %v373 = vld [vmem:[#allocation2 + $0x2a0] sm:$0xff]
        %v374 = vld [vmem:[#allocation2 + $0x2a8] sm:$0xff]
        %v375 = vld [vmem:[#allocation2 + $0x2b0] sm:$0xff]
        %v376 = vld [vmem:[#allocation2 + $0x2b8] sm:$0xff]
        %v377 = vld [vmem:[#allocation2 + $0x2c0] sm:$0xff]
        %v378 = vld [vmem:[#allocation2 + $0x2c8] sm:$0xff]
        %v379 = vld [vmem:[#allocation2 + $0x2d0] sm:$0xff]
        %v380 = vld [vmem:[#allocation2 + $0x2d8] sm:$0xff]
        %v381 = vld [vmem:[#allocation2 + $0x2e0] sm:$0xff]
        %v382 = vld [vmem:[#allocation2 + $0x2e8] sm:$0xff]
        %v383 = vld [vmem:[#allocation2 + $0x2f0] sm:$0xff]
        %v384 = vld [vmem:[#allocation2 + $0x2f8] sm:$0xff]
        %v385 = vld [vmem:[#allocation2 + $0x300] sm:$0xff]
        %v386 = vld [vmem:[#allocation2 + $0x308] sm:$0xff]
        %v387 = vld [vmem:[#allocation2 + $0x310] sm:$0xff]
        %v388 = vld [vmem:[#allocation2 + $0x318] sm:$0xff]
        %v389 = vld [vmem:[#allocation2 + $0x320] sm:$0xff]
        %v390 = vld [vmem:[#allocation2 + $0x328] sm:$0xff]
        %v391 = vld [vmem:[#allocation2 + $0x330] sm:$0xff]
        %v392 = vld [vmem:[#allocation2 + $0x338] sm:$0xff]
        %v393 = vld [vmem:[#allocation2 + $0x340] sm:$0xff]
        %v394 = vld [vmem:[#allocation2 + $0x348] sm:$0xff]
        %v395 = vld [vmem:[#allocation2 + $0x350] sm:$0xff]
        %v396 = vld [vmem:[#allocation2 + $0x358] sm:$0xff]
        %v397 = vld [vmem:[#allocation2 + $0x360] sm:$0xff]
        %v398 = vld [vmem:[#allocation2 + $0x368] sm:$0xff]
        %v399 = vld [vmem:[#allocation2 + $0x370] sm:$0xff]
        %v400 = vld [vmem:[#allocation2 + $0x378] sm:$0xff]
        %v401 = vld [vmem:[#allocation2 + $0x380] sm:$0xff]
        %v402 = vld [vmem:[#allocation2 + $0x388] sm:$0xff]
        %v403 = vld [vmem:[#allocation2 + $0x390] sm:$0xff]
        %v404 = vld [vmem:[#allocation2 + $0x398] sm:$0xff]
        %v405 = vld [vmem:[#allocation2 + $0x3a0] sm:$0xff]
        %v406 = vld [vmem:[#allocation2 + $0x3a8] sm:$0xff]
        %v407 = vld [vmem:[#allocation2 + $0x3b0] sm:$0xff]
        %v408 = vld [vmem:[#allocation2 + $0x3b8] sm:$0xff]
        %v409 = vld [vmem:[#allocation2 + $0x3c0] sm:$0xff]
        %v410 = vld [vmem:[#allocation2 + $0x3c8] sm:$0xff]
        %v411 = vld [vmem:[#allocation2 + $0x3d0] sm:$0xff]
        %v412 = vld [vmem:[#allocation2 + $0x3d8] sm:$0xff]
        %v413 = vld [vmem:[#allocation2 + $0x3e0] sm:$0xff]
        %v414 = vld [vmem:[#allocation2 + $0x3e8] sm:$0xff]
        %v415 = vld [vmem:[#allocation2 + $0x3f0] sm:$0xff]
        %v416 = vld [vmem:[#allocation2 + $0x3f8] sm:$0xff]
        %v417 = vld [vmem:[#allocation2 + $0x400] sm:$0xff]
        %v418 = vld [vmem:[#allocation2 + $0x408] sm:$0xff]
        %v419 = vld [vmem:[#allocation2 + $0x410] sm:$0xff]
        %v420 = vld [vmem:[#allocation2 + $0x418] sm:$0xff]
        %v421 = vld [vmem:[#allocation2 + $0x420] sm:$0xff]
        %v422 = vld [vmem:[#allocation2 + $0x428] sm:$0xff]
        %v423 = vld [vmem:[#allocation2 + $0x430] sm:$0xff]
        %v424 = vld [vmem:[#allocation2 + $0x438] sm:$0xff]
        %v425 = vld [vmem:[#allocation2 + $0x440] sm:$0xff]
        %v426 = vld [vmem:[#allocation2 + $0x448] sm:$0xff]
        %v427 = vld [vmem:[#allocation2 + $0x450] sm:$0xff]
        %v428 = vld [vmem:[#allocation2 + $0x458] sm:$0xff]
        %v429 = vld [vmem:[#allocation2 + $0x460] sm:$0xff]
        %v430 = vld [vmem:[#allocation2 + $0x468] sm:$0xff]
        %v431 = vld [vmem:[#allocation2 + $0x470] sm:$0xff]
        %v432 = vld [vmem:[#allocation2 + $0x478] sm:$0xff]
        %v433 = vld [vmem:[#allocation2 + $0x480] sm:$0xff]
        %v434 = vld [vmem:[#allocation2 + $0x488] sm:$0xff]
        %v435 = vld [vmem:[#allocation2 + $0x490] sm:$0xff]
        %v436 = vld [vmem:[#allocation2 + $0x498] sm:$0xff]
        %v437 = vld [vmem:[#allocation2 + $0x4a0] sm:$0xff]
        %v438 = vld [vmem:[#allocation2 + $0x4a8] sm:$0xff]
        %v439 = vld [vmem:[#allocation2 + $0x4b0] sm:$0xff]
        %v440 = vld [vmem:[#allocation2 + $0x4b8] sm:$0xff]
        %v441 = vld [vmem:[#allocation2 + $0x4c0] sm:$0xff]
        %v442 = vld [vmem:[#allocation2 + $0x4c8] sm:$0xff]
        %v443 = vld [vmem:[#allocation2 + $0x4d0] sm:$0xff]
        %v444 = vld [vmem:[#allocation2 + $0x4d8] sm:$0xff]
        %v445 = vld [vmem:[#allocation2 + $0x4e0] sm:$0xff]
        %v446 = vld [vmem:[#allocation2 + $0x4e8] sm:$0xff]
        %v447 = vld [vmem:[#allocation2 + $0x4f0] sm:$0xff]
        %v448 = vld [vmem:[#allocation2 + $0x4f8] sm:$0xff]
        %450 = vst [vmem:[#allocation1] ss:$4 sm:$0xff] %v288
        %v451 = vld.sshfl [vmem:[#allocation1] sm:$0xff pattern:$0x73625140]
        %v452 = vld.sshfl [vmem:[#allocation1 + $0x8] sm:$0xff pattern:$0x73625140]
        %v615 = vunpack.c.l.b16 %v289
        %v616 = vunpack.c.h.b16 %v289
        %v617 = vunpack.c.l.b16 %v290
        %v618 = vunpack.c.h.b16 %v290
        %v619 = vunpack.c.l.b16 %v291
        %v620 = vunpack.c.h.b16 %v291
        %v621 = vunpack.c.l.b16 %v292
        %v622 = vunpack.c.h.b16 %v292
        %v623 = vunpack.c.l.b16 %v293
        %v624 = vunpack.c.h.b16 %v293
        %v625 = vunpack.c.l.b16 %v294
        %v626 = vunpack.c.h.b16 %v294
        %v627 = vunpack.c.l.b16 %v295
        %v628 = vunpack.c.h.b16 %v295
        %v629 = vunpack.c.l.b16 %v296
        %v630 = vunpack.c.h.b16 %v296
        %v631 = vunpack.c.l.b16 %v297
        %v632 = vunpack.c.h.b16 %v297
        %v633 = vunpack.c.l.b16 %v298
        %v634 = vunpack.c.h.b16 %v298
        %v635 = vunpack.c.l.b16 %v299
        %v636 = vunpack.c.h.b16 %v299
        %v637 = vunpack.c.l.b16 %v300
        %v638 = vunpack.c.h.b16 %v300
        %v639 = vunpack.c.l.b16 %v301
        %v640 = vunpack.c.h.b16 %v301
        %v641 = vunpack.c.l.b16 %v302
        %v642 = vunpack.c.h.b16 %v302
        %v643 = vunpack.c.l.b16 %v303
        %v644 = vunpack.c.h.b16 %v303
        %v645 = vunpack.c.l.b16 %v304
        %v646 = vunpack.c.h.b16 %v304
        %v647 = vunpack.c.l.b16 %v305
        %v648 = vunpack.c.h.b16 %v305
        %v649 = vunpack.c.l.b16 %v306
        %v650 = vunpack.c.h.b16 %v306
        %v651 = vunpack.c.l.b16 %v307
        %v652 = vunpack.c.h.b16 %v307
        %v653 = vunpack.c.l.b16 %v308
        %v654 = vunpack.c.h.b16 %v308
        %v655 = vunpack.c.l.b16 %v309
        %v656 = vunpack.c.h.b16 %v309
        %v657 = vunpack.c.l.b16 %v310
        %v658 = vunpack.c.h.b16 %v310
        %v659 = vunpack.c.l.b16 %v311
        %v660 = vunpack.c.h.b16 %v311
        %v661 = vunpack.c.l.b16 %v312
        %v662 = vunpack.c.h.b16 %v312
        %v663 = vunpack.c.l.b16 %v313
        %v664 = vunpack.c.h.b16 %v313
        %v665 = vunpack.c.l.b16 %v314
        %v666 = vunpack.c.h.b16 %v314
        %v667 = vunpack.c.l.b16 %v315
        %v668 = vunpack.c.h.b16 %v315
        %v669 = vunpack.c.l.b16 %v316
        %v670 = vunpack.c.h.b16 %v316
        %v671 = vunpack.c.l.b16 %v317
        %v672 = vunpack.c.h.b16 %v317
        %v673 = vunpack.c.l.b16 %v318
        %v674 = vunpack.c.h.b16 %v318
        %v675 = vunpack.c.l.b16 %v319
        %v676 = vunpack.c.h.b16 %v319
        %v677 = vunpack.c.l.b16 %v320
        %v678 = vunpack.c.h.b16 %v320
        %v679 = vunpack.c.l.b16 %v321
        %v680 = vunpack.c.h.b16 %v321
        %v681 = vunpack.c.l.b16 %v322
        %v682 = vunpack.c.h.b16 %v322
        %v683 = vunpack.c.l.b16 %v323
        %v684 = vunpack.c.h.b16 %v323
        %v685 = vunpack.c.l.b16 %v324
        %v686 = vunpack.c.h.b16 %v324
        %v687 = vunpack.c.l.b16 %v325
        %v688 = vunpack.c.h.b16 %v325
        %v689 = vunpack.c.l.b16 %v326
        %v690 = vunpack.c.h.b16 %v326
        %v691 = vunpack.c.l.b16 %v327
        %v692 = vunpack.c.h.b16 %v327
        %v693 = vunpack.c.l.b16 %v328
        %v694 = vunpack.c.h.b16 %v328
        %v695 = vunpack.c.l.b16 %v329
        %v696 = vunpack.c.h.b16 %v329
        %v697 = vunpack.c.l.b16 %v330
        %v698 = vunpack.c.h.b16 %v330
        %v699 = vunpack.c.l.b16 %v331
        %v700 = vunpack.c.h.b16 %v331
        %v701 = vunpack.c.l.b16 %v332
        %v702 = vunpack.c.h.b16 %v332
        %v703 = vunpack.c.l.b16 %v333
        %v704 = vunpack.c.h.b16 %v333
        %v705 = vunpack.c.l.b16 %v334
        %v706 = vunpack.c.h.b16 %v334
        %v707 = vunpack.c.l.b16 %v335
        %v708 = vunpack.c.h.b16 %v335
        %v709 = vunpack.c.l.b16 %v336
        %v710 = vunpack.c.h.b16 %v336
        %v711 = vunpack.c.l.b16 %v337
        %v712 = vunpack.c.h.b16 %v337
        %v713 = vunpack.c.l.b16 %v338
        %v714 = vunpack.c.h.b16 %v338
        %v715 = vunpack.c.l.b16 %v339
        %v716 = vunpack.c.h.b16 %v339
        %v717 = vunpack.c.l.b16 %v340
        %v718 = vunpack.c.h.b16 %v340
        %v719 = vunpack.c.l.b16 %v341
        %v720 = vunpack.c.h.b16 %v341
        %v721 = vunpack.c.l.b16 %v342
        %v722 = vunpack.c.h.b16 %v342
        %v723 = vunpack.c.l.b16 %v343
        %v724 = vunpack.c.h.b16 %v343
        %v725 = vunpack.c.l.b16 %v344
        %v726 = vunpack.c.h.b16 %v344
        %v727 = vunpack.c.l.b16 %v345
        %v728 = vunpack.c.h.b16 %v345
        %v729 = vunpack.c.l.b16 %v346
        %v730 = vunpack.c.h.b16 %v346
        %v731 = vunpack.c.l.b16 %v347
        %v732 = vunpack.c.h.b16 %v347
        %v733 = vunpack.c.l.b16 %v348
        %v734 = vunpack.c.h.b16 %v348
        %v735 = vunpack.c.l.b16 %v349
        %v736 = vunpack.c.h.b16 %v349
        %v737 = vunpack.c.l.b16 %v350
        %v738 = vunpack.c.h.b16 %v350
        %v739 = vunpack.c.l.b16 %v351
        %v740 = vunpack.c.h.b16 %v351
        %v741 = vunpack.c.l.b16 %v352
        %v742 = vunpack.c.h.b16 %v352
        %v743 = vunpack.c.l.b16 %v353
        %v744 = vunpack.c.h.b16 %v353
        %v745 = vunpack.c.l.b16 %v354
        %v746 = vunpack.c.h.b16 %v354
        %v747 = vunpack.c.l.b16 %v355
        %v748 = vunpack.c.h.b16 %v355
        %v749 = vunpack.c.l.b16 %v356
        %v750 = vunpack.c.h.b16 %v356
        %v751 = vunpack.c.l.b16 %v357
        %v752 = vunpack.c.h.b16 %v357
        %v753 = vunpack.c.l.b16 %v358
        %v754 = vunpack.c.h.b16 %v358
        %v755 = vunpack.c.l.b16 %v359
        %v756 = vunpack.c.h.b16 %v359
        %v757 = vunpack.c.l.b16 %v360
        %v758 = vunpack.c.h.b16 %v360
        %v759 = vunpack.c.l.b16 %v361
        %v760 = vunpack.c.h.b16 %v361
        %v761 = vunpack.c.l.b16 %v362
        %v762 = vunpack.c.h.b16 %v362
        %v763 = vunpack.c.l.b16 %v363
        %v764 = vunpack.c.h.b16 %v363
        %v765 = vunpack.c.l.b16 %v364
        %v766 = vunpack.c.h.b16 %v364
        %v767 = vunpack.c.l.b16 %v365
        %v768 = vunpack.c.h.b16 %v365
        %v769 = vunpack.c.l.b16 %v366
        %v770 = vunpack.c.h.b16 %v366
        %v771 = vunpack.c.l.b16 %v367
        %v772 = vunpack.c.h.b16 %v367
        %v773 = vunpack.c.l.b16 %v368
        %v774 = vunpack.c.h.b16 %v368
        %v775 = vunpack.c.l.b16 %v369
        %v776 = vunpack.c.h.b16 %v369
        %v777 = vunpack.c.l.b16 %v370
        %v778 = vunpack.c.h.b16 %v370
        %v779 = vunpack.c.l.b16 %v371
        %v780 = vunpack.c.h.b16 %v371
        %v781 = vunpack.c.l.b16 %v372
        %v782 = vunpack.c.h.b16 %v372
        %v783 = vunpack.c.l.b16 %v373
        %v784 = vunpack.c.h.b16 %v373
        %v785 = vunpack.c.l.b16 %v374
        %v786 = vunpack.c.h.b16 %v374
        %v787 = vunpack.c.l.b16 %v375
        %v788 = vunpack.c.h.b16 %v375
        %v789 = vunpack.c.l.b16 %v376
        %v790 = vunpack.c.h.b16 %v376
        %v791 = vunpack.c.l.b16 %v377
        %v792 = vunpack.c.h.b16 %v377
        %v793 = vunpack.c.l.b16 %v378
        %v794 = vunpack.c.h.b16 %v378
        %v795 = vunpack.c.l.b16 %v379
        %v796 = vunpack.c.h.b16 %v379
        %v797 = vunpack.c.l.b16 %v380
        %v798 = vunpack.c.h.b16 %v380
        %v799 = vunpack.c.l.b16 %v381
        %v800 = vunpack.c.h.b16 %v381
        %v801 = vunpack.c.l.b16 %v382
        %v802 = vunpack.c.h.b16 %v382
        %v803 = vunpack.c.l.b16 %v383
        %v804 = vunpack.c.h.b16 %v383
        %v805 = vunpack.c.l.b16 %v384
        %v806 = vunpack.c.h.b16 %v384
        %v807 = vunpack.c.l.b16 %v385
        %v808 = vunpack.c.h.b16 %v385
        %v809 = vunpack.c.l.b16 %v386
        %v810 = vunpack.c.h.b16 %v386
        %v811 = vunpack.c.l.b16 %v387
        %v812 = vunpack.c.h.b16 %v387
        %v813 = vunpack.c.l.b16 %v388
        %v814 = vunpack.c.h.b16 %v388
        %v815 = vunpack.c.l.b16 %v389
        %v816 = vunpack.c.h.b16 %v389
        %v817 = vunpack.c.l.b16 %v390
        %v818 = vunpack.c.h.b16 %v390
        %v819 = vunpack.c.l.b16 %v391
        %v820 = vunpack.c.h.b16 %v391
        %v821 = vunpack.c.l.b16 %v392
        %v822 = vunpack.c.h.b16 %v392
        %v823 = vunpack.c.l.b16 %v393
        %v824 = vunpack.c.h.b16 %v393
        %v825 = vunpack.c.l.b16 %v394
        %v826 = vunpack.c.h.b16 %v394
        %v827 = vunpack.c.l.b16 %v395
        %v828 = vunpack.c.h.b16 %v395
        %v829 = vunpack.c.l.b16 %v396
        %v830 = vunpack.c.h.b16 %v396
        %v831 = vunpack.c.l.b16 %v397
        %v832 = vunpack.c.h.b16 %v397
        %v833 = vunpack.c.l.b16 %v398
        %v834 = vunpack.c.h.b16 %v398
        %v835 = vunpack.c.l.b16 %v399
        %v836 = vunpack.c.h.b16 %v399
        %v837 = vunpack.c.l.b16 %v400
        %v838 = vunpack.c.h.b16 %v400
        %v839 = vunpack.c.l.b16 %v401
        %v840 = vunpack.c.h.b16 %v401
        %v841 = vunpack.c.l.b16 %v402
        %v842 = vunpack.c.h.b16 %v402
        %v843 = vunpack.c.l.b16 %v403
        %v844 = vunpack.c.h.b16 %v403
        %v845 = vunpack.c.l.b16 %v404
        %v846 = vunpack.c.h.b16 %v404
        %v847 = vunpack.c.l.b16 %v405
        %v848 = vunpack.c.h.b16 %v405
        %v849 = vunpack.c.l.b16 %v406
        %v850 = vunpack.c.h.b16 %v406
        %v851 = vunpack.c.l.b16 %v407
        %v852 = vunpack.c.h.b16 %v407
        %v853 = vunpack.c.l.b16 %v408
        %v854 = vunpack.c.h.b16 %v408
        %v855 = vunpack.c.l.b16 %v409
        %v856 = vunpack.c.h.b16 %v409
        %v857 = vunpack.c.l.b16 %v410
        %v858 = vunpack.c.h.b16 %v410
        %v859 = vunpack.c.l.b16 %v411
        %v860 = vunpack.c.h.b16 %v411
        %v861 = vunpack.c.l.b16 %v412
        %v862 = vunpack.c.h.b16 %v412
        %v863 = vunpack.c.l.b16 %v413
        %v864 = vunpack.c.h.b16 %v413
        %v865 = vunpack.c.l.b16 %v414
        %v866 = vunpack.c.h.b16 %v414
        %v867 = vunpack.c.l.b16 %v415
        %v868 = vunpack.c.h.b16 %v415
        %v869 = vunpack.c.l.b16 %v416
        %v870 = vunpack.c.h.b16 %v416
        %v871 = vunpack.c.l.b16 %v417
        %v872 = vunpack.c.h.b16 %v417
        %v873 = vunpack.c.l.b16 %v418
        %v874 = vunpack.c.h.b16 %v418
        %v875 = vunpack.c.l.b16 %v419
        %v876 = vunpack.c.h.b16 %v419
        %v877 = vunpack.c.l.b16 %v420
        %v878 = vunpack.c.h.b16 %v420
        %v879 = vunpack.c.l.b16 %v421
        %v880 = vunpack.c.h.b16 %v421
        %v881 = vunpack.c.l.b16 %v422
        %v882 = vunpack.c.h.b16 %v422
        %v883 = vunpack.c.l.b16 %v423
        %v884 = vunpack.c.h.b16 %v423
        %v885 = vunpack.c.l.b16 %v424
        %v886 = vunpack.c.h.b16 %v424
        %v887 = vunpack.c.l.b16 %v425
        %v888 = vunpack.c.h.b16 %v425
        %v889 = vunpack.c.l.b16 %v426
        %v890 = vunpack.c.h.b16 %v426
        %v891 = vunpack.c.l.b16 %v427
        %v892 = vunpack.c.h.b16 %v427
        %v893 = vunpack.c.l.b16 %v428
        %v894 = vunpack.c.h.b16 %v428
        %v895 = vunpack.c.l.b16 %v429
        %v896 = vunpack.c.h.b16 %v429
        %v897 = vunpack.c.l.b16 %v430
        %v898 = vunpack.c.h.b16 %v430
        %v899 = vunpack.c.l.b16 %v431
        %v900 = vunpack.c.h.b16 %v431
        %v901 = vunpack.c.l.b16 %v432
        %v902 = vunpack.c.h.b16 %v432
        %v903 = vunpack.c.l.b16 %v433
        %v904 = vunpack.c.h.b16 %v433
        %v905 = vunpack.c.l.b16 %v434
        %v906 = vunpack.c.h.b16 %v434
        %v907 = vunpack.c.l.b16 %v435
        %v908 = vunpack.c.h.b16 %v435
        %v909 = vunpack.c.l.b16 %v436
        %v910 = vunpack.c.h.b16 %v436
        %v911 = vunpack.c.l.b16 %v437
        %v912 = vunpack.c.h.b16 %v437
        %v913 = vunpack.c.l.b16 %v438
        %v914 = vunpack.c.h.b16 %v438
        %v915 = vunpack.c.l.b16 %v439
        %v916 = vunpack.c.h.b16 %v439
        %v917 = vunpack.c.l.b16 %v440
        %v918 = vunpack.c.h.b16 %v440
        %v919 = vunpack.c.l.b16 %v441
        %v920 = vunpack.c.h.b16 %v441
        %v921 = vunpack.c.l.b16 %v442
        %v922 = vunpack.c.h.b16 %v442
        %v923 = vunpack.c.l.b16 %v443
        %v924 = vunpack.c.h.b16 %v443
        %v925 = vunpack.c.l.b16 %v444
        %v926 = vunpack.c.h.b16 %v444
        %v927 = vunpack.c.l.b16 %v445
        %v928 = vunpack.c.h.b16 %v445
        %v929 = vunpack.c.l.b16 %v446
        %v930 = vunpack.c.h.b16 %v446
        %v931 = vunpack.c.l.b16 %v447
        %v932 = vunpack.c.h.b16 %v447
        %v933 = vunpack.c.l.b16 %v448
        %v934 = vunpack.c.h.b16 %v448
        %v935 = vpack.c.b16 %v625, %v615
        %v936 = vpack.c.b16 %v626, %v616
        %v937 = vpack.c.b16 %v627, %v617
        %v938 = vpack.c.b16 %v628, %v618
        %v939 = vpack.c.b16 %v629, %v619
        %v940 = vpack.c.b16 %v630, %v620
        %v941 = vpack.c.b16 %v631, %v621
        %v942 = vpack.c.b16 %v632, %v622
        %v943 = vpack.c.b16 %v633, %v623
        %v944 = vpack.c.b16 %v634, %v624
        %v945 = vpack.c.b16 %v645, %v635
        %v946 = vpack.c.b16 %v646, %v636
        %v947 = vpack.c.b16 %v647, %v637
        %v948 = vpack.c.b16 %v648, %v638
        %v949 = vpack.c.b16 %v649, %v639
        %v950 = vpack.c.b16 %v650, %v640
        %v951 = vpack.c.b16 %v651, %v641
        %v952 = vpack.c.b16 %v652, %v642
        %v953 = vpack.c.b16 %v653, %v643
        %v954 = vpack.c.b16 %v654, %v644
        %v955 = vpack.c.b16 %v665, %v655
        %v956 = vpack.c.b16 %v666, %v656
        %v957 = vpack.c.b16 %v667, %v657
        %v958 = vpack.c.b16 %v668, %v658
        %v959 = vpack.c.b16 %v669, %v659
        %v960 = vpack.c.b16 %v670, %v660
        %v961 = vpack.c.b16 %v671, %v661
        %v962 = vpack.c.b16 %v672, %v662
        %v963 = vpack.c.b16 %v673, %v663
        %v964 = vpack.c.b16 %v674, %v664
        %v965 = vpack.c.b16 %v685, %v675
        %v966 = vpack.c.b16 %v686, %v676
        %v967 = vpack.c.b16 %v687, %v677
        %v968 = vpack.c.b16 %v688, %v678
        %v969 = vpack.c.b16 %v689, %v679
        %v970 = vpack.c.b16 %v690, %v680
        %v971 = vpack.c.b16 %v691, %v681
        %v972 = vpack.c.b16 %v692, %v682
        %v973 = vpack.c.b16 %v693, %v683
        %v974 = vpack.c.b16 %v694, %v684
        %v975 = vpack.c.b16 %v705, %v695
        %v976 = vpack.c.b16 %v706, %v696
        %v977 = vpack.c.b16 %v707, %v697
        %v978 = vpack.c.b16 %v708, %v698
        %v979 = vpack.c.b16 %v709, %v699
        %v980 = vpack.c.b16 %v710, %v700
        %v981 = vpack.c.b16 %v711, %v701
        %v982 = vpack.c.b16 %v712, %v702
        %v983 = vpack.c.b16 %v713, %v703
        %v984 = vpack.c.b16 %v714, %v704
        %v985 = vpack.c.b16 %v725, %v715
        %v986 = vpack.c.b16 %v726, %v716
        %v987 = vpack.c.b16 %v727, %v717
        %v988 = vpack.c.b16 %v728, %v718
        %v989 = vpack.c.b16 %v729, %v719
        %v990 = vpack.c.b16 %v730, %v720
        %v991 = vpack.c.b16 %v731, %v721
        %v992 = vpack.c.b16 %v732, %v722
        %v993 = vpack.c.b16 %v733, %v723
        %v994 = vpack.c.b16 %v734, %v724
        %v995 = vpack.c.b16 %v745, %v735
        %v996 = vpack.c.b16 %v746, %v736
        %v997 = vpack.c.b16 %v747, %v737
        %v998 = vpack.c.b16 %v748, %v738
        %v999 = vpack.c.b16 %v749, %v739
        %v1000 = vpack.c.b16 %v750, %v740
        %v1001 = vpack.c.b16 %v751, %v741
        %v1002 = vpack.c.b16 %v752, %v742
        %v1003 = vpack.c.b16 %v753, %v743
        %v1004 = vpack.c.b16 %v754, %v744
        %v1005 = vpack.c.b16 %v765, %v755
        %v1006 = vpack.c.b16 %v766, %v756
        %v1007 = vpack.c.b16 %v767, %v757
        %v1008 = vpack.c.b16 %v768, %v758
        %v1009 = vpack.c.b16 %v769, %v759
        %v1010 = vpack.c.b16 %v770, %v760
        %v1011 = vpack.c.b16 %v771, %v761
        %v1012 = vpack.c.b16 %v772, %v762
        %v1013 = vpack.c.b16 %v773, %v763
        %v1014 = vpack.c.b16 %v774, %v764
        %v1015 = vpack.c.b16 %v785, %v775
        %v1016 = vpack.c.b16 %v786, %v776
        %v1017 = vpack.c.b16 %v787, %v777
        %v1018 = vpack.c.b16 %v788, %v778
        %v1019 = vpack.c.b16 %v789, %v779
        %v1020 = vpack.c.b16 %v790, %v780
        %v1021 = vpack.c.b16 %v791, %v781
        %v1022 = vpack.c.b16 %v792, %v782
        %v1023 = vpack.c.b16 %v793, %v783
        %v1024 = vpack.c.b16 %v794, %v784
        %v1025 = vpack.c.b16 %v805, %v795
        %v1026 = vpack.c.b16 %v806, %v796
        %v1027 = vpack.c.b16 %v807, %v797
        %v1028 = vpack.c.b16 %v808, %v798
        %v1029 = vpack.c.b16 %v809, %v799
        %v1030 = vpack.c.b16 %v810, %v800
        %v1031 = vpack.c.b16 %v811, %v801
        %v1032 = vpack.c.b16 %v812, %v802
        %v1033 = vpack.c.b16 %v813, %v803
        %v1034 = vpack.c.b16 %v814, %v804
        %v1035 = vpack.c.b16 %v825, %v815
        %v1036 = vpack.c.b16 %v826, %v816
        %v1037 = vpack.c.b16 %v827, %v817
        %v1038 = vpack.c.b16 %v828, %v818
        %v1039 = vpack.c.b16 %v829, %v819
        %v1040 = vpack.c.b16 %v830, %v820
        %v1041 = vpack.c.b16 %v831, %v821
        %v1042 = vpack.c.b16 %v832, %v822
        %v1043 = vpack.c.b16 %v833, %v823
        %v1044 = vpack.c.b16 %v834, %v824
        %v1045 = vpack.c.b16 %v845, %v835
        %v1046 = vpack.c.b16 %v846, %v836
        %v1047 = vpack.c.b16 %v847, %v837
        %v1048 = vpack.c.b16 %v848, %v838
        %v1049 = vpack.c.b16 %v849, %v839
        %v1050 = vpack.c.b16 %v850, %v840
        %v1051 = vpack.c.b16 %v851, %v841
        %v1052 = vpack.c.b16 %v852, %v842
        %v1053 = vpack.c.b16 %v853, %v843
        %v1054 = vpack.c.b16 %v854, %v844
        %v1055 = vpack.c.b16 %v865, %v855
        %v1056 = vpack.c.b16 %v866, %v856
        %v1057 = vpack.c.b16 %v867, %v857
        %v1058 = vpack.c.b16 %v868, %v858
        %v1059 = vpack.c.b16 %v869, %v859
        %v1060 = vpack.c.b16 %v870, %v860
        %v1061 = vpack.c.b16 %v871, %v861
        %v1062 = vpack.c.b16 %v872, %v862
        %v1063 = vpack.c.b16 %v873, %v863
        %v1064 = vpack.c.b16 %v874, %v864
        %v1065 = vpack.c.b16 %v885, %v875
        %v1066 = vpack.c.b16 %v886, %v876
        %v1067 = vpack.c.b16 %v887, %v877
        %v1068 = vpack.c.b16 %v888, %v878
        %v1069 = vpack.c.b16 %v889, %v879
        %v1070 = vpack.c.b16 %v890, %v880
        %v1071 = vpack.c.b16 %v891, %v881
        %v1072 = vpack.c.b16 %v892, %v882
        %v1073 = vpack.c.b16 %v893, %v883
        %v1074 = vpack.c.b16 %v894, %v884
        %v1075 = vpack.c.b16 %v905, %v895
        %v1076 = vpack.c.b16 %v906, %v896
        %v1077 = vpack.c.b16 %v907, %v897
        %v1078 = vpack.c.b16 %v908, %v898
        %v1079 = vpack.c.b16 %v909, %v899
        %v1080 = vpack.c.b16 %v910, %v900
        %v1081 = vpack.c.b16 %v911, %v901
        %v1082 = vpack.c.b16 %v912, %v902
        %v1083 = vpack.c.b16 %v913, %v903
        %v1084 = vpack.c.b16 %v914, %v904
        %v1085 = vpack.c.b16 %v925, %v915
        %v1086 = vpack.c.b16 %v926, %v916
        %v1087 = vpack.c.b16 %v927, %v917
        %v1088 = vpack.c.b16 %v928, %v918
        %v1089 = vpack.c.b16 %v929, %v919
        %v1090 = vpack.c.b16 %v930, %v920
        %v1091 = vpack.c.b16 %v931, %v921
        %v1092 = vpack.c.b16 %v932, %v922
        %v1093 = vpack.c.b16 %v933, %v923
        %v1094 = vpack.c.b16 %v934, %v924
        %1255 = vmatpush.bf16.msra.mxu0 %v1005
        %1256 = vmatpush.bf16.msra.mxu0 %v995
        %1257 = vmatpush.bf16.msra.mxu0 %v985
        %1258 = vmatpush.bf16.msra.mxu0 %v975
        %1259 = vmatpush.bf16.msra.mxu0 %v965
        %1260 = vmatpush.bf16.msra.mxu0 %v955
        %1261 = vmatpush.bf16.msra.mxu0 %v945
        %1262 = vmatpush.bf16.msra.mxu0 %v935
        %1263 = vmatmul.bf16.gmra.mxu0 %v451
        %v1264 = vpop.f32.mrf.mxu0
        %v1265 = vadd.f32 0.0, %v1264
        %v1266 = vpop.f32.mrf.mxu0
        %1267 = vdwg.mxu0
        %1268 = vmatpush.bf16.msra.mxu0 %v1085
        %1269 = vmatpush.bf16.msra.mxu0 %v1075
        %1270 = vmatpush.bf16.msra.mxu0 %v1065
        %1271 = vmatpush.bf16.msra.mxu0 %v1055
        %1272 = vmatpush.bf16.msra.mxu0 %v1045
        %1273 = vmatpush.bf16.msra.mxu0 %v1035
        %1274 = vmatpush.bf16.msra.mxu0 %v1025
        %1275 = vmatpush.bf16.msra.mxu0 %v1015
        %1276 = vmatmul.bf16.gmra.mxu0 %v452
        %v1277 = vpop.f32.mrf.mxu0
        %v1278 = vadd.f32 %v1265, %v1277
        %v1279 = vpop.f32.mrf.mxu0
        %1280 = vdwg.mxu0
        %1281 = vmatpush.bf16.msra.mxu0 %v1006
        %1282 = vmatpush.bf16.msra.mxu0 %v996
        %1283 = vmatpush.bf16.msra.mxu0 %v986
        %1284 = vmatpush.bf16.msra.mxu0 %v976
        %1285 = vmatpush.bf16.msra.mxu0 %v966
        %1286 = vmatpush.bf16.msra.mxu0 %v956
        %1287 = vmatpush.bf16.msra.mxu0 %v946
        %1288 = vmatpush.bf16.msra.mxu0 %v936
        %1289 = vmatmul.bf16.gmra.mxu0 %v451
        %v1290 = vpop.f32.mrf.mxu0
        %v1291 = vadd.f32 0.0, %v1290
        %v1292 = vpop.f32.mrf.mxu0
        %1293 = vdwg.mxu0
        %1294 = vmatpush.bf16.msra.mxu0 %v1086
        %1295 = vmatpush.bf16.msra.mxu0 %v1076
        %1296 = vmatpush.bf16.msra.mxu0 %v1066
        %1297 = vmatpush.bf16.msra.mxu0 %v1056
        %1298 = vmatpush.bf16.msra.mxu0 %v1046
        %1299 = vmatpush.bf16.msra.mxu0 %v1036
        %1300 = vmatpush.bf16.msra.mxu0 %v1026
        %1301 = vmatpush.bf16.msra.mxu0 %v1016
        %1302 = vmatmul.bf16.gmra.mxu0 %v452
        %v1303 = vpop.f32.mrf.mxu0
        %v1304 = vadd.f32 %v1291, %v1303
        %v1305 = vpop.f32.mrf.mxu0
        %1306 = vdwg.mxu0
        %1307 = vmatpush.bf16.msra.mxu0 %v1007
        %1308 = vmatpush.bf16.msra.mxu0 %v997
        %1309 = vmatpush.bf16.msra.mxu0 %v987
        %1310 = vmatpush.bf16.msra.mxu0 %v977
        %1311 = vmatpush.bf16.msra.mxu0 %v967
        %1312 = vmatpush.bf16.msra.mxu0 %v957
        %1313 = vmatpush.bf16.msra.mxu0 %v947
        %1314 = vmatpush.bf16.msra.mxu0 %v937
        %1315 = vmatmul.bf16.gmra.mxu0 %v451
        %v1316 = vpop.f32.mrf.mxu0
        %v1317 = vadd.f32 0.0, %v1316
        %v1318 = vpop.f32.mrf.mxu0
        %1319 = vdwg.mxu0
        %1320 = vmatpush.bf16.msra.mxu0 %v1087
        %1321 = vmatpush.bf16.msra.mxu0 %v1077
        %1322 = vmatpush.bf16.msra.mxu0 %v1067
        %1323 = vmatpush.bf16.msra.mxu0 %v1057
        %1324 = vmatpush.bf16.msra.mxu0 %v1047
        %1325 = vmatpush.bf16.msra.mxu0 %v1037
        %1326 = vmatpush.bf16.msra.mxu0 %v1027
        %1327 = vmatpush.bf16.msra.mxu0 %v1017
        %1328 = vmatmul.bf16.gmra.mxu0 %v452
        %v1329 = vpop.f32.mrf.mxu0
        %v1330 = vadd.f32 %v1317, %v1329
        %v1331 = vpop.f32.mrf.mxu0
        %1332 = vdwg.mxu0
        %1333 = vmatpush.bf16.msra.mxu0 %v1008
        %1334 = vmatpush.bf16.msra.mxu0 %v998
        %1335 = vmatpush.bf16.msra.mxu0 %v988
        %1336 = vmatpush.bf16.msra.mxu0 %v978
        %1337 = vmatpush.bf16.msra.mxu0 %v968
        %1338 = vmatpush.bf16.msra.mxu0 %v958
        %1339 = vmatpush.bf16.msra.mxu0 %v948
        %1340 = vmatpush.bf16.msra.mxu0 %v938
        %1341 = vmatmul.bf16.gmra.mxu0 %v451
        %v1342 = vpop.f32.mrf.mxu0
        %v1343 = vadd.f32 0.0, %v1342
        %v1344 = vpop.f32.mrf.mxu0
        %1345 = vdwg.mxu0
        %1346 = vmatpush.bf16.msra.mxu0 %v1088
        %1347 = vmatpush.bf16.msra.mxu0 %v1078
        %1348 = vmatpush.bf16.msra.mxu0 %v1068
        %1349 = vmatpush.bf16.msra.mxu0 %v1058
        %1350 = vmatpush.bf16.msra.mxu0 %v1048
        %1351 = vmatpush.bf16.msra.mxu0 %v1038
        %1352 = vmatpush.bf16.msra.mxu0 %v1028
        %1353 = vmatpush.bf16.msra.mxu0 %v1018
        %1354 = vmatmul.bf16.gmra.mxu0 %v452
        %v1355 = vpop.f32.mrf.mxu0
        %v1356 = vadd.f32 %v1343, %v1355
        %v1357 = vpop.f32.mrf.mxu0
        %1358 = vdwg.mxu0
        %1359 = vmatpush.bf16.msra.mxu0 %v1009
        %1360 = vmatpush.bf16.msra.mxu0 %v999
        %1361 = vmatpush.bf16.msra.mxu0 %v989
        %1362 = vmatpush.bf16.msra.mxu0 %v979
        %1363 = vmatpush.bf16.msra.mxu0 %v969
        %1364 = vmatpush.bf16.msra.mxu0 %v959
        %1365 = vmatpush.bf16.msra.mxu0 %v949
        %1366 = vmatpush.bf16.msra.mxu0 %v939
        %1367 = vmatmul.bf16.gmra.mxu0 %v451
        %v1368 = vpop.f32.mrf.mxu0
        %v1369 = vadd.f32 0.0, %v1368
        %v1370 = vpop.f32.mrf.mxu0
        %1371 = vdwg.mxu0
        %1372 = vmatpush.bf16.msra.mxu0 %v1089
        %1373 = vmatpush.bf16.msra.mxu0 %v1079
        %1374 = vmatpush.bf16.msra.mxu0 %v1069
        %1375 = vmatpush.bf16.msra.mxu0 %v1059
        %1376 = vmatpush.bf16.msra.mxu0 %v1049
        %1377 = vmatpush.bf16.msra.mxu0 %v1039
        %1378 = vmatpush.bf16.msra.mxu0 %v1029
        %1379 = vmatpush.bf16.msra.mxu0 %v1019
        %1380 = vmatmul.bf16.gmra.mxu0 %v452
        %v1381 = vpop.f32.mrf.mxu0
        %v1382 = vadd.f32 %v1369, %v1381
        %v1383 = vpop.f32.mrf.mxu0
        %1384 = vdwg.mxu0
        %1385 = vmatpush.bf16.msra.mxu0 %v1010
        %1386 = vmatpush.bf16.msra.mxu0 %v1000
        %1387 = vmatpush.bf16.msra.mxu0 %v990
        %1388 = vmatpush.bf16.msra.mxu0 %v980
        %1389 = vmatpush.bf16.msra.mxu0 %v970
        %1390 = vmatpush.bf16.msra.mxu0 %v960
        %1391 = vmatpush.bf16.msra.mxu0 %v950
        %1392 = vmatpush.bf16.msra.mxu0 %v940
        %1393 = vmatmul.bf16.gmra.mxu0 %v451
        %v1394 = vpop.f32.mrf.mxu0
        %v1395 = vadd.f32 0.0, %v1394
        %v1396 = vpop.f32.mrf.mxu0
        %1397 = vdwg.mxu0
        %1398 = vmatpush.bf16.msra.mxu0 %v1090
        %1399 = vmatpush.bf16.msra.mxu0 %v1080
        %1400 = vmatpush.bf16.msra.mxu0 %v1070
        %1401 = vmatpush.bf16.msra.mxu0 %v1060
        %1402 = vmatpush.bf16.msra.mxu0 %v1050
        %1403 = vmatpush.bf16.msra.mxu0 %v1040
        %1404 = vmatpush.bf16.msra.mxu0 %v1030
        %1405 = vmatpush.bf16.msra.mxu0 %v1020
        %1406 = vmatmul.bf16.gmra.mxu0 %v452
        %v1407 = vpop.f32.mrf.mxu0
        %v1408 = vadd.f32 %v1395, %v1407
        %v1409 = vpop.f32.mrf.mxu0
        %1410 = vdwg.mxu0
        %1411 = vmatpush.bf16.msra.mxu0 %v1011
        %1412 = vmatpush.bf16.msra.mxu0 %v1001
        %1413 = vmatpush.bf16.msra.mxu0 %v991
        %1414 = vmatpush.bf16.msra.mxu0 %v981
        %1415 = vmatpush.bf16.msra.mxu0 %v971
        %1416 = vmatpush.bf16.msra.mxu0 %v961
        %1417 = vmatpush.bf16.msra.mxu0 %v951
        %1418 = vmatpush.bf16.msra.mxu0 %v941
        %1419 = vmatmul.bf16.gmra.mxu0 %v451
        %v1420 = vpop.f32.mrf.mxu0
        %v1421 = vadd.f32 0.0, %v1420
        %v1422 = vpop.f32.mrf.mxu0
        %1423 = vdwg.mxu0
        %1424 = vmatpush.bf16.msra.mxu0 %v1091
        %1425 = vmatpush.bf16.msra.mxu0 %v1081
        %1426 = vmatpush.bf16.msra.mxu0 %v1071
        %1427 = vmatpush.bf16.msra.mxu0 %v1061
        %1428 = vmatpush.bf16.msra.mxu0 %v1051
        %1429 = vmatpush.bf16.msra.mxu0 %v1041
        %1430 = vmatpush.bf16.msra.mxu0 %v1031
        %1431 = vmatpush.bf16.msra.mxu0 %v1021
        %1432 = vmatmul.bf16.gmra.mxu0 %v452
        %v1433 = vpop.f32.mrf.mxu0
        %v1434 = vadd.f32 %v1421, %v1433
        %v1435 = vpop.f32.mrf.mxu0
        %1436 = vdwg.mxu0
        %1437 = vmatpush.bf16.msra.mxu0 %v1012
        %1438 = vmatpush.bf16.msra.mxu0 %v1002
        %1439 = vmatpush.bf16.msra.mxu0 %v992
        %1440 = vmatpush.bf16.msra.mxu0 %v982
        %1441 = vmatpush.bf16.msra.mxu0 %v972
        %1442 = vmatpush.bf16.msra.mxu0 %v962
        %1443 = vmatpush.bf16.msra.mxu0 %v952
        %1444 = vmatpush.bf16.msra.mxu0 %v942
        %1445 = vmatmul.bf16.gmra.mxu0 %v451
        %v1446 = vpop.f32.mrf.mxu0
        %v1447 = vadd.f32 0.0, %v1446
        %v1448 = vpop.f32.mrf.mxu0
        %1449 = vdwg.mxu0
        %1450 = vmatpush.bf16.msra.mxu0 %v1092
        %1451 = vmatpush.bf16.msra.mxu0 %v1082
        %1452 = vmatpush.bf16.msra.mxu0 %v1072
        %1453 = vmatpush.bf16.msra.mxu0 %v1062
        %1454 = vmatpush.bf16.msra.mxu0 %v1052
        %1455 = vmatpush.bf16.msra.mxu0 %v1042
        %1456 = vmatpush.bf16.msra.mxu0 %v1032
        %1457 = vmatpush.bf16.msra.mxu0 %v1022
        %1458 = vmatmul.bf16.gmra.mxu0 %v452
        %v1459 = vpop.f32.mrf.mxu0
        %v1460 = vadd.f32 %v1447, %v1459
        %v1461 = vpop.f32.mrf.mxu0
        %1462 = vdwg.mxu0
        %1463 = vmatpush.bf16.msra.mxu0 %v1013
        %1464 = vmatpush.bf16.msra.mxu0 %v1003
        %1465 = vmatpush.bf16.msra.mxu0 %v993
        %1466 = vmatpush.bf16.msra.mxu0 %v983
        %1467 = vmatpush.bf16.msra.mxu0 %v973
        %1468 = vmatpush.bf16.msra.mxu0 %v963
        %1469 = vmatpush.bf16.msra.mxu0 %v953
        %1470 = vmatpush.bf16.msra.mxu0 %v943
        %1471 = vmatmul.bf16.gmra.mxu0 %v451
        %v1472 = vpop.f32.mrf.mxu0
        %v1473 = vadd.f32 0.0, %v1472
        %v1474 = vpop.f32.mrf.mxu0
        %1475 = vdwg.mxu0
        %1476 = vmatpush.bf16.msra.mxu0 %v1093
        %1477 = vmatpush.bf16.msra.mxu0 %v1083
        %1478 = vmatpush.bf16.msra.mxu0 %v1073
        %1479 = vmatpush.bf16.msra.mxu0 %v1063
        %1480 = vmatpush.bf16.msra.mxu0 %v1053
        %1481 = vmatpush.bf16.msra.mxu0 %v1043
        %1482 = vmatpush.bf16.msra.mxu0 %v1033
        %1483 = vmatpush.bf16.msra.mxu0 %v1023
        %1484 = vmatmul.bf16.gmra.mxu0 %v452
        %v1485 = vpop.f32.mrf.mxu0
        %v1486 = vadd.f32 %v1473, %v1485
        %v1487 = vpop.f32.mrf.mxu0
        %1488 = vdwg.mxu0
        %1489 = vmatpush.bf16.msra.mxu0 %v1014
        %1490 = vmatpush.bf16.msra.mxu0 %v1004
        %1491 = vmatpush.bf16.msra.mxu0 %v994
        %1492 = vmatpush.bf16.msra.mxu0 %v984
        %1493 = vmatpush.bf16.msra.mxu0 %v974
        %1494 = vmatpush.bf16.msra.mxu0 %v964
        %1495 = vmatpush.bf16.msra.mxu0 %v954
        %1496 = vmatpush.bf16.msra.mxu0 %v944
        %1497 = vmatmul.bf16.gmra.mxu0 %v451
        %v1498 = vpop.f32.mrf.mxu0
        %v1499 = vadd.f32 0.0, %v1498
        %v1500 = vpop.f32.mrf.mxu0
        %1501 = vdwg.mxu0
        %1502 = vmatpush.bf16.msra.mxu0 %v1094
        %1503 = vmatpush.bf16.msra.mxu0 %v1084
        %1504 = vmatpush.bf16.msra.mxu0 %v1074
        %1505 = vmatpush.bf16.msra.mxu0 %v1064
        %1506 = vmatpush.bf16.msra.mxu0 %v1054
        %1507 = vmatpush.bf16.msra.mxu0 %v1044
        %1508 = vmatpush.bf16.msra.mxu0 %v1034
        %1509 = vmatpush.bf16.msra.mxu0 %v1024
        %1510 = vmatmul.bf16.gmra.mxu0 %v452
        %v1511 = vpop.f32.mrf.mxu0
        %v1512 = vadd.f32 %v1499, %v1511
        %v1513 = vpop.f32.mrf.mxu0
        %1514 = vdwg.mxu0
        %v1515 = vpack.c.bf16 %v1304, %v1278
        %v1516 = vpack.c.bf16 %v1356, %v1330
        %v1517 = vpack.c.bf16 %v1408, %v1382
        %v1518 = vpack.c.bf16 %v1460, %v1434
        %v1519 = vpack.c.bf16 %v1512, %v1486
        %v1525 = vunpack.c.l.b16 %v1515
        %v1526 = vunpack.c.h.b16 %v1515
        %v1527 = vunpack.c.l.b16 %v1516
        %v1528 = vunpack.c.h.b16 %v1516
        %v1529 = vunpack.c.l.b16 %v1517
        %v1530 = vunpack.c.h.b16 %v1517
        %v1531 = vunpack.c.l.b16 %v1518
        %v1532 = vunpack.c.h.b16 %v1518
        %v1533 = vunpack.c.l.b16 %v1519
        %v1534 = vpack.c.b16 %v1525, %v1525
        %v1535 = vpack.c.b16 %v1526, %v1526
        %v1536 = vpack.c.b16 %v1527, %v1527
        %v1537 = vpack.c.b16 %v1528, %v1528
        %v1538 = vpack.c.b16 %v1529, %v1529
        %v1539 = vpack.c.b16 %v1530, %v1530
        %v1540 = vpack.c.b16 %v1531, %v1531
        %v1541 = vpack.c.b16 %v1532, %v1532
        %v1542 = vpack.c.b16 %v1533, %v1533
        %v1543 = vrot.slane %v1534, 6
        %v1544 = vrot.slane %v1535, 6
        %v1545 = vrot.slane %v1536, 6
        %v1546 = vrot.slane %v1537, 6
        %v1547 = vrot.slane %v1538, 6
        %v1548 = vrot.slane %v1539, 6
        %v1549 = vrot.slane %v1540, 6
        %v1550 = vrot.slane %v1541, 6
        %v1551 = vrot.slane %v1542, 6
        %1552 = vrot.lane.b32.xlu0 %v1543, 127
        %v1553 = vpop.permute.xlu0 %1552
        %1554 = vrot.lane.b32.xlu0 %v1544, 127
        %v1555 = vpop.permute.xlu0 %1554
        %1556 = vrot.lane.b32.xlu0 %v1545, 127
        %v1557 = vpop.permute.xlu0 %1556
        %1558 = vrot.lane.b32.xlu0 %v1546, 127
        %v1559 = vpop.permute.xlu0 %1558
        %1560 = vrot.lane.b32.xlu0 %v1547, 127
        %v1561 = vpop.permute.xlu0 %1560
        %1562 = vrot.lane.b32.xlu0 %v1548, 127
        %v1563 = vpop.permute.xlu0 %1562
        %1564 = vrot.lane.b32.xlu0 %v1549, 127
        %v1565 = vpop.permute.xlu0 %1564
        %1566 = vrot.lane.b32.xlu0 %v1550, 127
        %v1567 = vpop.permute.xlu0 %1566
        %1568 = vrot.lane.b32.xlu0 %v1551, 127
        %v1569 = vpop.permute.xlu0 %1568
        %vm1570 = vcmask 1039360
        %v1571 = vsel %vm1570, %v1553, %v1555
        %v1572 = vsel %vm1570, %v1555, %v1557
        %v1573 = vsel %vm1570, %v1557, %v1559
        %v1574 = vsel %vm1570, %v1559, %v1561
        %v1575 = vsel %vm1570, %v1561, %v1563
        %v1576 = vsel %vm1570, %v1563, %v1565
        %v1577 = vsel %vm1570, %v1565, %v1567
        %v1578 = vsel %vm1570, %v1567, %v1569
        %1579 = vrot.lane.b32.xlu0 %v1534, 126
        %v1580 = vpop.permute.xlu0 %1579
        %1581 = vrot.lane.b32.xlu0 %v1535, 126
        %v1582 = vpop.permute.xlu0 %1581
        %1583 = vrot.lane.b32.xlu0 %v1536, 126
        %v1584 = vpop.permute.xlu0 %1583
        %1585 = vrot.lane.b32.xlu0 %v1537, 126
        %v1586 = vpop.permute.xlu0 %1585
        %1587 = vrot.lane.b32.xlu0 %v1538, 126
        %v1588 = vpop.permute.xlu0 %1587
        %1589 = vrot.lane.b32.xlu0 %v1539, 126
        %v1590 = vpop.permute.xlu0 %1589
        %1591 = vrot.lane.b32.xlu0 %v1540, 126
        %v1592 = vpop.permute.xlu0 %1591
        %1593 = vrot.lane.b32.xlu0 %v1541, 126
        %v1594 = vpop.permute.xlu0 %1593
        %1595 = vrot.lane.b32.xlu0 %v1542, 126
        %v1596 = vpop.permute.xlu0 %1595
        %vm1597 = vcmask 1031168
        %v1598 = vsel %vm1597, %v1580, %v1582
        %v1599 = vsel %vm1597, %v1582, %v1584
        %v1600 = vsel %vm1597, %v1584, %v1586
        %v1601 = vsel %vm1597, %v1586, %v1588
        %v1602 = vsel %vm1597, %v1588, %v1590
        %v1603 = vsel %vm1597, %v1590, %v1592
        %v1604 = vsel %vm1597, %v1592, %v1594
        %v1605 = vsel %vm1597, %v1594, %v1596
        %v1606 = vrot.slane %v1534, 2
        %v1607 = vrot.slane %v1535, 2
        %v1608 = vrot.slane %v1536, 2
        %v1609 = vrot.slane %v1537, 2
        %v1610 = vrot.slane %v1538, 2
        %v1611 = vrot.slane %v1539, 2
        %v1612 = vrot.slane %v1540, 2
        %v1613 = vrot.slane %v1541, 2
        %v1614 = vrot.slane %v1542, 2
        %1615 = vrot.lane.b32.xlu0 %v1606, 94
        %v1616 = vpop.permute.xlu0 %1615
        %1617 = vrot.lane.b32.xlu0 %v1607, 94
        %v1618 = vpop.permute.xlu0 %1617
        %1619 = vrot.lane.b32.xlu0 %v1608, 94
        %v1620 = vpop.permute.xlu0 %1619
        %1621 = vrot.lane.b32.xlu0 %v1609, 94
        %v1622 = vpop.permute.xlu0 %1621
        %1623 = vrot.lane.b32.xlu0 %v1610, 94
        %v1624 = vpop.permute.xlu0 %1623
        %1625 = vrot.lane.b32.xlu0 %v1611, 94
        %v1626 = vpop.permute.xlu0 %1625
        %1627 = vrot.lane.b32.xlu0 %v1612, 94
        %v1628 = vpop.permute.xlu0 %1627
        %1629 = vrot.lane.b32.xlu0 %v1613, 94
        %v1630 = vpop.permute.xlu0 %1629
        %1631 = vrot.lane.b32.xlu0 %v1614, 94
        %v1632 = vpop.permute.xlu0 %1631
        %vm1633 = vcmask 769024
        %v1634 = vsel %vm1633, %v1616, %v1618
        %v1635 = vsel %vm1633, %v1618, %v1620
        %v1636 = vsel %vm1633, %v1620, %v1622
        %v1637 = vsel %vm1633, %v1622, %v1624
        %v1638 = vsel %vm1633, %v1624, %v1626
        %v1639 = vsel %vm1633, %v1626, %v1628
        %v1640 = vsel %vm1633, %v1628, %v1630
        %v1641 = vsel %vm1633, %v1630, %v1632
        %1642 = vrot.lane.b32.xlu0 %v1534, 93
        %v1643 = vpop.permute.xlu0 %1642
        %1644 = vrot.lane.b32.xlu0 %v1535, 93
        %v1645 = vpop.permute.xlu0 %1644
        %1646 = vrot.lane.b32.xlu0 %v1536, 93
        %v1647 = vpop.permute.xlu0 %1646
        %1648 = vrot.lane.b32.xlu0 %v1537, 93
        %v1649 = vpop.permute.xlu0 %1648
        %1650 = vrot.lane.b32.xlu0 %v1538, 93
        %v1651 = vpop.permute.xlu0 %1650
        %1652 = vrot.lane.b32.xlu0 %v1539, 93
        %v1653 = vpop.permute.xlu0 %1652
        %1654 = vrot.lane.b32.xlu0 %v1540, 93
        %v1655 = vpop.permute.xlu0 %1654
        %1656 = vrot.lane.b32.xlu0 %v1541, 93
        %v1657 = vpop.permute.xlu0 %1656
        %1658 = vrot.lane.b32.xlu0 %v1542, 93
        %v1659 = vpop.permute.xlu0 %1658
        %vm1660 = vcmask 760832
        %v1661 = vsel %vm1660, %v1643, %v1645
        %v1662 = vsel %vm1660, %v1645, %v1647
        %v1663 = vsel %vm1660, %v1647, %v1649
        %v1664 = vsel %vm1660, %v1649, %v1651
        %v1665 = vsel %vm1660, %v1651, %v1653
        %v1666 = vsel %vm1660, %v1653, %v1655
        %v1667 = vsel %vm1660, %v1655, %v1657
        %v1668 = vsel %vm1660, %v1657, %v1659
        %1669 = vrot.lane.b32.xlu0 %v1543, 92
        %v1670 = vpop.permute.xlu0 %1669
        %1671 = vrot.lane.b32.xlu0 %v1544, 92
        %v1672 = vpop.permute.xlu0 %1671
        %1673 = vrot.lane.b32.xlu0 %v1545, 92
        %v1674 = vpop.permute.xlu0 %1673
        %1675 = vrot.lane.b32.xlu0 %v1546, 92
        %v1676 = vpop.permute.xlu0 %1675
        %1677 = vrot.lane.b32.xlu0 %v1547, 92
        %v1678 = vpop.permute.xlu0 %1677
        %1679 = vrot.lane.b32.xlu0 %v1548, 92
        %v1680 = vpop.permute.xlu0 %1679
        %1681 = vrot.lane.b32.xlu0 %v1549, 92
        %v1682 = vpop.permute.xlu0 %1681
        %1683 = vrot.lane.b32.xlu0 %v1550, 92
        %v1684 = vpop.permute.xlu0 %1683
        %1685 = vrot.lane.b32.xlu0 %v1551, 92
        %v1686 = vpop.permute.xlu0 %1685
        %vm1687 = vcmask 752640
        %v1688 = vsel %vm1687, %v1670, %v1672
        %v1689 = vsel %vm1687, %v1672, %v1674
        %v1690 = vsel %vm1687, %v1674, %v1676
        %v1691 = vsel %vm1687, %v1676, %v1678
        %v1692 = vsel %vm1687, %v1678, %v1680
        %v1693 = vsel %vm1687, %v1680, %v1682
        %v1694 = vsel %vm1687, %v1682, %v1684
        %v1695 = vsel %vm1687, %v1684, %v1686
        %v1696 = vunpack.c.h.b16 %v1519
        %v1697 = vpack.c.b16 %v1696, %v1696
        %1698 = vrot.lane.b32.xlu0 %v1534, 60
        %v1699 = vpop.permute.xlu0 %1698
        %1700 = vrot.lane.b32.xlu0 %v1535, 60
        %v1701 = vpop.permute.xlu0 %1700
        %1702 = vrot.lane.b32.xlu0 %v1536, 60
        %v1703 = vpop.permute.xlu0 %1702
        %1704 = vrot.lane.b32.xlu0 %v1537, 60
        %v1705 = vpop.permute.xlu0 %1704
        %1706 = vrot.lane.b32.xlu0 %v1538, 60
        %v1707 = vpop.permute.xlu0 %1706
        %1708 = vrot.lane.b32.xlu0 %v1539, 60
        %v1709 = vpop.permute.xlu0 %1708
        %1710 = vrot.lane.b32.xlu0 %v1540, 60
        %v1711 = vpop.permute.xlu0 %1710
        %1712 = vrot.lane.b32.xlu0 %v1541, 60
        %v1713 = vpop.permute.xlu0 %1712
        %1714 = vrot.lane.b32.xlu0 %v1542, 60
        %v1715 = vpop.permute.xlu0 %1714
        %1716 = vrot.lane.b32.xlu0 %v1697, 60
        %v1717 = vpop.permute.xlu0 %1716
        %vm1718 = vcmask 490496
        %v1719 = vsel %vm1718, %v1699, %v1701
        %v1720 = vsel %vm1718, %v1701, %v1703
        %v1721 = vsel %vm1718, %v1703, %v1705
        %v1722 = vsel %vm1718, %v1705, %v1707
        %v1723 = vsel %vm1718, %v1707, %v1709
        %v1724 = vsel %vm1718, %v1709, %v1711
        %v1725 = vsel %vm1718, %v1711, %v1713
        %v1726 = vsel %vm1718, %v1713, %v1715
        %v1727 = vsel %vm1718, %v1715, %v1717
        %v1728 = vrot.slane %v1697, 2
        %1729 = vrot.lane.b32.xlu0 %v1606, 59
        %v1730 = vpop.permute.xlu0 %1729
        %1731 = vrot.lane.b32.xlu0 %v1607, 59
        %v1732 = vpop.permute.xlu0 %1731
        %1733 = vrot.lane.b32.xlu0 %v1608, 59
        %v1734 = vpop.permute.xlu0 %1733
        %1735 = vrot.lane.b32.xlu0 %v1609, 59
        %v1736 = vpop.permute.xlu0 %1735
        %1737 = vrot.lane.b32.xlu0 %v1610, 59
        %v1738 = vpop.permute.xlu0 %1737
        %1739 = vrot.lane.b32.xlu0 %v1611, 59
        %v1740 = vpop.permute.xlu0 %1739
        %1741 = vrot.lane.b32.xlu0 %v1612, 59
        %v1742 = vpop.permute.xlu0 %1741
        %1743 = vrot.lane.b32.xlu0 %v1613, 59
        %v1744 = vpop.permute.xlu0 %1743
        %1745 = vrot.lane.b32.xlu0 %v1614, 59
        %v1746 = vpop.permute.xlu0 %1745
        %1747 = vrot.lane.b32.xlu0 %v1728, 59
        %v1748 = vpop.permute.xlu0 %1747
        %vm1749 = vcmask 482304
        %v1750 = vsel %vm1749, %v1730, %v1732
        %v1751 = vsel %vm1749, %v1732, %v1734
        %v1752 = vsel %vm1749, %v1734, %v1736
        %v1753 = vsel %vm1749, %v1736, %v1738
        %v1754 = vsel %vm1749, %v1738, %v1740
        %v1755 = vsel %vm1749, %v1740, %v1742
        %v1756 = vsel %vm1749, %v1742, %v1744
        %v1757 = vsel %vm1749, %v1744, %v1746
        %v1758 = vsel %vm1749, %v1746, %v1748
        %1759 = vrot.lane.b32.xlu0 %v1534, 58
        %v1760 = vpop.permute.xlu0 %1759
        %1761 = vrot.lane.b32.xlu0 %v1535, 58
        %v1762 = vpop.permute.xlu0 %1761
        %1763 = vrot.lane.b32.xlu0 %v1536, 58
        %v1764 = vpop.permute.xlu0 %1763
        %1765 = vrot.lane.b32.xlu0 %v1537, 58
        %v1766 = vpop.permute.xlu0 %1765
        %1767 = vrot.lane.b32.xlu0 %v1538, 58
        %v1768 = vpop.permute.xlu0 %1767
        %1769 = vrot.lane.b32.xlu0 %v1539, 58
        %v1770 = vpop.permute.xlu0 %1769
        %1771 = vrot.lane.b32.xlu0 %v1540, 58
        %v1772 = vpop.permute.xlu0 %1771
        %1773 = vrot.lane.b32.xlu0 %v1541, 58
        %v1774 = vpop.permute.xlu0 %1773
        %1775 = vrot.lane.b32.xlu0 %v1542, 58
        %v1776 = vpop.permute.xlu0 %1775
        %1777 = vrot.lane.b32.xlu0 %v1697, 58
        %v1778 = vpop.permute.xlu0 %1777
        %vm1779 = vcmask 474112
        %v1780 = vsel %vm1779, %v1760, %v1762
        %v1781 = vsel %vm1779, %v1762, %v1764
        %v1782 = vsel %vm1779, %v1764, %v1766
        %v1783 = vsel %vm1779, %v1766, %v1768
        %v1784 = vsel %vm1779, %v1768, %v1770
        %v1785 = vsel %vm1779, %v1770, %v1772
        %v1786 = vsel %vm1779, %v1772, %v1774
        %v1787 = vsel %vm1779, %v1774, %v1776
        %v1788 = vsel %vm1779, %v1776, %v1778
        %vm1789 = vcmask 1041408
        %v1792 = vsel %vm1789, %v1534, %v1571
        %v1795 = vsel %vm1789, %v1535, %v1572
        %v1798 = vsel %vm1789, %v1536, %v1573
        %v1801 = vsel %vm1789, %v1537, %v1574
        %v1804 = vsel %vm1789, %v1538, %v1575
        %v1807 = vsel %vm1789, %v1539, %v1576
        %v1810 = vsel %vm1789, %v1540, %v1577
        %v1813 = vsel %vm1789, %v1541, %v1578
        %v1816 = vsel %vm1789, %v1542, %v1569
        %vm1817 = vcmask 1043456
        %v1819 = vsel %vm1817, %v1792, %v1598
        %v1821 = vsel %vm1817, %v1795, %v1599
        %v1823 = vsel %vm1817, %v1798, %v1600
        %v1825 = vsel %vm1817, %v1801, %v1601
        %v1827 = vsel %vm1817, %v1804, %v1602
        %v1829 = vsel %vm1817, %v1807, %v1603
        %v1831 = vsel %vm1817, %v1810, %v1604
        %v1833 = vsel %vm1817, %v1813, %v1605
        %v1835 = vsel %vm1817, %v1816, %v1596
        %vm1836 = vcmask 1045504
        %v1838 = vsel %vm1836, %v1819, %v1634
        %v1841 = vsel %vm1836, %v1821, %v1635
        %v1844 = vsel %vm1836, %v1823, %v1636
        %v1847 = vsel %vm1836, %v1825, %v1637
        %v1850 = vsel %vm1836, %v1827, %v1638
        %v1853 = vsel %vm1836, %v1829, %v1639
        %v1856 = vsel %vm1836, %v1831, %v1640
        %v1859 = vsel %vm1836, %v1833, %v1641
        %v1862 = vsel %vm1836, %v1835, %v1632
        %v1866 = vsel %vm1789, %v1661, %v1688
        %v1869 = vsel %vm1789, %v1662, %v1689
        %v1872 = vsel %vm1789, %v1663, %v1690
        %v1875 = vsel %vm1789, %v1664, %v1691
        %v1878 = vsel %vm1789, %v1665, %v1692
        %v1881 = vsel %vm1789, %v1666, %v1693
        %v1884 = vsel %vm1789, %v1667, %v1694
        %v1887 = vsel %vm1789, %v1668, %v1695
        %v1890 = vsel %vm1789, %v1659, %v1686
        %v1892 = vsel %vm1817, %v1866, %v1719
        %v1894 = vsel %vm1817, %v1869, %v1720
        %v1896 = vsel %vm1817, %v1872, %v1721
        %v1898 = vsel %vm1817, %v1875, %v1722
        %v1900 = vsel %vm1817, %v1878, %v1723
        %v1902 = vsel %vm1817, %v1881, %v1724
        %v1904 = vsel %vm1817, %v1884, %v1725
        %v1906 = vsel %vm1817, %v1887, %v1726
        %v1908 = vsel %vm1817, %v1890, %v1727
        %v1910 = vsel %vm1836, %v1892, %v1750
        %v1913 = vsel %vm1836, %v1894, %v1751
        %v1916 = vsel %vm1836, %v1896, %v1752
        %v1919 = vsel %vm1836, %v1898, %v1753
        %v1922 = vsel %vm1836, %v1900, %v1754
        %v1925 = vsel %vm1836, %v1902, %v1755
        %v1928 = vsel %vm1836, %v1904, %v1756
        %v1931 = vsel %vm1836, %v1906, %v1757
        %v1934 = vsel %vm1836, %v1908, %v1758
        %v1936 = vld [vmem:[%s273] sm:$0xf]
        %v1937 = vld [vmem:[%s277] sm:$0xff]
        %1939 = vset.pattern.permute.xlu0 0
        %1940 = vperm.xlu0 %1939, %v1937
        %v1941 = vpop.permute.xlu0 %1940
        %vm1943 = vcmask 293888
        %v1945 = vsel %vm1943, %v1936, 0
        %v1948 = vsel %vm1789, %v1780, 0
        %v1951 = vsel %vm1789, %v1781, 0
        %v1954 = vsel %vm1789, %v1782, 0
        %v1957 = vsel %vm1789, %v1783, 0
        %v1960 = vsel %vm1789, %v1784, 0
        %v1963 = vsel %vm1789, %v1785, 0
        %v1966 = vsel %vm1789, %v1786, 0
        %v1969 = vsel %vm1789, %v1787, 0
        %v1972 = vsel %vm1789, %v1788, 0
        %1974 = vmatpush.bf16.msra.mxu0 0
        %1975 = vmatpush.bf16.msra.mxu0 0
        %1976 = vmatpush.bf16.msra.mxu0 0
        %1977 = vmatpush.bf16.msra.mxu0 0
        %1978 = vmatpush.bf16.msra.mxu0 0
        %1979 = vmatpush.bf16.msra.mxu0 %v1948
        %1980 = vmatpush.bf16.msra.mxu0 %v1910
        %1981 = vmatpush.bf16.msra.mxu0 %v1838
        %1982 = vmatmul.bf16.gmra.mxu0 %v1945
        %v1983 = vpop.f32.mrf.mxu0
        %v1984 = vadd.f32 %v1941, %v1983
        %v1985 = vpop.f32.mrf.mxu0
        %1986 = vdwg.mxu0
        %1987 = vmatpush.bf16.msra.mxu0 0
        %1988 = vmatpush.bf16.msra.mxu0 0
        %1989 = vmatpush.bf16.msra.mxu0 0
        %1990 = vmatpush.bf16.msra.mxu0 0
        %1991 = vmatpush.bf16.msra.mxu0 0
        %1992 = vmatpush.bf16.msra.mxu0 %v1951
        %1993 = vmatpush.bf16.msra.mxu0 %v1913
        %1994 = vmatpush.bf16.msra.mxu0 %v1841
        %1995 = vmatmul.bf16.gmra.mxu0 %v1945
        %v1996 = vpop.f32.mrf.mxu0
        %v1997 = vadd.f32 %v1941, %v1996
        %v1998 = vpop.f32.mrf.mxu0
        %1999 = vdwg.mxu0
        %2000 = vmatpush.bf16.msra.mxu0 0
        %2001 = vmatpush.bf16.msra.mxu0 0
        %2002 = vmatpush.bf16.msra.mxu0 0
        %2003 = vmatpush.bf16.msra.mxu0 0
        %2004 = vmatpush.bf16.msra.mxu0 0
        %2005 = vmatpush.bf16.msra.mxu0 %v1954
        %2006 = vmatpush.bf16.msra.mxu0 %v1916
        %2007 = vmatpush.bf16.msra.mxu0 %v1844
        %2008 = vmatmul.bf16.gmra.mxu0 %v1945
        %v2009 = vpop.f32.mrf.mxu0
        %v2010 = vadd.f32 %v1941, %v2009
        %v2011 = vpop.f32.mrf.mxu0
        %2012 = vdwg.mxu0
        %2013 = vmatpush.bf16.msra.mxu0 0
        %2014 = vmatpush.bf16.msra.mxu0 0
        %2015 = vmatpush.bf16.msra.mxu0 0
        %2016 = vmatpush.bf16.msra.mxu0 0
        %2017 = vmatpush.bf16.msra.mxu0 0
        %2018 = vmatpush.bf16.msra.mxu0 %v1957
        %2019 = vmatpush.bf16.msra.mxu0 %v1919
        %2020 = vmatpush.bf16.msra.mxu0 %v1847
        %2021 = vmatmul.bf16.gmra.mxu0 %v1945
        %v2022 = vpop.f32.mrf.mxu0
        %v2023 = vadd.f32 %v1941, %v2022
        %v2024 = vpop.f32.mrf.mxu0
        %2025 = vdwg.mxu0
        %2026 = vmatpush.bf16.msra.mxu0 0
        %2027 = vmatpush.bf16.msra.mxu0 0
        %2028 = vmatpush.bf16.msra.mxu0 0
        %2029 = vmatpush.bf16.msra.mxu0 0
        %2030 = vmatpush.bf16.msra.mxu0 0
        %2031 = vmatpush.bf16.msra.mxu0 %v1960
        %2032 = vmatpush.bf16.msra.mxu0 %v1922
        %2033 = vmatpush.bf16.msra.mxu0 %v1850
        %2034 = vmatmul.bf16.gmra.mxu0 %v1945
        %v2035 = vpop.f32.mrf.mxu0
        %v2036 = vadd.f32 %v1941, %v2035
        %v2037 = vpop.f32.mrf.mxu0
        %2038 = vdwg.mxu0
        %2039 = vmatpush.bf16.msra.mxu0 0
        %2040 = vmatpush.bf16.msra.mxu0 0
        %2041 = vmatpush.bf16.msra.mxu0 0
        %2042 = vmatpush.bf16.msra.mxu0 0
        %2043 = vmatpush.bf16.msra.mxu0 0
        %2044 = vmatpush.bf16.msra.mxu0 %v1963
        %2045 = vmatpush.bf16.msra.mxu0 %v1925
        %2046 = vmatpush.bf16.msra.mxu0 %v1853
        %2047 = vmatmul.bf16.gmra.mxu0 %v1945
        %v2048 = vpop.f32.mrf.mxu0
        %v2049 = vadd.f32 %v1941, %v2048
        %v2050 = vpop.f32.mrf.mxu0
        %2051 = vdwg.mxu0
        %2052 = vmatpush.bf16.msra.mxu0 0
        %2053 = vmatpush.bf16.msra.mxu0 0
        %2054 = vmatpush.bf16.msra.mxu0 0
        %2055 = vmatpush.bf16.msra.mxu0 0
        %2056 = vmatpush.bf16.msra.mxu0 0
        %2057 = vmatpush.bf16.msra.mxu0 %v1966
        %2058 = vmatpush.bf16.msra.mxu0 %v1928
        %2059 = vmatpush.bf16.msra.mxu0 %v1856
        %2060 = vmatmul.bf16.gmra.mxu0 %v1945
        %v2061 = vpop.f32.mrf.mxu0
        %v2062 = vadd.f32 %v1941, %v2061
        %v2063 = vpop.f32.mrf.mxu0
        %2064 = vdwg.mxu0
        %2065 = vmatpush.bf16.msra.mxu0 0
        %2066 = vmatpush.bf16.msra.mxu0 0
        %2067 = vmatpush.bf16.msra.mxu0 0
        %2068 = vmatpush.bf16.msra.mxu0 0
        %2069 = vmatpush.bf16.msra.mxu0 0
        %2070 = vmatpush.bf16.msra.mxu0 %v1969
        %2071 = vmatpush.bf16.msra.mxu0 %v1931
        %2072 = vmatpush.bf16.msra.mxu0 %v1859
        %2073 = vmatmul.bf16.gmra.mxu0 %v1945
        %v2074 = vpop.f32.mrf.mxu0
        %v2075 = vadd.f32 %v1941, %v2074
        %v2076 = vpop.f32.mrf.mxu0
        %2077 = vdwg.mxu0
        %2078 = vmatpush.bf16.msra.mxu0 0
        %2079 = vmatpush.bf16.msra.mxu0 0
        %2080 = vmatpush.bf16.msra.mxu0 0
        %2081 = vmatpush.bf16.msra.mxu0 0
        %2082 = vmatpush.bf16.msra.mxu0 0
        %2083 = vmatpush.bf16.msra.mxu0 %v1972
        %2084 = vmatpush.bf16.msra.mxu0 %v1934
        %2085 = vmatpush.bf16.msra.mxu0 %v1862
        %2086 = vmatmul.bf16.gmra.mxu0 %v1945
        %v2087 = vpop.f32.mrf.mxu0
        %v2088 = vadd.f32 %v1941, %v2087
        %v2089 = vpop.f32.mrf.mxu0
        %2090 = vdwg.mxu0
        %2091 = vst [vmem:[%s282] sm:$0xff] %v1984
        %2092 = vst [vmem:[%s282 + $0x8] sm:$0xff] %v1997
        %2093 = vst [vmem:[%s282 + $0x10] sm:$0xff] %v2010
        %2094 = vst [vmem:[%s282 + $0x18] sm:$0xff] %v2023
        %2095 = vst [vmem:[%s282 + $0x20] sm:$0xff] %v2036
        %2096 = vst [vmem:[%s282 + $0x28] sm:$0xff] %v2049
        %2097 = vst [vmem:[%s282 + $0x30] sm:$0xff] %v2062
        %2098 = vst [vmem:[%s282 + $0x38] sm:$0xff] %v2075
        %vm2099 = vcmask 523264
        %2100 = vst.msk [vmem:[%s282 + $0x40] sm:$0xff] %vm2099, %v2088
        %v2101 = vlaneseq
        %v2102 = vand.u32 %v2101, 127
        %v2103 = vadd.s32 %v2102, 128
        %v2104 = vadd.s32 %v2102, 256
        %v2105 = vadd.s32 %v2102, 384
        %v2106 = vadd.s32 %v2102, 512
        %v2107 = vadd.s32 %v2102, 640
        %v2108 = vadd.s32 %v2102, 768
        %v2109 = vadd.s32 %v2102, 896
        %v2110 = vadd.s32 %v2102, 1024
        %vm2111 = vcmp.lt.s32.totalorder %v2102, 0
        %v2112 = vsub.s32 0, %v2102
        %v2113 = vsel %vm2111, %v2112, %v2102
        %v2114 = vand.u32 %v2113, 65535
        %v2115 = vshrl.u32 %v2113, 16
        %v2117 = vmul.u32 %v2114, 61681
        %v2118 = vmul.u32 %v2114, 61680
        %v2119 = vmul.u32 %v2115, 61681
        %v2120 = vmul.u32 %v2115, 61680
        %v2121 = vshll.u32 %v2118, 16
        %v2122 = vshrl.u32 %v2118, 16
        %v2123 = vshll.u32 %v2119, 16
        %v2124 = vshrl.u32 %v2119, 16
        %vm2125 = vc.u32 %v2117, %v2121
        %v2126 = vsel %vm2125, 1, 0
        %v2127 = vadd.s32 %v2117, %v2121
        %v2128 = vadd.s32 %v2120, %v2126
        %vm2129 = vc.u32 %v2127, %v2123
        %v2130 = vsel %vm2129, 1, 0
        %v2131 = vadd.s32 %v2127, %v2123
        %v2132 = vadd.s32 %v2128, %v2130
        %v2133 = vadd.s32 %v2132, %v2122
        %v2134 = vadd.s32 %v2133, %v2124
        %v2135 = vshrl.u32 %v2134, 5
        %v2136 = vmul.u32 %v2135, 34
        %v2137 = vsub.s32 %v2113, %v2136
        %v2138 = vsub.s32 0, %v2137
        %v2139 = vsel %vm2111, %v2138, %v2137
        %vm2140 = vcmp.lt.s32.totalorder %v2103, 0
        %v2141 = vsub.s32 0, %v2103
        %v2142 = vsel %vm2140, %v2141, %v2103
        %v2143 = vand.u32 %v2142, 65535
        %v2144 = vshrl.u32 %v2142, 16
        %v2146 = vmul.u32 %v2143, 61681
        %v2147 = vmul.u32 %v2143, 61680
        %v2148 = vmul.u32 %v2144, 61681
        %v2149 = vmul.u32 %v2144, 61680
        %v2150 = vshll.u32 %v2147, 16
        %v2151 = vshrl.u32 %v2147, 16
        %v2152 = vshll.u32 %v2148, 16
        %v2153 = vshrl.u32 %v2148, 16
        %vm2154 = vc.u32 %v2146, %v2150
        %v2155 = vsel %vm2154, 1, 0
        %v2156 = vadd.s32 %v2146, %v2150
        %v2157 = vadd.s32 %v2149, %v2155
        %vm2158 = vc.u32 %v2156, %v2152
        %v2159 = vsel %vm2158, 1, 0
        %v2160 = vadd.s32 %v2156, %v2152
        %v2161 = vadd.s32 %v2157, %v2159
        %v2162 = vadd.s32 %v2161, %v2151
        %v2163 = vadd.s32 %v2162, %v2153
        %v2164 = vshrl.u32 %v2163, 5
        %v2165 = vmul.u32 %v2164, 34
        %v2166 = vsub.s32 %v2142, %v2165
        %v2167 = vsub.s32 0, %v2166
        %v2168 = vsel %vm2140, %v2167, %v2166
        %vm2169 = vcmp.lt.s32.totalorder %v2104, 0
        %v2170 = vsub.s32 0, %v2104
        %v2171 = vsel %vm2169, %v2170, %v2104
        %v2172 = vand.u32 %v2171, 65535
        %v2173 = vshrl.u32 %v2171, 16
        %v2175 = vmul.u32 %v2172, 61681
        %v2176 = vmul.u32 %v2172, 61680
        %v2177 = vmul.u32 %v2173, 61681
        %v2178 = vmul.u32 %v2173, 61680
        %v2179 = vshll.u32 %v2176, 16
        %v2180 = vshrl.u32 %v2176, 16
        %v2181 = vshll.u32 %v2177, 16
        %v2182 = vshrl.u32 %v2177, 16
        %vm2183 = vc.u32 %v2175, %v2179
        %v2184 = vsel %vm2183, 1, 0
        %v2185 = vadd.s32 %v2175, %v2179
        %v2186 = vadd.s32 %v2178, %v2184
        %vm2187 = vc.u32 %v2185, %v2181
        %v2188 = vsel %vm2187, 1, 0
        %v2189 = vadd.s32 %v2185, %v2181
        %v2190 = vadd.s32 %v2186, %v2188
        %v2191 = vadd.s32 %v2190, %v2180
        %v2192 = vadd.s32 %v2191, %v2182
        %v2193 = vshrl.u32 %v2192, 5
        %v2194 = vmul.u32 %v2193, 34
        %v2195 = vsub.s32 %v2171, %v2194
        %v2196 = vsub.s32 0, %v2195
        %v2197 = vsel %vm2169, %v2196, %v2195
        %vm2198 = vcmp.lt.s32.totalorder %v2105, 0
        %v2199 = vsub.s32 0, %v2105
        %v2200 = vsel %vm2198, %v2199, %v2105
        %v2201 = vand.u32 %v2200, 65535
        %v2202 = vshrl.u32 %v2200, 16
        %v2204 = vmul.u32 %v2201, 61681
        %v2205 = vmul.u32 %v2201, 61680
        %v2206 = vmul.u32 %v2202, 61681
        %v2207 = vmul.u32 %v2202, 61680
        %v2208 = vshll.u32 %v2205, 16
        %v2209 = vshrl.u32 %v2205, 16
        %v2210 = vshll.u32 %v2206, 16
        %v2211 = vshrl.u32 %v2206, 16
        %vm2212 = vc.u32 %v2204, %v2208
        %v2213 = vsel %vm2212, 1, 0
        %v2214 = vadd.s32 %v2204, %v2208
        %v2215 = vadd.s32 %v2207, %v2213
        %vm2216 = vc.u32 %v2214, %v2210
        %v2217 = vsel %vm2216, 1, 0
        %v2218 = vadd.s32 %v2214, %v2210
        %v2219 = vadd.s32 %v2215, %v2217
        %v2220 = vadd.s32 %v2219, %v2209
        %v2221 = vadd.s32 %v2220, %v2211
        %v2222 = vshrl.u32 %v2221, 5
        %v2223 = vmul.u32 %v2222, 34
        %v2224 = vsub.s32 %v2200, %v2223
        %v2225 = vsub.s32 0, %v2224
        %v2226 = vsel %vm2198, %v2225, %v2224
        %vm2227 = vcmp.lt.s32.totalorder %v2106, 0
        %v2228 = vsub.s32 0, %v2106
        %v2229 = vsel %vm2227, %v2228, %v2106
        %v2230 = vand.u32 %v2229, 65535
        %v2231 = vshrl.u32 %v2229, 16
        %v2233 = vmul.u32 %v2230, 61681
        %v2234 = vmul.u32 %v2230, 61680
        %v2235 = vmul.u32 %v2231, 61681
        %v2236 = vmul.u32 %v2231, 61680
        %v2237 = vshll.u32 %v2234, 16
        %v2238 = vshrl.u32 %v2234, 16
        %v2239 = vshll.u32 %v2235, 16
        %v2240 = vshrl.u32 %v2235, 16
        %vm2241 = vc.u32 %v2233, %v2237
        %v2242 = vsel %vm2241, 1, 0
        %v2243 = vadd.s32 %v2233, %v2237
        %v2244 = vadd.s32 %v2236, %v2242
        %vm2245 = vc.u32 %v2243, %v2239
        %v2246 = vsel %vm2245, 1, 0
        %v2247 = vadd.s32 %v2243, %v2239
        %v2248 = vadd.s32 %v2244, %v2246
        %v2249 = vadd.s32 %v2248, %v2238
        %v2250 = vadd.s32 %v2249, %v2240
        %v2251 = vshrl.u32 %v2250, 5
        %v2252 = vmul.u32 %v2251, 34
        %v2253 = vsub.s32 %v2229, %v2252
        %v2254 = vsub.s32 0, %v2253
        %v2255 = vsel %vm2227, %v2254, %v2253
        %vm2256 = vcmp.lt.s32.totalorder %v2107, 0
        %v2257 = vsub.s32 0, %v2107
        %v2258 = vsel %vm2256, %v2257, %v2107
        %v2259 = vand.u32 %v2258, 65535
        %v2260 = vshrl.u32 %v2258, 16
        %v2262 = vmul.u32 %v2259, 61681
        %v2263 = vmul.u32 %v2259, 61680
        %v2264 = vmul.u32 %v2260, 61681
        %v2265 = vmul.u32 %v2260, 61680
        %v2266 = vshll.u32 %v2263, 16
        %v2267 = vshrl.u32 %v2263, 16
        %v2268 = vshll.u32 %v2264, 16
        %v2269 = vshrl.u32 %v2264, 16
        %vm2270 = vc.u32 %v2262, %v2266
        %v2271 = vsel %vm2270, 1, 0
        %v2272 = vadd.s32 %v2262, %v2266
        %v2273 = vadd.s32 %v2265, %v2271
        %vm2274 = vc.u32 %v2272, %v2268
        %v2275 = vsel %vm2274, 1, 0
        %v2276 = vadd.s32 %v2272, %v2268
        %v2277 = vadd.s32 %v2273, %v2275
        %v2278 = vadd.s32 %v2277, %v2267
        %v2279 = vadd.s32 %v2278, %v2269
        %v2280 = vshrl.u32 %v2279, 5
        %v2281 = vmul.u32 %v2280, 34
        %v2282 = vsub.s32 %v2258, %v2281
        %v2283 = vsub.s32 0, %v2282
        %v2284 = vsel %vm2256, %v2283, %v2282
        %vm2285 = vcmp.lt.s32.totalorder %v2108, 0
        %v2286 = vsub.s32 0, %v2108
        %v2287 = vsel %vm2285, %v2286, %v2108
        %v2288 = vand.u32 %v2287, 65535
        %v2289 = vshrl.u32 %v2287, 16
        %v2291 = vmul.u32 %v2288, 61681
        %v2292 = vmul.u32 %v2288, 61680
        %v2293 = vmul.u32 %v2289, 61681
        %v2294 = vmul.u32 %v2289, 61680
        %v2295 = vshll.u32 %v2292, 16
        %v2296 = vshrl.u32 %v2292, 16
        %v2297 = vshll.u32 %v2293, 16
        %v2298 = vshrl.u32 %v2293, 16
        %vm2299 = vc.u32 %v2291, %v2295
        %v2300 = vsel %vm2299, 1, 0
        %v2301 = vadd.s32 %v2291, %v2295
        %v2302 = vadd.s32 %v2294, %v2300
        %vm2303 = vc.u32 %v2301, %v2297
        %v2304 = vsel %vm2303, 1, 0
        %v2305 = vadd.s32 %v2301, %v2297
        %v2306 = vadd.s32 %v2302, %v2304
        %v2307 = vadd.s32 %v2306, %v2296
        %v2308 = vadd.s32 %v2307, %v2298
        %v2309 = vshrl.u32 %v2308, 5
        %v2310 = vmul.u32 %v2309, 34
        %v2311 = vsub.s32 %v2287, %v2310
        %v2312 = vsub.s32 0, %v2311
        %v2313 = vsel %vm2285, %v2312, %v2311
        %vm2314 = vcmp.lt.s32.totalorder %v2109, 0
        %v2315 = vsub.s32 0, %v2109
        %v2316 = vsel %vm2314, %v2315, %v2109
        %v2317 = vand.u32 %v2316, 65535
        %v2318 = vshrl.u32 %v2316, 16
        %v2320 = vmul.u32 %v2317, 61681
        %v2321 = vmul.u32 %v2317, 61680
        %v2322 = vmul.u32 %v2318, 61681
        %v2323 = vmul.u32 %v2318, 61680
        %v2324 = vshll.u32 %v2321, 16
        %v2325 = vshrl.u32 %v2321, 16
        %v2326 = vshll.u32 %v2322, 16
        %v2327 = vshrl.u32 %v2322, 16
        %vm2328 = vc.u32 %v2320, %v2324
        %v2329 = vsel %vm2328, 1, 0
        %v2330 = vadd.s32 %v2320, %v2324
        %v2331 = vadd.s32 %v2323, %v2329
        %vm2332 = vc.u32 %v2330, %v2326
        %v2333 = vsel %vm2332, 1, 0
        %v2334 = vadd.s32 %v2330, %v2326
        %v2335 = vadd.s32 %v2331, %v2333
        %v2336 = vadd.s32 %v2335, %v2325
        %v2337 = vadd.s32 %v2336, %v2327
        %v2338 = vshrl.u32 %v2337, 5
        %v2339 = vmul.u32 %v2338, 34
        %v2340 = vsub.s32 %v2316, %v2339
        %v2341 = vsub.s32 0, %v2340
        %v2342 = vsel %vm2314, %v2341, %v2340
        %vm2343 = vcmp.lt.s32.totalorder %v2110, 0
        %v2344 = vsub.s32 0, %v2110
        %v2345 = vsel %vm2343, %v2344, %v2110
        %v2346 = vand.u32 %v2345, 65535
        %v2347 = vshrl.u32 %v2345, 16
        %v2349 = vmul.u32 %v2346, 61681
        %v2350 = vmul.u32 %v2346, 61680
        %v2351 = vmul.u32 %v2347, 61681
        %v2352 = vmul.u32 %v2347, 61680
        %v2353 = vshll.u32 %v2350, 16
        %v2354 = vshrl.u32 %v2350, 16
        %v2355 = vshll.u32 %v2351, 16
        %v2356 = vshrl.u32 %v2351, 16
        %vm2357 = vc.u32 %v2349, %v2353
        %v2358 = vsel %vm2357, 1, 0
        %v2359 = vadd.s32 %v2349, %v2353
        %v2360 = vadd.s32 %v2352, %v2358
        %vm2361 = vc.u32 %v2359, %v2355
        %v2362 = vsel %vm2361, 1, 0
        %v2363 = vadd.s32 %v2359, %v2355
        %v2364 = vadd.s32 %v2360, %v2362
        %v2365 = vadd.s32 %v2364, %v2354
        %v2366 = vadd.s32 %v2365, %v2356
        %v2367 = vshrl.u32 %v2366, 5
        %v2368 = vmul.u32 %v2367, 34
        %v2369 = vsub.s32 %v2345, %v2368
        %v2370 = vsub.s32 0, %v2369
        %v2371 = vsel %vm2343, %v2370, %v2369
        %vm2372 = vcmp.ne.s32.totalorder %v2139, 0
        %vm2373 = vcmp.ne.s32.totalorder %v2168, 0
        %vm2374 = vcmp.ne.s32.totalorder %v2197, 0
        %vm2375 = vcmp.ne.s32.totalorder %v2226, 0
        %vm2376 = vcmp.ne.s32.totalorder %v2255, 0
        %vm2377 = vcmp.ne.s32.totalorder %v2284, 0
        %vm2378 = vcmp.ne.s32.totalorder %v2313, 0
        %vm2379 = vcmp.ne.s32.totalorder %v2342, 0
        %vm2380 = vcmp.ne.s32.totalorder %v2371, 0
        %vm2381 = vcmp.lt.s32.totalorder %v2139, 0
        %vm2382 = vcmp.lt.s32.totalorder %v2168, 0
        %vm2383 = vcmp.lt.s32.totalorder %v2197, 0
        %vm2384 = vcmp.lt.s32.totalorder %v2226, 0
        %vm2385 = vcmp.lt.s32.totalorder %v2255, 0
        %vm2386 = vcmp.lt.s32.totalorder %v2284, 0
        %vm2387 = vcmp.lt.s32.totalorder %v2313, 0
        %vm2388 = vcmp.lt.s32.totalorder %v2342, 0
        %vm2389 = vcmp.lt.s32.totalorder %v2371, 0
        %vm2390 = vmand %vm2381, %vm2372
        %vm2391 = vmand %vm2382, %vm2373
        %vm2392 = vmand %vm2383, %vm2374
        %vm2393 = vmand %vm2384, %vm2375
        %vm2394 = vmand %vm2385, %vm2376
        %vm2395 = vmand %vm2386, %vm2377
        %vm2396 = vmand %vm2387, %vm2378
        %vm2397 = vmand %vm2388, %vm2379
        %vm2398 = vmand %vm2389, %vm2380
        %v2399 = vadd.s32 %v2139, 34
        %v2400 = vadd.s32 %v2168, 34
        %v2401 = vadd.s32 %v2197, 34
        %v2402 = vadd.s32 %v2226, 34
        %v2403 = vadd.s32 %v2255, 34
        %v2404 = vadd.s32 %v2284, 34
        %v2405 = vadd.s32 %v2313, 34
        %v2406 = vadd.s32 %v2342, 34
        %v2407 = vadd.s32 %v2371, 34
        %v2408 = vsel %vm2390, %v2399, %v2139
        %v2409 = vsel %vm2391, %v2400, %v2168
        %v2410 = vsel %vm2392, %v2401, %v2197
        %v2411 = vsel %vm2393, %v2402, %v2226
        %v2412 = vsel %vm2394, %v2403, %v2255
        %v2413 = vsel %vm2395, %v2404, %v2284
        %v2414 = vsel %vm2396, %v2405, %v2313
        %v2415 = vsel %vm2397, %v2406, %v2342
        %v2416 = vsel %vm2398, %v2407, %v2371
        %vm2417 = vcmp.lt.s32.totalorder %v2408, 32
        %vm2418 = vcmp.lt.s32.totalorder %v2409, 32
        %vm2419 = vcmp.lt.s32.totalorder %v2410, 32
        %vm2420 = vcmp.lt.s32.totalorder %v2411, 32
        %vm2421 = vcmp.lt.s32.totalorder %v2412, 32
        %vm2422 = vcmp.lt.s32.totalorder %v2413, 32
        %vm2423 = vcmp.lt.s32.totalorder %v2414, 32
        %vm2424 = vcmp.lt.s32.totalorder %v2415, 32
        %vm2425 = vcmp.lt.s32.totalorder %v2416, 32
        %v2426 = vsel %vm2417, 1, 0
        %v2427 = vsel %vm2418, 1, 0
        %v2428 = vsel %vm2419, 1, 0
        %v2429 = vsel %vm2420, 1, 0
        %v2430 = vsel %vm2421, 1, 0
        %v2431 = vsel %vm2422, 1, 0
        %v2432 = vsel %vm2423, 1, 0
        %v2433 = vsel %vm2424, 1, 0
        %v2434 = vsel %vm2425, 1, 0
        %v2435 = vcvt.s32.f32 %v2426
        %v2436 = vcvt.s32.f32 %v2427
        %v2437 = vcvt.s32.f32 %v2428
        %v2438 = vcvt.s32.f32 %v2429
        %v2439 = vcvt.s32.f32 %v2430
        %v2440 = vcvt.s32.f32 %v2431
        %v2441 = vcvt.s32.f32 %v2432
        %v2442 = vcvt.s32.f32 %v2433
        %v2443 = vcvt.s32.f32 %v2434
        %v2444 = vmul.f32 %v1984, %v2435
        %v2445 = vmul.f32 %v1997, %v2436
        %v2446 = vmul.f32 %v2010, %v2437
        %v2447 = vmul.f32 %v2023, %v2438
        %v2448 = vmul.f32 %v2036, %v2439
        %v2449 = vmul.f32 %v2049, %v2440
        %v2450 = vmul.f32 %v2062, %v2441
        %v2451 = vmul.f32 %v2075, %v2442
        %v2452 = vmul.f32 %v2088, %v2443
        %v2453 = vadd.f32 %v2444, %v2445
        %v2454 = vadd.f32 %v2453, %v2446
        %v2455 = vadd.f32 %v2454, %v2447
        %v2456 = vadd.f32 %v2455, %v2448
        %v2457 = vadd.f32 %v2456, %v2449
        %v2458 = vadd.f32 %v2457, %v2450
        %v2459 = vadd.f32 %v2458, %v2451
        %v2460 = vsel %vm2099, %v2452, 0.0
        %v2461 = vadd.f32 %v2459, %v2460
        %2462 = vadd.xlane.f32.xlu0 %v2461
        %v2463 = vpop.xlane.xlu0 %2462
        %v2464 = vmul.f32 %v2444, %v1984
        %v2465 = vmul.f32 %v2445, %v1997
        %v2466 = vmul.f32 %v2446, %v2010
        %v2467 = vmul.f32 %v2447, %v2023
        %v2468 = vmul.f32 %v2448, %v2036
        %v2469 = vmul.f32 %v2449, %v2049
        %v2470 = vmul.f32 %v2450, %v2062
        %v2471 = vmul.f32 %v2451, %v2075
        %v2472 = vmul.f32 %v2452, %v2088
        %v2473 = vadd.f32 %v2464, %v2465
        %v2474 = vadd.f32 %v2473, %v2466
        %v2475 = vadd.f32 %v2474, %v2467
        %v2476 = vadd.f32 %v2475, %v2468
        %v2477 = vadd.f32 %v2476, %v2469
        %v2478 = vadd.f32 %v2477, %v2470
        %v2479 = vadd.f32 %v2478, %v2471
        %v2480 = vsel %vm2099, %v2472, 0.0
        %v2481 = vadd.f32 %v2479, %v2480
        %2482 = vadd.xlane.f32.xlu0 %v2481
        %v2483 = vpop.xlane.xlu0 %2482
        %vm2484 = vcmask 7168
        %v2485 = vsel %vm2484, %v2463, %v2483
        %vm2486 = vcmask 15360
        %2487 = vst.msk [vmem:[%s286] sm:$0xff] %vm2486, %v2485
        %p2488 = scmp.lt.s32.totalorder %s18, 1
        %s2489 = scalar_select %p2488, %s18, 1
        %s2490 = smul.addr %s2489, 9
        %s2491 = smul.addr %s2490, 8
        %s2492 = scalar_lea.vmem %s4, %s2491
        %p2493 = scmp.lt.s32.totalorder %s18, 1
        %s2494 = scalar_select %p2493, %s18, 1
        %s2495 = smul.addr %s2494, 8
        %s2496 = scalar_lea.vmem %s5, %s2495
        // Predicated region
        $region41: #{up_conv_dcoa_forward.2} parent=35 // pred_check
          %p2497 = pneg %p135
        $region42: #{up_conv_dcoa_forward.2} parent=35 // pred_check_branch
          %2499 = sbr.rel (%p2497) target = $region44
        $region43: #{up_conv_dcoa_forward.2} parent=35 // pred_region
          _
        $region44: #{up_conv_dcoa_forward.2} parent=35 // pred_fallthru
          _
        // Predicated region
        $region45: #{up_conv_dcoa_forward.2} parent=35 // pred_check
          %p2500 = pneg %p161
        $region46: #{up_conv_dcoa_forward.2} parent=35 // pred_check_branch
          %2502 = sbr.rel (%p2500) target = $region48
        $region47: #{up_conv_dcoa_forward.2} parent=35 // pred_region
          _
        $region48: #{up_conv_dcoa_forward.2} parent=35 // pred_fallthru
          _
      $region36: #{up_conv_dcoa_forward.2} parent=5 // pred_fallthru
        _
      %p2503 = scmp.le.s32.totalorder 2, %s13
      // Predicated region
      $region49: #{up_conv_dcoa_forward.2} parent=5 // pred_check
        %p2504 = pneg %p2503
      $region50: #{up_conv_dcoa_forward.2} parent=5 // pred_check_branch
        %2506 = sbr.rel (%p2504) target = $region52
      $region51: #{up_conv_dcoa_forward.2} parent=5 // pred_region
        %s2507 = ssub.s32 %s13, 2
        // Predicated region
        $region53: #{up_conv_dcoa_forward.2} parent=51 // pred_check
          %p2508 = pneg %p141
        $region54: #{up_conv_dcoa_forward.2} parent=51 // pred_check_branch
          %2510 = sbr.rel (%p2508) target = $region56
        $region55: #{up_conv_dcoa_forward.2} parent=51 // pred_region
          %p2511 = scmp.lt.s32.totalorder %s19, 1
          %s2512 = scalar_select %p2511, %s19, 1
          %s2513 = smul.addr %s2512, 9
          %s2514 = smul.addr %s2513, 8
          %s2515 = scalar_lea.vmem %s4, %s2514
        $region56: #{up_conv_dcoa_forward.2} parent=51 // pred_fallthru
          _
        // Predicated region
        $region57: #{up_conv_dcoa_forward.2} parent=51 // pred_check
          %p2516 = pneg %p167
        $region58: #{up_conv_dcoa_forward.2} parent=51 // pred_check_branch
          %2518 = sbr.rel (%p2516) target = $region60
        $region59: #{up_conv_dcoa_forward.2} parent=51 // pred_region
          %p2519 = scmp.lt.s32.totalorder %s19, 1
          %s2520 = scalar_select %p2519, %s19, 1
          %s2521 = smul.addr %s2520, 8
          %s2522 = scalar_lea.vmem %s5, %s2521
        $region60: #{up_conv_dcoa_forward.2} parent=51 // pred_fallthru
          _
      $region52: #{up_conv_dcoa_forward.2} parent=5 // pred_fallthru
        _
    $region6: #{up_conv_dcoa_forward.2} parent=1 // loop_footer
      %s17 = sadd.s32 1, %s13
    $region7: #{up_conv_dcoa_forward.2} parent=1 // loop_footer_branch
      %12 = sbr.rel target = $region3
    $region8: #{up_conv_dcoa_forward.2} parent=1 // loop_exit
      _
    %2523 = vsyncpa [#allocation3], 1
    %s2524 = scalar_lea.sflag [#allocation3], 1
    %2525 = vsyncpa %s2524, 1

</llo_original>
